<compile_context>
chip_gen: v7x
topology: tpu7x:2x2x1
jax: 0.10.0
libtpu: 0.0.40
codegen_flags: <defaults>
</compile_context>

<pallas_src>
import jax
import jax.numpy as jnp
from jax.experimental import pallas as pl
from jax.experimental.pallas import tpu as pltpu

INPUT_DIM = 10
HIDDEN_DIM = 128
NUM_LAYERS = 2   # hardcoded as two explicit layers in the kernel
OUTPUT_DIM = 1

_SUBLANE = 8     # f32 sublane tile
_LANE = 128      # lane tile


def gru_regressor_kernel(x_ref, wih0_ref, whh0_ref, bc0_ref, bhn0_ref,
                         wih1_ref, whh1_ref, bc1_ref, bhn1_ref,
                         fcw_ref, fcb_ref,
                         out_ref, gi_ref):
    """Two stacked GRU layers + Linear head, diagonal-wavefront scheduled.

    x_ref    : (S*Bp, D)  time-major, batch-padded input (f32)
    w*_ref   : bf16 weights, pre-transposed to (in_features, 3H)
    bc*_ref  : (1, 3H) f32 = bias_ih + [bias_hh_r, bias_hh_z, 0]  (folded)
    bhn*_ref : (1, H)  f32 = bias_hh_n (kept separate: multiplied by r)
    fcw_ref  : (H, 128) f32 Linear weight padded to 128 lanes; fcb_ref (1, 128)
    out_ref  : (Bp, 128) f32 (column 0 holds the real output)
    gi_ref   : (S*Bp, 3H) f32 scratch holding layer-0's hoisted input projection
    """
    SB = x_ref.shape[0]
    Bp = out_ref.shape[0]
    S = SB // Bp
    H = whh0_ref.shape[0]

    # Hoist bias broadcasts out of the unrolled loop (JAX doesn't CSE
    # broadcast_in_dim -> one per layer instead of one per step).
    bhn0 = jnp.broadcast_to(bhn0_ref[...], (Bp, H))
    bhn1 = jnp.broadcast_to(bhn1_ref[...], (Bp, H))
    bc1 = jnp.broadcast_to(bc1_ref[...], (Bp, 3 * H))

    whh0 = whh0_ref[...]
    whh1 = whh1_ref[...]
    wih1 = wih1_ref[...]

    # ---- layer-0 input projection: ONE big MXU matmul over the whole sequence.
    gi_ref[...] = (jnp.dot(x_ref[...].astype(jnp.bfloat16), wih0_ref[...],
                           preferred_element_type=jnp.float32) + bc0_ref[...])

    def gru_step(gi, h_prev, whh, bhn):
        # Only the h_{t-1} @ W_hh matmul sits on the recurrent chain; the input
        # projection `gi` was produced earlier (hoisted / previous wave).
        gh = jnp.dot(h_prev.astype(jnp.bfloat16), whh,
                     preferred_element_type=jnp.float32)
        r = jax.nn.sigmoid(gi[:, 0:H] + gh[:, 0:H])
        z = jax.nn.sigmoid(gi[:, H:2 * H] + gh[:, H:2 * H])
        n = jnp.tanh(gi[:, 2 * H:3 * H] + r * (gh[:, 2 * H:3 * H] + bhn))
        return (1.0 - z) * n + z * h_prev

    h0 = jnp.zeros((Bp, H), jnp.float32)
    h1 = jnp.zeros((Bp, H), jnp.float32)
    gi1 = None

    # Diagonal wavefront: wave t = {layer-0 step t, layer-1 step t-1}.  Within a
    # wave the two chains only depend on results of the previous wave, so their
    # matmuls / gate math can overlap.  Fully unrolled (S small & static).
    # TODO(synk): for large S, switch to a time-chunked lax.fori_loop carrying
    # (h0, h1, gi1) (and stream x via a time-chunk grid axis) to bound trace size.
    for t in range(S):                           # static, sublane-aligned offsets
        lo = t * Bp
        h0_new = gru_step(gi_ref[lo:lo + Bp, :], h0, whh0, bhn0)
        if t > 0:
            h1 = gru_step(gi1, h1, whh1, bhn1)   # layer-1 step t-1 (independent)
        # Layer-1 input projection for step t: available as soon as h0[t] is,
        # consumed one wave later -> off the recurrent critical path.
        gi1 = (jnp.dot(h0_new.astype(jnp.bfloat16), wih1,
                       preferred_element_type=jnp.float32) + bc1)
        h0 = h0_new
    h1 = gru_step(gi1, h1, whh1, bhn1)           # final layer-1 step S-1

    # ---- Linear head (weight padded to 128 lanes -> lane-dense store) ----
    out_ref[...] = (jnp.dot(h1, fcw_ref[...],
                            preferred_element_type=jnp.float32) + fcb_ref[...])


def gru_regressor(x, params):
    """x: (B, S, INPUT_DIM) float32.  params: tuple of 10 arrays (see init_params)."""
    wih0, whh0, bih0, bhh0, wih1, whh1, bih1, bhh1, fcw, fcb = params
    B, S, D = x.shape
    H = whh0.shape[0]
    O = fcw.shape[1]
    Bp = ((B + _SUBLANE - 1) // _SUBLANE) * _SUBLANE   # pad batch to sublane multiple

    # Time-major + batch-pad + flatten so layer-0's input projection is a single
    # 2-D matmul inside the kernel.
    # TODO(synk): for large S/B, stream x in time chunks via a BlockSpec
    # index_map / manual DMA instead of materializing this transposed copy.
    x_tm = jnp.transpose(x.astype(jnp.float32), (1, 0, 2))        # (S, B, D)
    x_tm = jnp.pad(x_tm, ((0, 0), (0, Bp - B), (0, 0)))           # (S, Bp, D)
    x2d = x_tm.reshape(S * Bp, D)

    # Fold the r/z halves of bias_hh into the hoisted projection bias; keep
    # bias_hh_n separate (it sits inside the r * (...) term in the GRU cell).
    zeros_h = jnp.zeros((1, H), jnp.float32)
    bc0 = bih0 + jnp.concatenate([bhh0[:, :2 * H], zeros_h], axis=1)
    bc1 = bih1 + jnp.concatenate([bhh1[:, :2 * H], zeros_h], axis=1)
    bhn0 = bhh0[:, 2 * H:]
    bhn1 = bhh1[:, 2 * H:]

    # bf16 weights feed the MXU; accumulation stays f32 in-kernel.
    bf16 = lambda w: w.astype(jnp.bfloat16)

    # Pad the Linear head to 128 output lanes -> unmasked, lane-dense output.
    fcw_p = jnp.zeros((H, _LANE), jnp.float32).at[:, :O].set(fcw)
    fcb_p = jnp.zeros((1, _LANE), jnp.float32).at[:, :O].set(fcb)

    args = (x2d, bf16(wih0), bf16(whh0), bc0, bhn0,
            bf16(wih1), bf16(whh1), bc1, bhn1, fcw_p, fcb_p)
    vmem = pl.BlockSpec(memory_space=pltpu.MemorySpace.VMEM)

    out_padded = pl.pallas_call(
        gru_regressor_kernel,
        out_shape=jax.ShapeDtypeStruct((Bp, _LANE), jnp.float32),
        in_specs=[vmem] * len(args),
        out_specs=vmem,
        scratch_shapes=[pltpu.VMEM((S * Bp, 3 * H), jnp.float32)],  # layer-0 gi
    )(*args)
    return out_padded[:B, :O]


def init_params(key):
    """Deterministic synthetic parameters matching nn.GRU / nn.Linear shapes.

    GRU weights are stored transposed: weight_ih_l0 (3H, D) -> (D, 3H), etc.
    Biases are shaped (1, 3H) for clean broadcasting on TPU.
    """
    H, D, O = HIDDEN_DIM, INPUT_DIM, OUTPUT_DIM
    k = 1.0 / jnp.sqrt(jnp.float32(H))
    keys = jax.random.split(key, 10)
    u = lambda kk, shape, scale: jax.random.uniform(
        kk, shape, jnp.float32, -scale, scale)

    wih0 = u(keys[0], (D, 3 * H), k)       # weight_ih_l0.T
    whh0 = u(keys[1], (H, 3 * H), k)       # weight_hh_l0.T
    bih0 = u(keys[2], (1, 3 * H), k)       # bias_ih_l0
    bhh0 = u(keys[3], (1, 3 * H), k)       # bias_hh_l0
    wih1 = u(keys[4], (H, 3 * H), k)       # weight_ih_l1.T
    whh1 = u(keys[5], (H, 3 * H), k)       # weight_hh_l1.T
    bih1 = u(keys[6], (1, 3 * H), k)       # bias_ih_l1
    bhh1 = u(keys[7], (1, 3 * H), k)       # bias_hh_l1
    kf = 1.0 / jnp.sqrt(jnp.float32(H))
    fcw = u(keys[8], (H, O), kf)           # fc.weight.T
    fcb = u(keys[9], (1, O), kf)           # fc.bias
    return (wih0, whh0, bih0, bhh0, wih1, whh1, bih1, bhh1, fcw, fcb)


def reference_forward(x, params):
    """Pure-JAX (f32) reference of the PyTorch forward (for a sanity check)."""
    wih0, whh0, bih0, bhh0, wih1, whh1, bih1, bhh1, fcw, fcb = params
    H = HIDDEN_DIM
    B, S, _ = x.shape

    def cell(x_t, h, wih, whh, bih, bhh):
        gi = x_t @ wih + bih
        gh = h @ whh + bhh
        r = jax.nn.sigmoid(gi[:, :H] + gh[:, :H])
        z = jax.nn.sigmoid(gi[:, H:2 * H] + gh[:, H:2 * H])
        n = jnp.tanh(gi[:, 2 * H:] + r * gh[:, 2 * H:])
        return (1.0 - z) * n + z * h

    h0 = jnp.zeros((B, H), jnp.float32)
    h1 = jnp.zeros((B, H), jnp.float32)
    for t in range(S):
        h0 = cell(x[:, t, :], h0, wih0, whh0, bih0, bhh0)
        h1 = cell(h0, h1, wih1, whh1, bih1, bhh1)
    return h1 @ fcw + fcb


if __name__ == "__main__":
    key = jax.random.PRNGKey(0)
    k_x, k_p = jax.random.split(key)

    B, S = 2, 8
    x = jax.random.normal(k_x, (B, S, INPUT_DIM), jnp.float32)
    params = init_params(k_p)

    out = jax.jit(gru_regressor)(x, params)
    out = jax.block_until_ready(out)

    ref = reference_forward(x, params)
    assert out.shape == (B, OUTPUT_DIM)
    # Slightly loosened tolerance: kernel uses bf16 weights on the MXU (f32 acc).
    assert jnp.allclose(out, ref, atol=3e-2, rtol=3e-2), (out, ref)

    print("KERNEL_OK")
</pallas_src>

<mosaic_0001>
module attributes {stable_mosaic.version = 11 : i64} {
  func.func @gru_regressor_kernel(%arg0: memref<64x10xf32, #tpu.memory_space<vmem>>, %arg1: memref<10x384xbf16, #tpu.memory_space<vmem>>, %arg2: memref<128x384xbf16, #tpu.memory_space<vmem>>, %arg3: memref<1x384xf32, #tpu.memory_space<vmem>>, %arg4: memref<1x128xf32, #tpu.memory_space<vmem>>, %arg5: memref<128x384xbf16, #tpu.memory_space<vmem>>, %arg6: memref<128x384xbf16, #tpu.memory_space<vmem>>, %arg7: memref<1x384xf32, #tpu.memory_space<vmem>>, %arg8: memref<1x128xf32, #tpu.memory_space<vmem>>, %arg9: memref<128x128xf32, #tpu.memory_space<vmem>>, %arg10: memref<1x128xf32, #tpu.memory_space<vmem>>, %arg11: memref<8x128xf32, #tpu.memory_space<vmem>>, %arg12: memref<64x384xf32, #tpu.memory_space<vmem>>) attributes {dimension_semantics = [], scalar_prefetch = 0 : i64, scratch_operands = 1 : i64, tpu.core_type = #tpu.core_type<tc>} {
    %c0 = arith.constant 0 : index
    %c0_0 = arith.constant 0 : index
    %0 = vector.load %arg4[%c0, %c0_0] : memref<1x128xf32, #tpu.memory_space<vmem>>, vector<1x128xf32>
    %1 = vector.shape_cast %0 : vector<1x128xf32> to vector<1x128xf32>
    %2 = vector.broadcast %1 : vector<1x128xf32> to vector<8x128xf32>
    %c0_1 = arith.constant 0 : index
    %c0_2 = arith.constant 0 : index
    %3 = vector.load %arg8[%c0_1, %c0_2] : memref<1x128xf32, #tpu.memory_space<vmem>>, vector<1x128xf32>
    %4 = vector.shape_cast %3 : vector<1x128xf32> to vector<1x128xf32>
    %5 = vector.broadcast %4 : vector<1x128xf32> to vector<8x128xf32>
    %c0_3 = arith.constant 0 : index
    %c0_4 = arith.constant 0 : index
    %6 = vector.load %arg7[%c0_3, %c0_4] : memref<1x384xf32, #tpu.memory_space<vmem>>, vector<1x384xf32>
    %7 = vector.shape_cast %6 : vector<1x384xf32> to vector<1x384xf32>
    %8 = vector.broadcast %7 : vector<1x384xf32> to vector<8x384xf32>
    %c0_5 = arith.constant 0 : index
    %c0_6 = arith.constant 0 : index
    %9 = vector.load %arg2[%c0_5, %c0_6] : memref<128x384xbf16, #tpu.memory_space<vmem>>, vector<128x384xbf16>
    %c0_7 = arith.constant 0 : index
    %c0_8 = arith.constant 0 : index
    %10 = vector.load %arg6[%c0_7, %c0_8] : memref<128x384xbf16, #tpu.memory_space<vmem>>, vector<128x384xbf16>
    %c0_9 = arith.constant 0 : index
    %c0_10 = arith.constant 0 : index
    %11 = vector.load %arg5[%c0_9, %c0_10] : memref<128x384xbf16, #tpu.memory_space<vmem>>, vector<128x384xbf16>
    %c0_11 = arith.constant 0 : index
    %c0_12 = arith.constant 0 : index
    %12 = vector.load %arg0[%c0_11, %c0_12] : memref<64x10xf32, #tpu.memory_space<vmem>>, vector<64x10xf32>
    %13 = arith.truncf %12 : vector<64x10xf32> to vector<64x10xbf16>
    %c0_13 = arith.constant 0 : index
    %c0_14 = arith.constant 0 : index
    %14 = vector.load %arg1[%c0_13, %c0_14] : memref<10x384xbf16, #tpu.memory_space<vmem>>, vector<10x384xbf16>
    %cst = arith.constant dense<0.000000e+00> : vector<64x384xf32>
    %15 = tpu.matmul %13, %14, %cst {dimension_numbers = #tpu.dot_dimension_numbers<[1], [0], [0], [1], [0, 0, 1, 1], [], []>} : vector<64x10xbf16>, vector<10x384xbf16>, vector<64x384xf32> -> vector<64x384xf32>
    %c0_15 = arith.constant 0 : index
    %c0_16 = arith.constant 0 : index
    %16 = vector.load %arg3[%c0_15, %c0_16] : memref<1x384xf32, #tpu.memory_space<vmem>>, vector<1x384xf32>
    %17 = vector.broadcast %16 : vector<1x384xf32> to vector<64x384xf32>
    %18 = arith.addf %15, %17 : vector<64x384xf32>
    %c0_17 = arith.constant 0 : index
    %c0_18 = arith.constant 0 : index
    %19 = vector.load %arg12[%c0_17, %c0_18] : memref<64x384xf32, #tpu.memory_space<vmem>>, vector<64x384xf32>
    tpu.vector_store %arg12[%c0_17, %c0_18], %18 {strides = array<i32>} : memref<64x384xf32, #tpu.memory_space<vmem>>, vector<64x384xf32>,
    %cst_19 = arith.constant 0.000000e+00 : f32
    %20 = vector.broadcast %cst_19 : f32 to vector<8x128xf32>
    %cst_20 = arith.constant 0.000000e+00 : f32
    %21 = vector.broadcast %cst_20 : f32 to vector<8x128xf32>
    %c0_21 = arith.constant 0 : index
    %c0_22 = arith.constant 0 : index
    %22 = vector.load %arg12[%c0_21, %c0_22] : memref<64x384xf32, #tpu.memory_space<vmem>>, vector<8x384xf32>
    %23 = arith.truncf %20 : vector<8x128xf32> to vector<8x128xbf16>
    %cst_23 = arith.constant dense<0.000000e+00> : vector<8x384xf32>
    %24 = tpu.matmul %23, %9, %cst_23 {dimension_numbers = #tpu.dot_dimension_numbers<[1], [0], [0], [1], [0, 0, 1, 1], [], []>} : vector<8x128xbf16>, vector<128x384xbf16>, vector<8x384xf32> -> vector<8x384xf32>
    %25 = vector.extract_strided_slice %22 {offsets = [0, 0], sizes = [8, 128], strides = [1, 1]} : vector<8x384xf32> to vector<8x128xf32>
    %26 = vector.extract_strided_slice %24 {offsets = [0, 0], sizes = [8, 128], strides = [1, 1]} : vector<8x384xf32> to vector<8x128xf32>
    %27 = arith.addf %25, %26 : vector<8x128xf32>
    %28 = arith.negf %27 : vector<8x128xf32>
    %29 = math.exp %28 : vector<8x128xf32>
    %cst_24 = arith.constant 1.000000e+00 : f32
    %30 = vector.broadcast %cst_24 : f32 to vector<8x128xf32>
    %31 = arith.addf %30, %29 : vector<8x128xf32>
    %32 = arith.divf %30, %31 : vector<8x128xf32>
    %33 = vector.extract_strided_slice %22 {offsets = [0, 128], sizes = [8, 128], strides = [1, 1]} : vector<8x384xf32> to vector<8x128xf32>
    %34 = vector.extract_strided_slice %24 {offsets = [0, 128], sizes = [8, 128], strides = [1, 1]} : vector<8x384xf32> to vector<8x128xf32>
    %35 = arith.addf %33, %34 : vector<8x128xf32>
    %36 = arith.negf %35 : vector<8x128xf32>
    %37 = math.exp %36 : vector<8x128xf32>
    %cst_25 = arith.constant 1.000000e+00 : f32
    %38 = vector.broadcast %cst_25 : f32 to vector<8x128xf32>
    %39 = arith.addf %38, %37 : vector<8x128xf32>
    %40 = arith.divf %38, %39 : vector<8x128xf32>
    %41 = vector.extract_strided_slice %22 {offsets = [0, 256], sizes = [8, 128], strides = [1, 1]} : vector<8x384xf32> to vector<8x128xf32>
    %42 = vector.extract_strided_slice %24 {offsets = [0, 256], sizes = [8, 128], strides = [1, 1]} : vector<8x384xf32> to vector<8x128xf32>
    %43 = arith.addf %42, %2 : vector<8x128xf32>
    %44 = arith.mulf %32, %43 : vector<8x128xf32>
    %45 = arith.addf %41, %44 : vector<8x128xf32>
    %46 = math.tanh %45 : vector<8x128xf32>
    %cst_26 = arith.constant 1.000000e+00 : f32
    %47 = vector.broadcast %cst_26 : f32 to vector<8x128xf32>
    %48 = arith.subf %47, %40 : vector<8x128xf32>
    %49 = arith.mulf %48, %46 : vector<8x128xf32>
    %50 = arith.mulf %40, %20 : vector<8x128xf32>
    %51 = arith.addf %49, %50 : vector<8x128xf32>
    %52 = arith.truncf %51 : vector<8x128xf32> to vector<8x128xbf16>
    %cst_27 = arith.constant dense<0.000000e+00> : vector<8x384xf32>
    %53 = tpu.matmul %52, %11, %cst_27 {dimension_numbers = #tpu.dot_dimension_numbers<[1], [0], [0], [1], [0, 0, 1, 1], [], []>} : vector<8x128xbf16>, vector<128x384xbf16>, vector<8x384xf32> -> vector<8x384xf32>
    %54 = arith.addf %53, %8 : vector<8x384xf32>
    %c8 = arith.constant 8 : index
    %c0_28 = arith.constant 0 : index
    %55 = vector.load %arg12[%c8, %c0_28] : memref<64x384xf32, #tpu.memory_space<vmem>>, vector<8x384xf32>
    %56 = arith.truncf %51 : vector<8x128xf32> to vector<8x128xbf16>
    %cst_29 = arith.constant dense<0.000000e+00> : vector<8x384xf32>
    %57 = tpu.matmul %56, %9, %cst_29 {dimension_numbers = #tpu.dot_dimension_numbers<[1], [0], [0], [1], [0, 0, 1, 1], [], []>} : vector<8x128xbf16>, vector<128x384xbf16>, vector<8x384xf32> -> vector<8x384xf32>
    %58 = vector.extract_strided_slice %55 {offsets = [0, 0], sizes = [8, 128], strides = [1, 1]} : vector<8x384xf32> to vector<8x128xf32>
    %59 = vector.extract_strided_slice %57 {offsets = [0, 0], sizes = [8, 128], strides = [1, 1]} : vector<8x384xf32> to vector<8x128xf32>
    %60 = arith.addf %58, %59 : vector<8x128xf32>
    %61 = arith.negf %60 : vector<8x128xf32>
    %62 = math.exp %61 : vector<8x128xf32>
    %cst_30 = arith.constant 1.000000e+00 : f32
    %63 = vector.broadcast %cst_30 : f32 to vector<8x128xf32>
    %64 = arith.addf %63, %62 : vector<8x128xf32>
    %65 = arith.divf %63, %64 : vector<8x128xf32>
    %66 = vector.extract_strided_slice %55 {offsets = [0, 128], sizes = [8, 128], strides = [1, 1]} : vector<8x384xf32> to vector<8x128xf32>
    %67 = vector.extract_strided_slice %57 {offsets = [0, 128], sizes = [8, 128], strides = [1, 1]} : vector<8x384xf32> to vector<8x128xf32>
    %68 = arith.addf %66, %67 : vector<8x128xf32>
    %69 = arith.negf %68 : vector<8x128xf32>
    %70 = math.exp %69 : vector<8x128xf32>
    %cst_31 = arith.constant 1.000000e+00 : f32
    %71 = vector.broadcast %cst_31 : f32 to vector<8x128xf32>
    %72 = arith.addf %71, %70 : vector<8x128xf32>
    %73 = arith.divf %71, %72 : vector<8x128xf32>
    %74 = vector.extract_strided_slice %55 {offsets = [0, 256], sizes = [8, 128], strides = [1, 1]} : vector<8x384xf32> to vector<8x128xf32>
    %75 = vector.extract_strided_slice %57 {offsets = [0, 256], sizes = [8, 128], strides = [1, 1]} : vector<8x384xf32> to vector<8x128xf32>
    %76 = arith.addf %75, %2 : vector<8x128xf32>
    %77 = arith.mulf %65, %76 : vector<8x128xf32>
    %78 = arith.addf %74, %77 : vector<8x128xf32>
    %79 = math.tanh %78 : vector<8x128xf32>
    %cst_32 = arith.constant 1.000000e+00 : f32
    %80 = vector.broadcast %cst_32 : f32 to vector<8x128xf32>
    %81 = arith.subf %80, %73 : vector<8x128xf32>
    %82 = arith.mulf %81, %79 : vector<8x128xf32>
    %83 = arith.mulf %73, %51 : vector<8x128xf32>
    %84 = arith.addf %82, %83 : vector<8x128xf32>
    %85 = arith.truncf %21 : vector<8x128xf32> to vector<8x128xbf16>
    %cst_33 = arith.constant dense<0.000000e+00> : vector<8x384xf32>
    %86 = tpu.matmul %85, %10, %cst_33 {dimension_numbers = #tpu.dot_dimension_numbers<[1], [0], [0], [1], [0, 0, 1, 1], [], []>} : vector<8x128xbf16>, vector<128x384xbf16>, vector<8x384xf32> -> vector<8x384xf32>
    %87 = vector.extract_strided_slice %54 {offsets = [0, 0], sizes = [8, 128], strides = [1, 1]} : vector<8x384xf32> to vector<8x128xf32>
    %88 = vector.extract_strided_slice %86 {offsets = [0, 0], sizes = [8, 128], strides = [1, 1]} : vector<8x384xf32> to vector<8x128xf32>
    %89 = arith.addf %87, %88 : vector<8x128xf32>
    %90 = arith.negf %89 : vector<8x128xf32>
    %91 = math.exp %90 : vector<8x128xf32>
    %cst_34 = arith.constant 1.000000e+00 : f32
    %92 = vector.broadcast %cst_34 : f32 to vector<8x128xf32>
    %93 = arith.addf %92, %91 : vector<8x128xf32>
    %94 = arith.divf %92, %93 : vector<8x128xf32>
    %95 = vector.extract_strided_slice %54 {offsets = [0, 128], sizes = [8, 128], strides = [1, 1]} : vector<8x384xf32> to vector<8x128xf32>
    %96 = vector.extract_strided_slice %86 {offsets = [0, 128], sizes = [8, 128], strides = [1, 1]} : vector<8x384xf32> to vector<8x128xf32>
    %97 = arith.addf %95, %96 : vector<8x128xf32>
    %98 = arith.negf %97 : vector<8x128xf32>
    %99 = math.exp %98 : vector<8x128xf32>
    %cst_35 = arith.constant 1.000000e+00 : f32
    %100 = vector.broadcast %cst_35 : f32 to vector<8x128xf32>
    %101 = arith.addf %100, %99 : vector<8x128xf32>
    %102 = arith.divf %100, %101 : vector<8x128xf32>
    %103 = vector.extract_strided_slice %54 {offsets = [0, 256], sizes = [8, 128], strides = [1, 1]} : vector<8x384xf32> to vector<8x128xf32>
    %104 = vector.extract_strided_slice %86 {offsets = [0, 256], sizes = [8, 128], strides = [1, 1]} : vector<8x384xf32> to vector<8x128xf32>
    %105 = arith.addf %104, %5 : vector<8x128xf32>
    %106 = arith.mulf %94, %105 : vector<8x128xf32>
    %107 = arith.addf %103, %106 : vector<8x128xf32>
    %108 = math.tanh %107 : vector<8x128xf32>
    %cst_36 = arith.constant 1.000000e+00 : f32
    %109 = vector.broadcast %cst_36 : f32 to vector<8x128xf32>
    %110 = arith.subf %109, %102 : vector<8x128xf32>
    %111 = arith.mulf %110, %108 : vector<8x128xf32>
    %112 = arith.mulf %102, %21 : vector<8x128xf32>
    %113 = arith.addf %111, %112 : vector<8x128xf32>
    %114 = arith.truncf %84 : vector<8x128xf32> to vector<8x128xbf16>
    %cst_37 = arith.constant dense<0.000000e+00> : vector<8x384xf32>
    %115 = tpu.matmul %114, %11, %cst_37 {dimension_numbers = #tpu.dot_dimension_numbers<[1], [0], [0], [1], [0, 0, 1, 1], [], []>} : vector<8x128xbf16>, vector<128x384xbf16>, vector<8x384xf32> -> vector<8x384xf32>
    %116 = arith.addf %115, %8 : vector<8x384xf32>
    %c16 = arith.constant 16 : index
    %c0_38 = arith.constant 0 : index
    %117 = vector.load %arg12[%c16, %c0_38] : memref<64x384xf32, #tpu.memory_space<vmem>>, vector<8x384xf32>
    %118 = arith.truncf %84 : vector<8x128xf32> to vector<8x128xbf16>
    %cst_39 = arith.constant dense<0.000000e+00> : vector<8x384xf32>
    %119 = tpu.matmul %118, %9, %cst_39 {dimension_numbers = #tpu.dot_dimension_numbers<[1], [0], [0], [1], [0, 0, 1, 1], [], []>} : vector<8x128xbf16>, vector<128x384xbf16>, vector<8x384xf32> -> vector<8x384xf32>
    %120 = vector.extract_strided_slice %117 {offsets = [0, 0], sizes = [8, 128], strides = [1, 1]} : vector<8x384xf32> to vector<8x128xf32>
    %121 = vector.extract_strided_slice %119 {offsets = [0, 0], sizes = [8, 128], strides = [1, 1]} : vector<8x384xf32> to vector<8x128xf32>
    %122 = arith.addf %120, %121 : vector<8x128xf32>
    %123 = arith.negf %122 : vector<8x128xf32>
    %124 = math.exp %123 : vector<8x128xf32>
    %cst_40 = arith.constant 1.000000e+00 : f32
    %125 = vector.broadcast %cst_40 : f32 to vector<8x128xf32>
    %126 = arith.addf %125, %124 : vector<8x128xf32>
    %127 = arith.divf %125, %126 : vector<8x128xf32>
    %128 = vector.extract_strided_slice %117 {offsets = [0, 128], sizes = [8, 128], strides = [1, 1]} : vector<8x384xf32> to vector<8x128xf32>
    %129 = vector.extract_strided_slice %119 {offsets = [0, 128], sizes = [8, 128], strides = [1, 1]} : vector<8x384xf32> to vector<8x128xf32>
    %130 = arith.addf %128, %129 : vector<8x128xf32>
    %131 = arith.negf %130 : vector<8x128xf32>
    %132 = math.exp %131 : vector<8x128xf32>
    %cst_41 = arith.constant 1.000000e+00 : f32
    %133 = vector.broadcast %cst_41 : f32 to vector<8x128xf32>
    %134 = arith.addf %133, %132 : vector<8x128xf32>
    %135 = arith.divf %133, %134 : vector<8x128xf32>
    %136 = vector.extract_strided_slice %117 {offsets = [0, 256], sizes = [8, 128], strides = [1, 1]} : vector<8x384xf32> to vector<8x128xf32>
    %137 = vector.extract_strided_slice %119 {offsets = [0, 256], sizes = [8, 128], strides = [1, 1]} : vector<8x384xf32> to vector<8x128xf32>
    %138 = arith.addf %137, %2 : vector<8x128xf32>
    %139 = arith.mulf %127, %138 : vector<8x128xf32>
    %140 = arith.addf %136, %139 : vector<8x128xf32>
    %141 = math.tanh %140 : vector<8x128xf32>
    %cst_42 = arith.constant 1.000000e+00 : f32
    %142 = vector.broadcast %cst_42 : f32 to vector<8x128xf32>
    %143 = arith.subf %142, %135 : vector<8x128xf32>
    %144 = arith.mulf %143, %141 : vector<8x128xf32>
    %145 = arith.mulf %135, %84 : vector<8x128xf32>
    %146 = arith.addf %144, %145 : vector<8x128xf32>
    %147 = arith.truncf %113 : vector<8x128xf32> to vector<8x128xbf16>
    %cst_43 = arith.constant dense<0.000000e+00> : vector<8x384xf32>
    %148 = tpu.matmul %147, %10, %cst_43 {dimension_numbers = #tpu.dot_dimension_numbers<[1], [0], [0], [1], [0, 0, 1, 1], [], []>} : vector<8x128xbf16>, vector<128x384xbf16>, vector<8x384xf32> -> vector<8x384xf32>
    %149 = vector.extract_strided_slice %116 {offsets = [0, 0], sizes = [8, 128], strides = [1, 1]} : vector<8x384xf32> to vector<8x128xf32>
    %150 = vector.extract_strided_slice %148 {offsets = [0, 0], sizes = [8, 128], strides = [1, 1]} : vector<8x384xf32> to vector<8x128xf32>
    %151 = arith.addf %149, %150 : vector<8x128xf32>
    %152 = arith.negf %151 : vector<8x128xf32>
    %153 = math.exp %152 : vector<8x128xf32>
    %cst_44 = arith.constant 1.000000e+00 : f32
    %154 = vector.broadcast %cst_44 : f32 to vector<8x128xf32>
    %155 = arith.addf %154, %153 : vector<8x128xf32>
    %156 = arith.divf %154, %155 : vector<8x128xf32>
    %157 = vector.extract_strided_slice %116 {offsets = [0, 128], sizes = [8, 128], strides = [1, 1]} : vector<8x384xf32> to vector<8x128xf32>
    %158 = vector.extract_strided_slice %148 {offsets = [0, 128], sizes = [8, 128], strides = [1, 1]} : vector<8x384xf32> to vector<8x128xf32>
    %159 = arith.addf %157, %158 : vector<8x128xf32>
    %160 = arith.negf %159 : vector<8x128xf32>
    %161 = math.exp %160 : vector<8x128xf32>
    %cst_45 = arith.constant 1.000000e+00 : f32
    %162 = vector.broadcast %cst_45 : f32 to vector<8x128xf32>
    %163 = arith.addf %162, %161 : vector<8x128xf32>
    %164 = arith.divf %162, %163 : vector<8x128xf32>
    %165 = vector.extract_strided_slice %116 {offsets = [0, 256], sizes = [8, 128], strides = [1, 1]} : vector<8x384xf32> to vector<8x128xf32>
    %166 = vector.extract_strided_slice %148 {offsets = [0, 256], sizes = [8, 128], strides = [1, 1]} : vector<8x384xf32> to vector<8x128xf32>
    %167 = arith.addf %166, %5 : vector<8x128xf32>
    %168 = arith.mulf %156, %167 : vector<8x128xf32>
    %169 = arith.addf %165, %168 : vector<8x128xf32>
    %170 = math.tanh %169 : vector<8x128xf32>
    %cst_46 = arith.constant 1.000000e+00 : f32
    %171 = vector.broadcast %cst_46 : f32 to vector<8x128xf32>
    %172 = arith.subf %171, %164 : vector<8x128xf32>
    %173 = arith.mulf %172, %170 : vector<8x128xf32>
    %174 = arith.mulf %164, %113 : vector<8x128xf32>
    %175 = arith.addf %173, %174 : vector<8x128xf32>
    %176 = arith.truncf %146 : vector<8x128xf32> to vector<8x128xbf16>
    %cst_47 = arith.constant dense<0.000000e+00> : vector<8x384xf32>
    %177 = tpu.matmul %176, %11, %cst_47 {dimension_numbers = #tpu.dot_dimension_numbers<[1], [0], [0], [1], [0, 0, 1, 1], [], []>} : vector<8x128xbf16>, vector<128x384xbf16>, vector<8x384xf32> -> vector<8x384xf32>
    %178 = arith.addf %177, %8 : vector<8x384xf32>
    %c24 = arith.constant 24 : index
    %c0_48 = arith.constant 0 : index
    %179 = vector.load %arg12[%c24, %c0_48] : memref<64x384xf32, #tpu.memory_space<vmem>>, vector<8x384xf32>
    %180 = arith.truncf %146 : vector<8x128xf32> to vector<8x128xbf16>
    %cst_49 = arith.constant dense<0.000000e+00> : vector<8x384xf32>
    %181 = tpu.matmul %180, %9, %cst_49 {dimension_numbers = #tpu.dot_dimension_numbers<[1], [0], [0], [1], [0, 0, 1, 1], [], []>} : vector<8x128xbf16>, vector<128x384xbf16>, vector<8x384xf32> -> vector<8x384xf32>
    %182 = vector.extract_strided_slice %179 {offsets = [0, 0], sizes = [8, 128], strides = [1, 1]} : vector<8x384xf32> to vector<8x128xf32>
    %183 = vector.extract_strided_slice %181 {offsets = [0, 0], sizes = [8, 128], strides = [1, 1]} : vector<8x384xf32> to vector<8x128xf32>
    %184 = arith.addf %182, %183 : vector<8x128xf32>
    %185 = arith.negf %184 : vector<8x128xf32>
    %186 = math.exp %185 : vector<8x128xf32>
    %cst_50 = arith.constant 1.000000e+00 : f32
    %187 = vector.broadcast %cst_50 : f32 to vector<8x128xf32>
    %188 = arith.addf %187, %186 : vector<8x128xf32>
    %189 = arith.divf %187, %188 : vector<8x128xf32>
    %190 = vector.extract_strided_slice %179 {offsets = [0, 128], sizes = [8, 128], strides = [1, 1]} : vector<8x384xf32> to vector<8x128xf32>
    %191 = vector.extract_strided_slice %181 {offsets = [0, 128], sizes = [8, 128], strides = [1, 1]} : vector<8x384xf32> to vector<8x128xf32>
    %192 = arith.addf %190, %191 : vector<8x128xf32>
    %193 = arith.negf %192 : vector<8x128xf32>
    %194 = math.exp %193 : vector<8x128xf32>
    %cst_51 = arith.constant 1.000000e+00 : f32
    %195 = vector.broadcast %cst_51 : f32 to vector<8x128xf32>
    %196 = arith.addf %195, %194 : vector<8x128xf32>
    %197 = arith.divf %195, %196 : vector<8x128xf32>
    %198 = vector.extract_strided_slice %179 {offsets = [0, 256], sizes = [8, 128], strides = [1, 1]} : vector<8x384xf32> to vector<8x128xf32>
    %199 = vector.extract_strided_slice %181 {offsets = [0, 256], sizes = [8, 128], strides = [1, 1]} : vector<8x384xf32> to vector<8x128xf32>
    %200 = arith.addf %199, %2 : vector<8x128xf32>
    %201 = arith.mulf %189, %200 : vector<8x128xf32>
    %202 = arith.addf %198, %201 : vector<8x128xf32>
    %203 = math.tanh %202 : vector<8x128xf32>
    %cst_52 = arith.constant 1.000000e+00 : f32
    %204 = vector.broadcast %cst_52 : f32 to vector<8x128xf32>
    %205 = arith.subf %204, %197 : vector<8x128xf32>
    %206 = arith.mulf %205, %203 : vector<8x128xf32>
    %207 = arith.mulf %197, %146 : vector<8x128xf32>
    %208 = arith.addf %206, %207 : vector<8x128xf32>
    %209 = arith.truncf %175 : vector<8x128xf32> to vector<8x128xbf16>
    %cst_53 = arith.constant dense<0.000000e+00> : vector<8x384xf32>
    %210 = tpu.matmul %209, %10, %cst_53 {dimension_numbers = #tpu.dot_dimension_numbers<[1], [0], [0], [1], [0, 0, 1, 1], [], []>} : vector<8x128xbf16>, vector<128x384xbf16>, vector<8x384xf32> -> vector<8x384xf32>
    %211 = vector.extract_strided_slice %178 {offsets = [0, 0], sizes = [8, 128], strides = [1, 1]} : vector<8x384xf32> to vector<8x128xf32>
    %212 = vector.extract_strided_slice %210 {offsets = [0, 0], sizes = [8, 128], strides = [1, 1]} : vector<8x384xf32> to vector<8x128xf32>
    %213 = arith.addf %211, %212 : vector<8x128xf32>
    %214 = arith.negf %213 : vector<8x128xf32>
    %215 = math.exp %214 : vector<8x128xf32>
    %cst_54 = arith.constant 1.000000e+00 : f32
    %216 = vector.broadcast %cst_54 : f32 to vector<8x128xf32>
    %217 = arith.addf %216, %215 : vector<8x128xf32>
    %218 = arith.divf %216, %217 : vector<8x128xf32>
    %219 = vector.extract_strided_slice %178 {offsets = [0, 128], sizes = [8, 128], strides = [1, 1]} : vector<8x384xf32> to vector<8x128xf32>
    %220 = vector.extract_strided_slice %210 {offsets = [0, 128], sizes = [8, 128], strides = [1, 1]} : vector<8x384xf32> to vector<8x128xf32>
    %221 = arith.addf %219, %220 : vector<8x128xf32>
    %222 = arith.negf %221 : vector<8x128xf32>
    %223 = math.exp %222 : vector<8x128xf32>
    %cst_55 = arith.constant 1.000000e+00 : f32
    %224 = vector.broadcast %cst_55 : f32 to vector<8x128xf32>
    %225 = arith.addf %224, %223 : vector<8x128xf32>
    %226 = arith.divf %224, %225 : vector<8x128xf32>
    %227 = vector.extract_strided_slice %178 {offsets = [0, 256], sizes = [8, 128], strides = [1, 1]} : vector<8x384xf32> to vector<8x128xf32>
    %228 = vector.extract_strided_slice %210 {offsets = [0, 256], sizes = [8, 128], strides = [1, 1]} : vector<8x384xf32> to vector<8x128xf32>
    %229 = arith.addf %228, %5 : vector<8x128xf32>
    %230 = arith.mulf %218, %229 : vector<8x128xf32>
    %231 = arith.addf %227, %230 : vector<8x128xf32>
    %232 = math.tanh %231 : vector<8x128xf32>
    %cst_56 = arith.constant 1.000000e+00 : f32
    %233 = vector.broadcast %cst_56 : f32 to vector<8x128xf32>
    %234 = arith.subf %233, %226 : vector<8x128xf32>
    %235 = arith.mulf %234, %232 : vector<8x128xf32>
    %236 = arith.mulf %226, %175 : vector<8x128xf32>
    %237 = arith.addf %235, %236 : vector<8x128xf32>
    %238 = arith.truncf %208 : vector<8x128xf32> to vector<8x128xbf16>
    %cst_57 = arith.constant dense<0.000000e+00> : vector<8x384xf32>
    %239 = tpu.matmul %238, %11, %cst_57 {dimension_numbers = #tpu.dot_dimension_numbers<[1], [0], [0], [1], [0, 0, 1, 1], [], []>} : vector<8x128xbf16>, vector<128x384xbf16>, vector<8x384xf32> -> vector<8x384xf32>
    %240 = arith.addf %239, %8 : vector<8x384xf32>
    %c32 = arith.constant 32 : index
    %c0_58 = arith.constant 0 : index
    %241 = vector.load %arg12[%c32, %c0_58] : memref<64x384xf32, #tpu.memory_space<vmem>>, vector<8x384xf32>
    %242 = arith.truncf %208 : vector<8x128xf32> to vector<8x128xbf16>
    %cst_59 = arith.constant dense<0.000000e+00> : vector<8x384xf32>
    %243 = tpu.matmul %242, %9, %cst_59 {dimension_numbers = #tpu.dot_dimension_numbers<[1], [0], [0], [1], [0, 0, 1, 1], [], []>} : vector<8x128xbf16>, vector<128x384xbf16>, vector<8x384xf32> -> vector<8x384xf32>
    %244 = vector.extract_strided_slice %241 {offsets = [0, 0], sizes = [8, 128], strides = [1, 1]} : vector<8x384xf32> to vector<8x128xf32>
    %245 = vector.extract_strided_slice %243 {offsets = [0, 0], sizes = [8, 128], strides = [1, 1]} : vector<8x384xf32> to vector<8x128xf32>
    %246 = arith.addf %244, %245 : vector<8x128xf32>
    %247 = arith.negf %246 : vector<8x128xf32>
    %248 = math.exp %247 : vector<8x128xf32>
    %cst_60 = arith.constant 1.000000e+00 : f32
    %249 = vector.broadcast %cst_60 : f32 to vector<8x128xf32>
    %250 = arith.addf %249, %248 : vector<8x128xf32>
    %251 = arith.divf %249, %250 : vector<8x128xf32>
    %252 = vector.extract_strided_slice %241 {offsets = [0, 128], sizes = [8, 128], strides = [1, 1]} : vector<8x384xf32> to vector<8x128xf32>
    %253 = vector.extract_strided_slice %243 {offsets = [0, 128], sizes = [8, 128], strides = [1, 1]} : vector<8x384xf32> to vector<8x128xf32>
    %254 = arith.addf %252, %253 : vector<8x128xf32>
    %255 = arith.negf %254 : vector<8x128xf32>
    %256 = math.exp %255 : vector<8x128xf32>
    %cst_61 = arith.constant 1.000000e+00 : f32
    %257 = vector.broadcast %cst_61 : f32 to vector<8x128xf32>
    %258 = arith.addf %257, %256 : vector<8x128xf32>
    %259 = arith.divf %257, %258 : vector<8x128xf32>
    %260 = vector.extract_strided_slice %241 {offsets = [0, 256], sizes = [8, 128], strides = [1, 1]} : vector<8x384xf32> to vector<8x128xf32>
    %261 = vector.extract_strided_slice %243 {offsets = [0, 256], sizes = [8, 128], strides = [1, 1]} : vector<8x384xf32> to vector<8x128xf32>
    %262 = arith.addf %261, %2 : vector<8x128xf32>
    %263 = arith.mulf %251, %262 : vector<8x128xf32>
    %264 = arith.addf %260, %263 : vector<8x128xf32>
    %265 = math.tanh %264 : vector<8x128xf32>
    %cst_62 = arith.constant 1.000000e+00 : f32
    %266 = vector.broadcast %cst_62 : f32 to vector<8x128xf32>
    %267 = arith.subf %266, %259 : vector<8x128xf32>
    %268 = arith.mulf %267, %265 : vector<8x128xf32>
    %269 = arith.mulf %259, %208 : vector<8x128xf32>
    %270 = arith.addf %268, %269 : vector<8x128xf32>
    %271 = arith.truncf %237 : vector<8x128xf32> to vector<8x128xbf16>
    %cst_63 = arith.constant dense<0.000000e+00> : vector<8x384xf32>
    %272 = tpu.matmul %271, %10, %cst_63 {dimension_numbers = #tpu.dot_dimension_numbers<[1], [0], [0], [1], [0, 0, 1, 1], [], []>} : vector<8x128xbf16>, vector<128x384xbf16>, vector<8x384xf32> -> vector<8x384xf32>
    %273 = vector.extract_strided_slice %240 {offsets = [0, 0], sizes = [8, 128], strides = [1, 1]} : vector<8x384xf32> to vector<8x128xf32>
    %274 = vector.extract_strided_slice %272 {offsets = [0, 0], sizes = [8, 128], strides = [1, 1]} : vector<8x384xf32> to vector<8x128xf32>
    %275 = arith.addf %273, %274 : vector<8x128xf32>
    %276 = arith.negf %275 : vector<8x128xf32>
    %277 = math.exp %276 : vector<8x128xf32>
    %cst_64 = arith.constant 1.000000e+00 : f32
    %278 = vector.broadcast %cst_64 : f32 to vector<8x128xf32>
    %279 = arith.addf %278, %277 : vector<8x128xf32>
    %280 = arith.divf %278, %279 : vector<8x128xf32>
    %281 = vector.extract_strided_slice %240 {offsets = [0, 128], sizes = [8, 128], strides = [1, 1]} : vector<8x384xf32> to vector<8x128xf32>
    %282 = vector.extract_strided_slice %272 {offsets = [0, 128], sizes = [8, 128], strides = [1, 1]} : vector<8x384xf32> to vector<8x128xf32>
    %283 = arith.addf %281, %282 : vector<8x128xf32>
    %284 = arith.negf %283 : vector<8x128xf32>
    %285 = math.exp %284 : vector<8x128xf32>
    %cst_65 = arith.constant 1.000000e+00 : f32
    %286 = vector.broadcast %cst_65 : f32 to vector<8x128xf32>
    %287 = arith.addf %286, %285 : vector<8x128xf32>
    %288 = arith.divf %286, %287 : vector<8x128xf32>
    %289 = vector.extract_strided_slice %240 {offsets = [0, 256], sizes = [8, 128], strides = [1, 1]} : vector<8x384xf32> to vector<8x128xf32>
    %290 = vector.extract_strided_slice %272 {offsets = [0, 256], sizes = [8, 128], strides = [1, 1]} : vector<8x384xf32> to vector<8x128xf32>
    %291 = arith.addf %290, %5 : vector<8x128xf32>
    %292 = arith.mulf %280, %291 : vector<8x128xf32>
    %293 = arith.addf %289, %292 : vector<8x128xf32>
    %294 = math.tanh %293 : vector<8x128xf32>
    %cst_66 = arith.constant 1.000000e+00 : f32
    %295 = vector.broadcast %cst_66 : f32 to vector<8x128xf32>
    %296 = arith.subf %295, %288 : vector<8x128xf32>
    %297 = arith.mulf %296, %294 : vector<8x128xf32>
    %298 = arith.mulf %288, %237 : vector<8x128xf32>
    %299 = arith.addf %297, %298 : vector<8x128xf32>
    %300 = arith.truncf %270 : vector<8x128xf32> to vector<8x128xbf16>
    %cst_67 = arith.constant dense<0.000000e+00> : vector<8x384xf32>
    %301 = tpu.matmul %300, %11, %cst_67 {dimension_numbers = #tpu.dot_dimension_numbers<[1], [0], [0], [1], [0, 0, 1, 1], [], []>} : vector<8x128xbf16>, vector<128x384xbf16>, vector<8x384xf32> -> vector<8x384xf32>
    %302 = arith.addf %301, %8 : vector<8x384xf32>
    %c40 = arith.constant 40 : index
    %c0_68 = arith.constant 0 : index
    %303 = vector.load %arg12[%c40, %c0_68] : memref<64x384xf32, #tpu.memory_space<vmem>>, vector<8x384xf32>
    %304 = arith.truncf %270 : vector<8x128xf32> to vector<8x128xbf16>
    %cst_69 = arith.constant dense<0.000000e+00> : vector<8x384xf32>
    %305 = tpu.matmul %304, %9, %cst_69 {dimension_numbers = #tpu.dot_dimension_numbers<[1], [0], [0], [1], [0, 0, 1, 1], [], []>} : vector<8x128xbf16>, vector<128x384xbf16>, vector<8x384xf32> -> vector<8x384xf32>
    %306 = vector.extract_strided_slice %303 {offsets = [0, 0], sizes = [8, 128], strides = [1, 1]} : vector<8x384xf32> to vector<8x128xf32>
    %307 = vector.extract_strided_slice %305 {offsets = [0, 0], sizes = [8, 128], strides = [1, 1]} : vector<8x384xf32> to vector<8x128xf32>
    %308 = arith.addf %306, %307 : vector<8x128xf32>
    %309 = arith.negf %308 : vector<8x128xf32>
    %310 = math.exp %309 : vector<8x128xf32>
    %cst_70 = arith.constant 1.000000e+00 : f32
    %311 = vector.broadcast %cst_70 : f32 to vector<8x128xf32>
    %312 = arith.addf %311, %310 : vector<8x128xf32>
    %313 = arith.divf %311, %312 : vector<8x128xf32>
    %314 = vector.extract_strided_slice %303 {offsets = [0, 128], sizes = [8, 128], strides = [1, 1]} : vector<8x384xf32> to vector<8x128xf32>
    %315 = vector.extract_strided_slice %305 {offsets = [0, 128], sizes = [8, 128], strides = [1, 1]} : vector<8x384xf32> to vector<8x128xf32>
    %316 = arith.addf %314, %315 : vector<8x128xf32>
    %317 = arith.negf %316 : vector<8x128xf32>
    %318 = math.exp %317 : vector<8x128xf32>
    %cst_71 = arith.constant 1.000000e+00 : f32
    %319 = vector.broadcast %cst_71 : f32 to vector<8x128xf32>
    %320 = arith.addf %319, %318 : vector<8x128xf32>
    %321 = arith.divf %319, %320 : vector<8x128xf32>
    %322 = vector.extract_strided_slice %303 {offsets = [0, 256], sizes = [8, 128], strides = [1, 1]} : vector<8x384xf32> to vector<8x128xf32>
    %323 = vector.extract_strided_slice %305 {offsets = [0, 256], sizes = [8, 128], strides = [1, 1]} : vector<8x384xf32> to vector<8x128xf32>
    %324 = arith.addf %323, %2 : vector<8x128xf32>
    %325 = arith.mulf %313, %324 : vector<8x128xf32>
    %326 = arith.addf %322, %325 : vector<8x128xf32>
    %327 = math.tanh %326 : vector<8x128xf32>
    %cst_72 = arith.constant 1.000000e+00 : f32
    %328 = vector.broadcast %cst_72 : f32 to vector<8x128xf32>
    %329 = arith.subf %328, %321 : vector<8x128xf32>
    %330 = arith.mulf %329, %327 : vector<8x128xf32>
    %331 = arith.mulf %321, %270 : vector<8x128xf32>
    %332 = arith.addf %330, %331 : vector<8x128xf32>
    %333 = arith.truncf %299 : vector<8x128xf32> to vector<8x128xbf16>
    %cst_73 = arith.constant dense<0.000000e+00> : vector<8x384xf32>
    %334 = tpu.matmul %333, %10, %cst_73 {dimension_numbers = #tpu.dot_dimension_numbers<[1], [0], [0], [1], [0, 0, 1, 1], [], []>} : vector<8x128xbf16>, vector<128x384xbf16>, vector<8x384xf32> -> vector<8x384xf32>
    %335 = vector.extract_strided_slice %302 {offsets = [0, 0], sizes = [8, 128], strides = [1, 1]} : vector<8x384xf32> to vector<8x128xf32>
    %336 = vector.extract_strided_slice %334 {offsets = [0, 0], sizes = [8, 128], strides = [1, 1]} : vector<8x384xf32> to vector<8x128xf32>
    %337 = arith.addf %335, %336 : vector<8x128xf32>
    %338 = arith.negf %337 : vector<8x128xf32>
    %339 = math.exp %338 : vector<8x128xf32>
    %cst_74 = arith.constant 1.000000e+00 : f32
    %340 = vector.broadcast %cst_74 : f32 to vector<8x128xf32>
    %341 = arith.addf %340, %339 : vector<8x128xf32>
    %342 = arith.divf %340, %341 : vector<8x128xf32>
    %343 = vector.extract_strided_slice %302 {offsets = [0, 128], sizes = [8, 128], strides = [1, 1]} : vector<8x384xf32> to vector<8x128xf32>
    %344 = vector.extract_strided_slice %334 {offsets = [0, 128], sizes = [8, 128], strides = [1, 1]} : vector<8x384xf32> to vector<8x128xf32>
    %345 = arith.addf %343, %344 : vector<8x128xf32>
    %346 = arith.negf %345 : vector<8x128xf32>
    %347 = math.exp %346 : vector<8x128xf32>
    %cst_75 = arith.constant 1.000000e+00 : f32
    %348 = vector.broadcast %cst_75 : f32 to vector<8x128xf32>
    %349 = arith.addf %348, %347 : vector<8x128xf32>
    %350 = arith.divf %348, %349 : vector<8x128xf32>
    %351 = vector.extract_strided_slice %302 {offsets = [0, 256], sizes = [8, 128], strides = [1, 1]} : vector<8x384xf32> to vector<8x128xf32>
    %352 = vector.extract_strided_slice %334 {offsets = [0, 256], sizes = [8, 128], strides = [1, 1]} : vector<8x384xf32> to vector<8x128xf32>
    %353 = arith.addf %352, %5 : vector<8x128xf32>
    %354 = arith.mulf %342, %353 : vector<8x128xf32>
    %355 = arith.addf %351, %354 : vector<8x128xf32>
    %356 = math.tanh %355 : vector<8x128xf32>
    %cst_76 = arith.constant 1.000000e+00 : f32
    %357 = vector.broadcast %cst_76 : f32 to vector<8x128xf32>
    %358 = arith.subf %357, %350 : vector<8x128xf32>
    %359 = arith.mulf %358, %356 : vector<8x128xf32>
    %360 = arith.mulf %350, %299 : vector<8x128xf32>
    %361 = arith.addf %359, %360 : vector<8x128xf32>
    %362 = arith.truncf %332 : vector<8x128xf32> to vector<8x128xbf16>
    %cst_77 = arith.constant dense<0.000000e+00> : vector<8x384xf32>
    %363 = tpu.matmul %362, %11, %cst_77 {dimension_numbers = #tpu.dot_dimension_numbers<[1], [0], [0], [1], [0, 0, 1, 1], [], []>} : vector<8x128xbf16>, vector<128x384xbf16>, vector<8x384xf32> -> vector<8x384xf32>
    %364 = arith.addf %363, %8 : vector<8x384xf32>
    %c48 = arith.constant 48 : index
    %c0_78 = arith.constant 0 : index
    %365 = vector.load %arg12[%c48, %c0_78] : memref<64x384xf32, #tpu.memory_space<vmem>>, vector<8x384xf32>
    %366 = arith.truncf %332 : vector<8x128xf32> to vector<8x128xbf16>
    %cst_79 = arith.constant dense<0.000000e+00> : vector<8x384xf32>
    %367 = tpu.matmul %366, %9, %cst_79 {dimension_numbers = #tpu.dot_dimension_numbers<[1], [0], [0], [1], [0, 0, 1, 1], [], []>} : vector<8x128xbf16>, vector<128x384xbf16>, vector<8x384xf32> -> vector<8x384xf32>
    %368 = vector.extract_strided_slice %365 {offsets = [0, 0], sizes = [8, 128], strides = [1, 1]} : vector<8x384xf32> to vector<8x128xf32>
    %369 = vector.extract_strided_slice %367 {offsets = [0, 0], sizes = [8, 128], strides = [1, 1]} : vector<8x384xf32> to vector<8x128xf32>
    %370 = arith.addf %368, %369 : vector<8x128xf32>
    %371 = arith.negf %370 : vector<8x128xf32>
    %372 = math.exp %371 : vector<8x128xf32>
    %cst_80 = arith.constant 1.000000e+00 : f32
    %373 = vector.broadcast %cst_80 : f32 to vector<8x128xf32>
    %374 = arith.addf %373, %372 : vector<8x128xf32>
    %375 = arith.divf %373, %374 : vector<8x128xf32>
    %376 = vector.extract_strided_slice %365 {offsets = [0, 128], sizes = [8, 128], strides = [1, 1]} : vector<8x384xf32> to vector<8x128xf32>
    %377 = vector.extract_strided_slice %367 {offsets = [0, 128], sizes = [8, 128], strides = [1, 1]} : vector<8x384xf32> to vector<8x128xf32>
    %378 = arith.addf %376, %377 : vector<8x128xf32>
    %379 = arith.negf %378 : vector<8x128xf32>
    %380 = math.exp %379 : vector<8x128xf32>
    %cst_81 = arith.constant 1.000000e+00 : f32
    %381 = vector.broadcast %cst_81 : f32 to vector<8x128xf32>
    %382 = arith.addf %381, %380 : vector<8x128xf32>
    %383 = arith.divf %381, %382 : vector<8x128xf32>
    %384 = vector.extract_strided_slice %365 {offsets = [0, 256], sizes = [8, 128], strides = [1, 1]} : vector<8x384xf32> to vector<8x128xf32>
    %385 = vector.extract_strided_slice %367 {offsets = [0, 256], sizes = [8, 128], strides = [1, 1]} : vector<8x384xf32> to vector<8x128xf32>
    %386 = arith.addf %385, %2 : vector<8x128xf32>
    %387 = arith.mulf %375, %386 : vector<8x128xf32>
    %388 = arith.addf %384, %387 : vector<8x128xf32>
    %389 = math.tanh %388 : vector<8x128xf32>
    %cst_82 = arith.constant 1.000000e+00 : f32
    %390 = vector.broadcast %cst_82 : f32 to vector<8x128xf32>
    %391 = arith.subf %390, %383 : vector<8x128xf32>
    %392 = arith.mulf %391, %389 : vector<8x128xf32>
    %393 = arith.mulf %383, %332 : vector<8x128xf32>
    %394 = arith.addf %392, %393 : vector<8x128xf32>
    %395 = arith.truncf %361 : vector<8x128xf32> to vector<8x128xbf16>
    %cst_83 = arith.constant dense<0.000000e+00> : vector<8x384xf32>
    %396 = tpu.matmul %395, %10, %cst_83 {dimension_numbers = #tpu.dot_dimension_numbers<[1], [0], [0], [1], [0, 0, 1, 1], [], []>} : vector<8x128xbf16>, vector<128x384xbf16>, vector<8x384xf32> -> vector<8x384xf32>
    %397 = vector.extract_strided_slice %364 {offsets = [0, 0], sizes = [8, 128], strides = [1, 1]} : vector<8x384xf32> to vector<8x128xf32>
    %398 = vector.extract_strided_slice %396 {offsets = [0, 0], sizes = [8, 128], strides = [1, 1]} : vector<8x384xf32> to vector<8x128xf32>
    %399 = arith.addf %397, %398 : vector<8x128xf32>
    %400 = arith.negf %399 : vector<8x128xf32>
    %401 = math.exp %400 : vector<8x128xf32>
    %cst_84 = arith.constant 1.000000e+00 : f32
    %402 = vector.broadcast %cst_84 : f32 to vector<8x128xf32>
    %403 = arith.addf %402, %401 : vector<8x128xf32>
    %404 = arith.divf %402, %403 : vector<8x128xf32>
    %405 = vector.extract_strided_slice %364 {offsets = [0, 128], sizes = [8, 128], strides = [1, 1]} : vector<8x384xf32> to vector<8x128xf32>
    %406 = vector.extract_strided_slice %396 {offsets = [0, 128], sizes = [8, 128], strides = [1, 1]} : vector<8x384xf32> to vector<8x128xf32>
    %407 = arith.addf %405, %406 : vector<8x128xf32>
    %408 = arith.negf %407 : vector<8x128xf32>
    %409 = math.exp %408 : vector<8x128xf32>
    %cst_85 = arith.constant 1.000000e+00 : f32
    %410 = vector.broadcast %cst_85 : f32 to vector<8x128xf32>
    %411 = arith.addf %410, %409 : vector<8x128xf32>
    %412 = arith.divf %410, %411 : vector<8x128xf32>
    %413 = vector.extract_strided_slice %364 {offsets = [0, 256], sizes = [8, 128], strides = [1, 1]} : vector<8x384xf32> to vector<8x128xf32>
    %414 = vector.extract_strided_slice %396 {offsets = [0, 256], sizes = [8, 128], strides = [1, 1]} : vector<8x384xf32> to vector<8x128xf32>
    %415 = arith.addf %414, %5 : vector<8x128xf32>
    %416 = arith.mulf %404, %415 : vector<8x128xf32>
    %417 = arith.addf %413, %416 : vector<8x128xf32>
    %418 = math.tanh %417 : vector<8x128xf32>
    %cst_86 = arith.constant 1.000000e+00 : f32
    %419 = vector.broadcast %cst_86 : f32 to vector<8x128xf32>
    %420 = arith.subf %419, %412 : vector<8x128xf32>
    %421 = arith.mulf %420, %418 : vector<8x128xf32>
    %422 = arith.mulf %412, %361 : vector<8x128xf32>
    %423 = arith.addf %421, %422 : vector<8x128xf32>
    %424 = arith.truncf %394 : vector<8x128xf32> to vector<8x128xbf16>
    %cst_87 = arith.constant dense<0.000000e+00> : vector<8x384xf32>
    %425 = tpu.matmul %424, %11, %cst_87 {dimension_numbers = #tpu.dot_dimension_numbers<[1], [0], [0], [1], [0, 0, 1, 1], [], []>} : vector<8x128xbf16>, vector<128x384xbf16>, vector<8x384xf32> -> vector<8x384xf32>
    %426 = arith.addf %425, %8 : vector<8x384xf32>
    %c56 = arith.constant 56 : index
    %c0_88 = arith.constant 0 : index
    %427 = vector.load %arg12[%c56, %c0_88] : memref<64x384xf32, #tpu.memory_space<vmem>>, vector<8x384xf32>
    %428 = arith.truncf %394 : vector<8x128xf32> to vector<8x128xbf16>
    %cst_89 = arith.constant dense<0.000000e+00> : vector<8x384xf32>
    %429 = tpu.matmul %428, %9, %cst_89 {dimension_numbers = #tpu.dot_dimension_numbers<[1], [0], [0], [1], [0, 0, 1, 1], [], []>} : vector<8x128xbf16>, vector<128x384xbf16>, vector<8x384xf32> -> vector<8x384xf32>
    %430 = vector.extract_strided_slice %427 {offsets = [0, 0], sizes = [8, 128], strides = [1, 1]} : vector<8x384xf32> to vector<8x128xf32>
    %431 = vector.extract_strided_slice %429 {offsets = [0, 0], sizes = [8, 128], strides = [1, 1]} : vector<8x384xf32> to vector<8x128xf32>
    %432 = arith.addf %430, %431 : vector<8x128xf32>
    %433 = arith.negf %432 : vector<8x128xf32>
    %434 = math.exp %433 : vector<8x128xf32>
    %cst_90 = arith.constant 1.000000e+00 : f32
    %435 = vector.broadcast %cst_90 : f32 to vector<8x128xf32>
    %436 = arith.addf %435, %434 : vector<8x128xf32>
    %437 = arith.divf %435, %436 : vector<8x128xf32>
    %438 = vector.extract_strided_slice %427 {offsets = [0, 128], sizes = [8, 128], strides = [1, 1]} : vector<8x384xf32> to vector<8x128xf32>
    %439 = vector.extract_strided_slice %429 {offsets = [0, 128], sizes = [8, 128], strides = [1, 1]} : vector<8x384xf32> to vector<8x128xf32>
    %440 = arith.addf %438, %439 : vector<8x128xf32>
    %441 = arith.negf %440 : vector<8x128xf32>
    %442 = math.exp %441 : vector<8x128xf32>
    %cst_91 = arith.constant 1.000000e+00 : f32
    %443 = vector.broadcast %cst_91 : f32 to vector<8x128xf32>
    %444 = arith.addf %443, %442 : vector<8x128xf32>
    %445 = arith.divf %443, %444 : vector<8x128xf32>
    %446 = vector.extract_strided_slice %427 {offsets = [0, 256], sizes = [8, 128], strides = [1, 1]} : vector<8x384xf32> to vector<8x128xf32>
    %447 = vector.extract_strided_slice %429 {offsets = [0, 256], sizes = [8, 128], strides = [1, 1]} : vector<8x384xf32> to vector<8x128xf32>
    %448 = arith.addf %447, %2 : vector<8x128xf32>
    %449 = arith.mulf %437, %448 : vector<8x128xf32>
    %450 = arith.addf %446, %449 : vector<8x128xf32>
    %451 = math.tanh %450 : vector<8x128xf32>
    %cst_92 = arith.constant 1.000000e+00 : f32
    %452 = vector.broadcast %cst_92 : f32 to vector<8x128xf32>
    %453 = arith.subf %452, %445 : vector<8x128xf32>
    %454 = arith.mulf %453, %451 : vector<8x128xf32>
    %455 = arith.mulf %445, %394 : vector<8x128xf32>
    %456 = arith.addf %454, %455 : vector<8x128xf32>
    %457 = arith.truncf %423 : vector<8x128xf32> to vector<8x128xbf16>
    %cst_93 = arith.constant dense<0.000000e+00> : vector<8x384xf32>
    %458 = tpu.matmul %457, %10, %cst_93 {dimension_numbers = #tpu.dot_dimension_numbers<[1], [0], [0], [1], [0, 0, 1, 1], [], []>} : vector<8x128xbf16>, vector<128x384xbf16>, vector<8x384xf32> -> vector<8x384xf32>
    %459 = vector.extract_strided_slice %426 {offsets = [0, 0], sizes = [8, 128], strides = [1, 1]} : vector<8x384xf32> to vector<8x128xf32>
    %460 = vector.extract_strided_slice %458 {offsets = [0, 0], sizes = [8, 128], strides = [1, 1]} : vector<8x384xf32> to vector<8x128xf32>
    %461 = arith.addf %459, %460 : vector<8x128xf32>
    %462 = arith.negf %461 : vector<8x128xf32>
    %463 = math.exp %462 : vector<8x128xf32>
    %cst_94 = arith.constant 1.000000e+00 : f32
    %464 = vector.broadcast %cst_94 : f32 to vector<8x128xf32>
    %465 = arith.addf %464, %463 : vector<8x128xf32>
    %466 = arith.divf %464, %465 : vector<8x128xf32>
    %467 = vector.extract_strided_slice %426 {offsets = [0, 128], sizes = [8, 128], strides = [1, 1]} : vector<8x384xf32> to vector<8x128xf32>
    %468 = vector.extract_strided_slice %458 {offsets = [0, 128], sizes = [8, 128], strides = [1, 1]} : vector<8x384xf32> to vector<8x128xf32>
    %469 = arith.addf %467, %468 : vector<8x128xf32>
    %470 = arith.negf %469 : vector<8x128xf32>
    %471 = math.exp %470 : vector<8x128xf32>
    %cst_95 = arith.constant 1.000000e+00 : f32
    %472 = vector.broadcast %cst_95 : f32 to vector<8x128xf32>
    %473 = arith.addf %472, %471 : vector<8x128xf32>
    %474 = arith.divf %472, %473 : vector<8x128xf32>
    %475 = vector.extract_strided_slice %426 {offsets = [0, 256], sizes = [8, 128], strides = [1, 1]} : vector<8x384xf32> to vector<8x128xf32>
    %476 = vector.extract_strided_slice %458 {offsets = [0, 256], sizes = [8, 128], strides = [1, 1]} : vector<8x384xf32> to vector<8x128xf32>
    %477 = arith.addf %476, %5 : vector<8x128xf32>
    %478 = arith.mulf %466, %477 : vector<8x128xf32>
    %479 = arith.addf %475, %478 : vector<8x128xf32>
    %480 = math.tanh %479 : vector<8x128xf32>
    %cst_96 = arith.constant 1.000000e+00 : f32
    %481 = vector.broadcast %cst_96 : f32 to vector<8x128xf32>
    %482 = arith.subf %481, %474 : vector<8x128xf32>
    %483 = arith.mulf %482, %480 : vector<8x128xf32>
    %484 = arith.mulf %474, %423 : vector<8x128xf32>
    %485 = arith.addf %483, %484 : vector<8x128xf32>
    %486 = arith.truncf %456 : vector<8x128xf32> to vector<8x128xbf16>
    %cst_97 = arith.constant dense<0.000000e+00> : vector<8x384xf32>
    %487 = tpu.matmul %486, %11, %cst_97 {dimension_numbers = #tpu.dot_dimension_numbers<[1], [0], [0], [1], [0, 0, 1, 1], [], []>} : vector<8x128xbf16>, vector<128x384xbf16>, vector<8x384xf32> -> vector<8x384xf32>
    %488 = arith.addf %487, %8 : vector<8x384xf32>
    %489 = arith.truncf %485 : vector<8x128xf32> to vector<8x128xbf16>
    %cst_98 = arith.constant dense<0.000000e+00> : vector<8x384xf32>
    %490 = tpu.matmul %489, %10, %cst_98 {dimension_numbers = #tpu.dot_dimension_numbers<[1], [0], [0], [1], [0, 0, 1, 1], [], []>} : vector<8x128xbf16>, vector<128x384xbf16>, vector<8x384xf32> -> vector<8x384xf32>
    %491 = vector.extract_strided_slice %488 {offsets = [0, 0], sizes = [8, 128], strides = [1, 1]} : vector<8x384xf32> to vector<8x128xf32>
    %492 = vector.extract_strided_slice %490 {offsets = [0, 0], sizes = [8, 128], strides = [1, 1]} : vector<8x384xf32> to vector<8x128xf32>
    %493 = arith.addf %491, %492 : vector<8x128xf32>
    %494 = arith.negf %493 : vector<8x128xf32>
    %495 = math.exp %494 : vector<8x128xf32>
    %cst_99 = arith.constant 1.000000e+00 : f32
    %496 = vector.broadcast %cst_99 : f32 to vector<8x128xf32>
    %497 = arith.addf %496, %495 : vector<8x128xf32>
    %498 = arith.divf %496, %497 : vector<8x128xf32>
    %499 = vector.extract_strided_slice %488 {offsets = [0, 128], sizes = [8, 128], strides = [1, 1]} : vector<8x384xf32> to vector<8x128xf32>
    %500 = vector.extract_strided_slice %490 {offsets = [0, 128], sizes = [8, 128], strides = [1, 1]} : vector<8x384xf32> to vector<8x128xf32>
    %501 = arith.addf %499, %500 : vector<8x128xf32>
    %502 = arith.negf %501 : vector<8x128xf32>
    %503 = math.exp %502 : vector<8x128xf32>
    %cst_100 = arith.constant 1.000000e+00 : f32
    %504 = vector.broadcast %cst_100 : f32 to vector<8x128xf32>
    %505 = arith.addf %504, %503 : vector<8x128xf32>
    %506 = arith.divf %504, %505 : vector<8x128xf32>
    %507 = vector.extract_strided_slice %488 {offsets = [0, 256], sizes = [8, 128], strides = [1, 1]} : vector<8x384xf32> to vector<8x128xf32>
    %508 = vector.extract_strided_slice %490 {offsets = [0, 256], sizes = [8, 128], strides = [1, 1]} : vector<8x384xf32> to vector<8x128xf32>
    %509 = arith.addf %508, %5 : vector<8x128xf32>
    %510 = arith.mulf %498, %509 : vector<8x128xf32>
    %511 = arith.addf %507, %510 : vector<8x128xf32>
    %512 = math.tanh %511 : vector<8x128xf32>
    %cst_101 = arith.constant 1.000000e+00 : f32
    %513 = vector.broadcast %cst_101 : f32 to vector<8x128xf32>
    %514 = arith.subf %513, %506 : vector<8x128xf32>
    %515 = arith.mulf %514, %512 : vector<8x128xf32>
    %516 = arith.mulf %506, %485 : vector<8x128xf32>
    %517 = arith.addf %515, %516 : vector<8x128xf32>
    %c0_102 = arith.constant 0 : index
    %c0_103 = arith.constant 0 : index
    %518 = vector.load %arg9[%c0_102, %c0_103] : memref<128x128xf32, #tpu.memory_space<vmem>>, vector<128x128xf32>
    %cst_104 = arith.constant dense<0.000000e+00> : vector<8x128xf32>
    %519 = tpu.matmul %517, %518, %cst_104 {dimension_numbers = #tpu.dot_dimension_numbers<[1], [0], [0], [1], [0, 0, 1, 1], [], []>} : vector<8x128xf32>, vector<128x128xf32>, vector<8x128xf32> -> vector<8x128xf32>
    %c0_105 = arith.constant 0 : index
    %c0_106 = arith.constant 0 : index
    %520 = vector.load %arg10[%c0_105, %c0_106] : memref<1x128xf32, #tpu.memory_space<vmem>>, vector<1x128xf32>
    %521 = vector.broadcast %520 : vector<1x128xf32> to vector<8x128xf32>
    %522 = arith.addf %519, %521 : vector<8x128xf32>
    %c0_107 = arith.constant 0 : index
    %c0_108 = arith.constant 0 : index
    %523 = vector.load %arg11[%c0_107, %c0_108] : memref<8x128xf32, #tpu.memory_space<vmem>>, vector<8x128xf32>
    tpu.vector_store %arg11[%c0_107, %c0_108], %522 {strides = array<i32>} : memref<8x128xf32, #tpu.memory_space<vmem>>, vector<8x128xf32>,
    return
  }
}

</mosaic_0001>

<llo_original>
// kernel: gru_regressor.1
$region0: #{gru_regressor.1}
  #allocation0 [shape = 'u32[]', space=smem, size = 0x4, offset = 0x4, fixed_abs, tag = 'smem constant byte address 0x4 - core index']
  #allocation1 [shape = 'u32[144,128]{1,0:T(1,128)}', space=vmem, size = 0x12000, scoped, tag = 'internal scratch']
  #allocation2 [shape = 'f32[64,384]{1,0:T(8,128)}', space=vmem, size = 0x18000, scoped, tag = 'scratch operand']
  %s0 = inlined_call_operand.vmem [shape: f32[64,10], index: 0, kind: input, shape index: {}]
  %s1 = inlined_call_operand.vmem [shape: bf16[10,384], index: 1, kind: input, shape index: {}]
  %s2 = inlined_call_operand.vmem [shape: bf16[128,384], index: 2, kind: input, shape index: {}]
  %s3 = inlined_call_operand.vmem [shape: f32[1,384], index: 3, kind: input, shape index: {}]
  %s4 = inlined_call_operand.vmem [shape: f32[1,128], index: 4, kind: input, shape index: {}]
  %s5 = inlined_call_operand.vmem [shape: bf16[128,384], index: 5, kind: input, shape index: {}]
  %s6 = inlined_call_operand.vmem [shape: bf16[128,384], index: 6, kind: input, shape index: {}]
  %s7 = inlined_call_operand.vmem [shape: f32[1,384], index: 7, kind: input, shape index: {}]
  %s8 = inlined_call_operand.vmem [shape: f32[1,128], index: 8, kind: input, shape index: {}]
  %s9 = inlined_call_operand.vmem [shape: f32[128,128], index: 9, kind: input, shape index: {}]
  %s10 = inlined_call_operand.vmem [shape: f32[1,128], index: 10, kind: input, shape index: {}]
  %s11 = inlined_call_operand.vmem [shape: f32[8,128], index: 11, kind: output, shape index: {}]
  %s12 = sld [smem:[#allocation0]]
  $region54: #{gru_regressor.1} parent=0
    _
  %s14 = ssub.s32 1, %s12
  %s15 = scalar_select 0, %s14, %s12
  // Predicated region
  $region2: #{gru_regressor.1} parent=0 // pred_check
    _
  $region3: #{gru_regressor.1} parent=0 // pred_check_branch
    %17 = sbr.rel (0) target = $region5
  $region4: #{gru_regressor.1} parent=0 // pred_region
    _
  $region5: #{gru_regressor.1} parent=0 // pred_fallthru
    _
  // Predicated region
  $region6: #{gru_regressor.1} parent=0 // pred_check
    _
  $region7: #{gru_regressor.1} parent=0 // pred_check_branch
    %19 = sbr.rel (0) target = $region9
  $region8: #{gru_regressor.1} parent=0 // pred_region
    _
  $region9: #{gru_regressor.1} parent=0 // pred_fallthru
    _
  // Predicated region
  $region10: #{gru_regressor.1} parent=0 // pred_check
    _
  $region11: #{gru_regressor.1} parent=0 // pred_check_branch
    %21 = sbr.rel (0) target = $region13
  $region12: #{gru_regressor.1} parent=0 // pred_region
    _
  $region13: #{gru_regressor.1} parent=0 // pred_fallthru
    _
  // Predicated region
  $region14: #{gru_regressor.1} parent=0 // pred_check
    _
  $region15: #{gru_regressor.1} parent=0 // pred_check_branch
    %23 = sbr.rel (0) target = $region17
  $region16: #{gru_regressor.1} parent=0 // pred_region
    _
  $region17: #{gru_regressor.1} parent=0 // pred_fallthru
    _
  // Predicated region
  $region18: #{gru_regressor.1} parent=0 // pred_check
    _
  $region19: #{gru_regressor.1} parent=0 // pred_check_branch
    %25 = sbr.rel (0) target = $region21
  $region20: #{gru_regressor.1} parent=0 // pred_region
    _
  $region21: #{gru_regressor.1} parent=0 // pred_fallthru
    _
  // Predicated region
  $region22: #{gru_regressor.1} parent=0 // pred_check
    _
  $region23: #{gru_regressor.1} parent=0 // pred_check_branch
    %27 = sbr.rel (0) target = $region25
  $region24: #{gru_regressor.1} parent=0 // pred_region
    _
  $region25: #{gru_regressor.1} parent=0 // pred_fallthru
    _
  // Predicated region
  $region26: #{gru_regressor.1} parent=0 // pred_check
    _
  $region27: #{gru_regressor.1} parent=0 // pred_check_branch
    %29 = sbr.rel (0) target = $region29
  $region28: #{gru_regressor.1} parent=0 // pred_region
    _
  $region29: #{gru_regressor.1} parent=0 // pred_fallthru
    _
  // Predicated region
  $region30: #{gru_regressor.1} parent=0 // pred_check
    _
  $region31: #{gru_regressor.1} parent=0 // pred_check_branch
    %31 = sbr.rel (0) target = $region33
  $region32: #{gru_regressor.1} parent=0 // pred_region
    _
  $region33: #{gru_regressor.1} parent=0 // pred_fallthru
    _
  // Predicated region
  $region34: #{gru_regressor.1} parent=0 // pred_check
    _
  $region35: #{gru_regressor.1} parent=0 // pred_check_branch
    %33 = sbr.rel (0) target = $region37
  $region36: #{gru_regressor.1} parent=0 // pred_region
    _
  $region37: #{gru_regressor.1} parent=0 // pred_fallthru
    _
  // Predicated region
  $region38: #{gru_regressor.1} parent=0 // pred_check
    _
  $region39: #{gru_regressor.1} parent=0 // pred_check_branch
    %35 = sbr.rel (0) target = $region41
  $region40: #{gru_regressor.1} parent=0 // pred_region
    _
  $region41: #{gru_regressor.1} parent=0 // pred_fallthru
    _
  // Predicated region
  $region42: #{gru_regressor.1} parent=0 // pred_check
    _
  $region43: #{gru_regressor.1} parent=0 // pred_check_branch
    %37 = sbr.rel (0) target = $region45
  $region44: #{gru_regressor.1} parent=0 // pred_region
    _
  $region45: #{gru_regressor.1} parent=0 // pred_fallthru
    _
  %v39 = vld [vmem:[%s4] sm:$0x1]
  %v41 = vlaneseq
  %v42 = vshrl.u32 %v41, 7
  %v43 = vsub.s32 0, %v42
  %v44 = vrot.slane %v39, %v43
  %v46 = vld [vmem:[%s8] sm:$0x1]
  %v48 = vlaneseq
  %v49 = vshrl.u32 %v48, 7
  %v50 = vsub.s32 0, %v49
  %v51 = vrot.slane %v46, %v50
  %v53 = vld [vmem:[%s7] sm:$0x7]
  %v55 = vlaneseq
  %v56 = vshrl.u32 %v55, 7
  %v57 = vsub.s32 0, %v56
  %v58 = vrot.slane %v53, %v57
  %v59 = vlaneseq
  %v60 = vshrl.u32 %v59, 7
  %v61 = vsub.s32 1, %v60
  %v62 = vrot.slane %v53, %v61
  %v63 = vlaneseq
  %v64 = vshrl.u32 %v63, 7
  %v65 = vsub.s32 2, %v64
  %v66 = vrot.slane %v53, %v65
  %v70 = vld [vmem:[%s2] sm:$0xff]
  %v71 = vld [vmem:[%s2 + $0x8] sm:$0xf]
  %v72 = vld [vmem:[%s2 + $0xc] sm:$0xff]
  %v73 = vld [vmem:[%s2 + $0x14] sm:$0xf]
  %v74 = vld [vmem:[%s2 + $0x18] sm:$0xff]
  %v75 = vld [vmem:[%s2 + $0x20] sm:$0xf]
  %v76 = vld [vmem:[%s2 + $0x24] sm:$0xff]
  %v77 = vld [vmem:[%s2 + $0x2c] sm:$0xf]
  %v78 = vld [vmem:[%s2 + $0x30] sm:$0xff]
  %v79 = vld [vmem:[%s2 + $0x38] sm:$0xf]
  %v80 = vld [vmem:[%s2 + $0x3c] sm:$0xff]
  %v81 = vld [vmem:[%s2 + $0x44] sm:$0xf]
  %v82 = vld [vmem:[%s2 + $0x48] sm:$0xff]
  %v83 = vld [vmem:[%s2 + $0x50] sm:$0xf]
  %v84 = vld [vmem:[%s2 + $0x54] sm:$0xff]
  %v85 = vld [vmem:[%s2 + $0x5c] sm:$0xf]
  %v86 = vld [vmem:[%s2 + $0x60] sm:$0xff]
  %v87 = vld [vmem:[%s2 + $0x68] sm:$0xf]
  %v88 = vld [vmem:[%s2 + $0x6c] sm:$0xff]
  %v89 = vld [vmem:[%s2 + $0x74] sm:$0xf]
  %v90 = vld [vmem:[%s2 + $0x78] sm:$0xff]
  %v91 = vld [vmem:[%s2 + $0x80] sm:$0xf]
  %v92 = vld [vmem:[%s2 + $0x84] sm:$0xff]
  %v93 = vld [vmem:[%s2 + $0x8c] sm:$0xf]
  %v94 = vld [vmem:[%s2 + $0x90] sm:$0xff]
  %v95 = vld [vmem:[%s2 + $0x98] sm:$0xf]
  %v96 = vld [vmem:[%s2 + $0x9c] sm:$0xff]
  %v97 = vld [vmem:[%s2 + $0xa4] sm:$0xf]
  %v98 = vld [vmem:[%s2 + $0xa8] sm:$0xff]
  %v99 = vld [vmem:[%s2 + $0xb0] sm:$0xf]
  %v100 = vld [vmem:[%s2 + $0xb4] sm:$0xff]
  %v101 = vld [vmem:[%s2 + $0xbc] sm:$0xf]
  %v102 = vld [vmem:[%s6] sm:$0xff]
  %v103 = vld [vmem:[%s6 + $0x8] sm:$0xf]
  %v104 = vld [vmem:[%s6 + $0xc] sm:$0xff]
  %v105 = vld [vmem:[%s6 + $0x14] sm:$0xf]
  %v106 = vld [vmem:[%s6 + $0x18] sm:$0xff]
  %v107 = vld [vmem:[%s6 + $0x20] sm:$0xf]
  %v108 = vld [vmem:[%s6 + $0x24] sm:$0xff]
  %v109 = vld [vmem:[%s6 + $0x2c] sm:$0xf]
  %v110 = vld [vmem:[%s6 + $0x30] sm:$0xff]
  %v111 = vld [vmem:[%s6 + $0x38] sm:$0xf]
  %v112 = vld [vmem:[%s6 + $0x3c] sm:$0xff]
  %v113 = vld [vmem:[%s6 + $0x44] sm:$0xf]
  %v114 = vld [vmem:[%s6 + $0x48] sm:$0xff]
  %v115 = vld [vmem:[%s6 + $0x50] sm:$0xf]
  %v116 = vld [vmem:[%s6 + $0x54] sm:$0xff]
  %v117 = vld [vmem:[%s6 + $0x5c] sm:$0xf]
  %v118 = vld [vmem:[%s6 + $0x60] sm:$0xff]
  %v119 = vld [vmem:[%s6 + $0x68] sm:$0xf]
  %v120 = vld [vmem:[%s6 + $0x6c] sm:$0xff]
  %v121 = vld [vmem:[%s6 + $0x74] sm:$0xf]
  %v122 = vld [vmem:[%s6 + $0x78] sm:$0xff]
  %v123 = vld [vmem:[%s6 + $0x80] sm:$0xf]
  %v124 = vld [vmem:[%s6 + $0x84] sm:$0xff]
  %v125 = vld [vmem:[%s6 + $0x8c] sm:$0xf]
  %v126 = vld [vmem:[%s6 + $0x90] sm:$0xff]
  %v127 = vld [vmem:[%s6 + $0x98] sm:$0xf]
  %v128 = vld [vmem:[%s6 + $0x9c] sm:$0xff]
  %v129 = vld [vmem:[%s6 + $0xa4] sm:$0xf]
  %v130 = vld [vmem:[%s6 + $0xa8] sm:$0xff]
  %v131 = vld [vmem:[%s6 + $0xb0] sm:$0xf]
  %v132 = vld [vmem:[%s6 + $0xb4] sm:$0xff]
  %v133 = vld [vmem:[%s6 + $0xbc] sm:$0xf]
  %v134 = vld [vmem:[%s5] sm:$0xff]
  %v135 = vld [vmem:[%s5 + $0x8] sm:$0xf]
  %v136 = vld [vmem:[%s5 + $0xc] sm:$0xff]
  %v137 = vld [vmem:[%s5 + $0x14] sm:$0xf]
  %v138 = vld [vmem:[%s5 + $0x18] sm:$0xff]
  %v139 = vld [vmem:[%s5 + $0x20] sm:$0xf]
  %v140 = vld [vmem:[%s5 + $0x24] sm:$0xff]
  %v141 = vld [vmem:[%s5 + $0x2c] sm:$0xf]
  %v142 = vld [vmem:[%s5 + $0x30] sm:$0xff]
  %v143 = vld [vmem:[%s5 + $0x38] sm:$0xf]
  %v144 = vld [vmem:[%s5 + $0x3c] sm:$0xff]
  %v145 = vld [vmem:[%s5 + $0x44] sm:$0xf]
  %v146 = vld [vmem:[%s5 + $0x48] sm:$0xff]
  %v147 = vld [vmem:[%s5 + $0x50] sm:$0xf]
  %v148 = vld [vmem:[%s5 + $0x54] sm:$0xff]
  %v149 = vld [vmem:[%s5 + $0x5c] sm:$0xf]
  %v150 = vld [vmem:[%s5 + $0x60] sm:$0xff]
  %v151 = vld [vmem:[%s5 + $0x68] sm:$0xf]
  %v152 = vld [vmem:[%s5 + $0x6c] sm:$0xff]
  %v153 = vld [vmem:[%s5 + $0x74] sm:$0xf]
  %v154 = vld [vmem:[%s5 + $0x78] sm:$0xff]
  %v155 = vld [vmem:[%s5 + $0x80] sm:$0xf]
  %v156 = vld [vmem:[%s5 + $0x84] sm:$0xff]
  %v157 = vld [vmem:[%s5 + $0x8c] sm:$0xf]
  %v158 = vld [vmem:[%s5 + $0x90] sm:$0xff]
  %v159 = vld [vmem:[%s5 + $0x98] sm:$0xf]
  %v160 = vld [vmem:[%s5 + $0x9c] sm:$0xff]
  %v161 = vld [vmem:[%s5 + $0xa4] sm:$0xf]
  %v162 = vld [vmem:[%s5 + $0xa8] sm:$0xff]
  %v163 = vld [vmem:[%s5 + $0xb0] sm:$0xf]
  %v164 = vld [vmem:[%s5 + $0xb4] sm:$0xff]
  %v165 = vld [vmem:[%s5 + $0xbc] sm:$0xf]
  %v166 = vld [vmem:[%s0] sm:$0xff]
  %v167 = vld [vmem:[%s0 + $0x8] sm:$0xff]
  %v168 = vld [vmem:[%s0 + $0x10] sm:$0xff]
  %v169 = vld [vmem:[%s0 + $0x18] sm:$0xff]
  %v170 = vld [vmem:[%s0 + $0x20] sm:$0xff]
  %v171 = vld [vmem:[%s0 + $0x28] sm:$0xff]
  %v172 = vld [vmem:[%s0 + $0x30] sm:$0xff]
  %v173 = vld [vmem:[%s0 + $0x38] sm:$0xff]
  %v174 = vpack.c.bf16 %v167, %v166
  %v175 = vpack.c.bf16 %v169, %v168
  %v176 = vpack.c.bf16 %v171, %v170
  %v177 = vpack.c.bf16 %v173, %v172
  %v178 = vld [vmem:[%s1] sm:$0xff]
  %v179 = vld [vmem:[%s1 + $0x8] sm:$0xf]
  %v180 = vld [vmem:[%s1 + $0xc] sm:$0x11]
  %v181 = vld [vmem:[%s1 + $0x14] sm:$0x1]
  %v182 = vld [vmem:[%s3] sm:$0x7]
  %v184 = vlaneseq
  %v185 = vshrl.u32 %v184, 7
  %v186 = vsub.s32 0, %v185
  %v187 = vrot.slane %v182, %v186
  %v188 = vlaneseq
  %v189 = vshrl.u32 %v188, 7
  %v190 = vsub.s32 1, %v189
  %v191 = vrot.slane %v182, %v190
  %v192 = vlaneseq
  %v193 = vshrl.u32 %v192, 7
  %v194 = vsub.s32 2, %v193
  %v195 = vrot.slane %v182, %v194
  %v203 = vunpack.c.l.b16 %v178
  %v204 = vunpack.c.h.b16 %v178
  %v205 = vunpack.c.l.b16 %v179
  %v206 = vunpack.c.l.b16 %v180
  %v207 = vunpack.c.h.b16 %v180
  %v208 = vunpack.c.l.b16 %v181
  %v209 = vpack.c.b16 %v206, %v203
  %v210 = vpack.c.b16 %v207, %v204
  %v211 = vpack.c.b16 %v208, %v205
  %vm212 = vcmask 80896
  %v214 = vsel %vm212, %v174, 0
  %v217 = vsel %vm212, %v175, 0
  %v220 = vsel %vm212, %v176, 0
  %v223 = vsel %vm212, %v177, 0
  %vm225 = vcmask 1044480
  %v227 = vsel %vm225, %v209, 0
  %v230 = vsel %vm225, %v210, 0
  %v233 = vsel %vm225, %v211, 0
  %235 = vmatprep.subr.bf16.mxu0 %v230
  %236 = vmatpush1.bf16.msra.mxu0 %v227
  %237 = vmatprep.subr.bf16.mxu0 0
  %238 = vmatpush1.bf16.msra.mxu0 0
  %239 = vmatprep.subr.bf16.mxu0 0
  %240 = vmatpush1.bf16.msra.mxu0 0
  %241 = vmatprep.subr.bf16.mxu0 0
  %242 = vmatpush1.bf16.msra.mxu0 0
  %243 = vmatprep.subr.bf16.mxu0 0
  %244 = vmatpush1.bf16.msra.mxu0 0
  %245 = vmatprep.subr.bf16.mxu0 0
  %246 = vmatpush1.bf16.msra.mxu0 0
  %247 = vmatprep.subr.bf16.mxu0 0
  %248 = vmatpush1.bf16.msra.mxu0 0
  %249 = vmatprep.subr.bf16.mxu0 0
  %250 = vmatpush1.bf16.msra.mxu0 0
  %251 = vmatprep.subr.bf16.mxu0 0
  %252 = vmatpush1.bf16.msra.mxu0 0
  %253 = vmatprep.subr.bf16.mxu0 0
  %254 = vmatpush1.bf16.msra.mxu0 0
  %255 = vmatprep.subr.bf16.mxu0 0
  %256 = vmatpush1.bf16.msra.mxu0 0
  %257 = vmatprep.subr.bf16.mxu0 0
  %258 = vmatpush1.bf16.msra.mxu0 0
  %259 = vmatprep.subr.bf16.mxu0 0
  %260 = vmatpush1.bf16.msra.mxu0 0
  %261 = vmatprep.subr.bf16.mxu0 0
  %262 = vmatpush1.bf16.msra.mxu0 0
  %263 = vmatprep.subr.bf16.mxu0 0
  %264 = vmatpush1.bf16.msra.mxu0 0
  %265 = vmatprep.subr.bf16.mxu0 0
  %266 = vmatpush1.bf16.msra.mxu0 0
  %267 = vmatprep.mubr.bf16.mxu0 0
  %268 = vmatmul.mubr.bf16.gmra.mrb[0].mxu0 %v214
  %v269 = vpop.f32.mrb[0].mxu0
  %v270 = vadd.f32 %v187, %v269
  %v271 = vpop.f32.mrb[0].mxu0
  %v272 = vadd.f32 %v191, %v271
  %v273 = vpop.f32.mrb[0].mxu0
  %v274 = vadd.f32 %v187, %v273
  %v275 = vpop.f32.mrb[0].mxu0
  %v276 = vadd.f32 %v191, %v275
  %277 = vmatprep.mubr.bf16.mxu0 0
  %278 = vmatmul.mubr.bf16.gmra.mrb[0].mxu0 %v217
  %v279 = vpop.f32.mrb[0].mxu0
  %v280 = vadd.f32 %v187, %v279
  %v281 = vpop.f32.mrb[0].mxu0
  %v282 = vadd.f32 %v191, %v281
  %v283 = vpop.f32.mrb[0].mxu0
  %v284 = vadd.f32 %v187, %v283
  %v285 = vpop.f32.mrb[0].mxu0
  %v286 = vadd.f32 %v191, %v285
  %287 = vmatprep.mubr.bf16.mxu0 0
  %288 = vmatmul.mubr.bf16.gmra.mrb[0].mxu0 %v220
  %v289 = vpop.f32.mrb[0].mxu0
  %v290 = vadd.f32 %v187, %v289
  %v291 = vpop.f32.mrb[0].mxu0
  %v292 = vadd.f32 %v191, %v291
  %v293 = vpop.f32.mrb[0].mxu0
  %v294 = vadd.f32 %v187, %v293
  %v295 = vpop.f32.mrb[0].mxu0
  %v296 = vadd.f32 %v191, %v295
  %297 = vmatprep.mubr.bf16.mxu0 0
  %298 = vmatmul.mubr.bf16.gmra.mrb[0].mxu0 %v223
  %v299 = vpop.f32.mrb[0].mxu0
  %v300 = vadd.f32 %v187, %v299
  %v301 = vpop.f32.mrb[0].mxu0
  %v302 = vadd.f32 %v191, %v301
  %v303 = vpop.f32.mrb[0].mxu0
  %v304 = vadd.f32 %v187, %v303
  %v305 = vpop.f32.mrb[0].mxu0
  %v306 = vadd.f32 %v191, %v305
  %307 = vdwg.mxu0
  %308 = vmatprep.subr.bf16.mxu0 0
  %309 = vmatpush1.bf16.msra.mxu0 %v233
  %310 = vmatprep.subr.bf16.mxu0 0
  %311 = vmatpush1.bf16.msra.mxu0 0
  %312 = vmatprep.subr.bf16.mxu0 0
  %313 = vmatpush1.bf16.msra.mxu0 0
  %314 = vmatprep.subr.bf16.mxu0 0
  %315 = vmatpush1.bf16.msra.mxu0 0
  %316 = vmatprep.subr.bf16.mxu0 0
  %317 = vmatpush1.bf16.msra.mxu0 0
  %318 = vmatprep.subr.bf16.mxu0 0
  %319 = vmatpush1.bf16.msra.mxu0 0
  %320 = vmatprep.subr.bf16.mxu0 0
  %321 = vmatpush1.bf16.msra.mxu0 0
  %322 = vmatprep.subr.bf16.mxu0 0
  %323 = vmatpush1.bf16.msra.mxu0 0
  %324 = vmatprep.subr.bf16.mxu0 0
  %325 = vmatpush1.bf16.msra.mxu0 0
  %326 = vmatprep.subr.bf16.mxu0 0
  %327 = vmatpush1.bf16.msra.mxu0 0
  %328 = vmatprep.subr.bf16.mxu0 0
  %329 = vmatpush1.bf16.msra.mxu0 0
  %330 = vmatprep.subr.bf16.mxu0 0
  %331 = vmatpush1.bf16.msra.mxu0 0
  %332 = vmatprep.subr.bf16.mxu0 0
  %333 = vmatpush1.bf16.msra.mxu0 0
  %334 = vmatprep.subr.bf16.mxu0 0
  %335 = vmatpush1.bf16.msra.mxu0 0
  %336 = vmatprep.subr.bf16.mxu0 0
  %337 = vmatpush1.bf16.msra.mxu0 0
  %338 = vmatprep.subr.bf16.mxu0 0
  %339 = vmatpush1.bf16.msra.mxu0 0
  %340 = vmatprep.mubr.bf16.mxu0 0
  %341 = vmatmul.mubr.bf16.gmra.mrb[0].mxu0 %v214
  %v342 = vpop.f32.mrb[0].mxu0
  %v343 = vadd.f32 %v195, %v342
  %v344 = vpop.f32.mrb[0].mxu0
  %v345 = vpop.f32.mrb[0].mxu0
  %v346 = vadd.f32 %v195, %v345
  %v347 = vpop.f32.mrb[0].mxu0
  %348 = vmatprep.mubr.bf16.mxu0 0
  %349 = vmatmul.mubr.bf16.gmra.mrb[0].mxu0 %v217
  %v350 = vpop.f32.mrb[0].mxu0
  %v351 = vadd.f32 %v195, %v350
  %v352 = vpop.f32.mrb[0].mxu0
  %v353 = vpop.f32.mrb[0].mxu0
  %v354 = vadd.f32 %v195, %v353
  %v355 = vpop.f32.mrb[0].mxu0
  %356 = vmatprep.mubr.bf16.mxu0 0
  %357 = vmatmul.mubr.bf16.gmra.mrb[0].mxu0 %v220
  %v358 = vpop.f32.mrb[0].mxu0
  %v359 = vadd.f32 %v195, %v358
  %v360 = vpop.f32.mrb[0].mxu0
  %v361 = vpop.f32.mrb[0].mxu0
  %v362 = vadd.f32 %v195, %v361
  %v363 = vpop.f32.mrb[0].mxu0
  %364 = vmatprep.mubr.bf16.mxu0 0
  %365 = vmatmul.mubr.bf16.gmra.mrb[0].mxu0 %v223
  %v366 = vpop.f32.mrb[0].mxu0
  %v367 = vadd.f32 %v195, %v366
  %v368 = vpop.f32.mrb[0].mxu0
  %v369 = vpop.f32.mrb[0].mxu0
  %v370 = vadd.f32 %v195, %v369
  %v371 = vpop.f32.mrb[0].mxu0
  %372 = vdwg.mxu0
  %373 = vst [vmem:[#allocation2] sm:$0xff] %v270
  %374 = vst [vmem:[#allocation2 + $0x8] sm:$0xff] %v272
  %375 = vst [vmem:[#allocation2 + $0x10] sm:$0xff] %v343
  %376 = vst [vmem:[#allocation2 + $0x18] sm:$0xff] %v274
  %377 = vst [vmem:[#allocation2 + $0x20] sm:$0xff] %v276
  %378 = vst [vmem:[#allocation2 + $0x28] sm:$0xff] %v346
  %379 = vst [vmem:[#allocation2 + $0x30] sm:$0xff] %v280
  %380 = vst [vmem:[#allocation2 + $0x38] sm:$0xff] %v282
  %381 = vst [vmem:[#allocation2 + $0x40] sm:$0xff] %v351
  %382 = vst [vmem:[#allocation2 + $0x48] sm:$0xff] %v284
  %383 = vst [vmem:[#allocation2 + $0x50] sm:$0xff] %v286
  %384 = vst [vmem:[#allocation2 + $0x58] sm:$0xff] %v354
  %385 = vst [vmem:[#allocation2 + $0x60] sm:$0xff] %v290
  %386 = vst [vmem:[#allocation2 + $0x68] sm:$0xff] %v292
  %387 = vst [vmem:[#allocation2 + $0x70] sm:$0xff] %v359
  %388 = vst [vmem:[#allocation2 + $0x78] sm:$0xff] %v294
  %389 = vst [vmem:[#allocation2 + $0x80] sm:$0xff] %v296
  %390 = vst [vmem:[#allocation2 + $0x88] sm:$0xff] %v362
  %391 = vst [vmem:[#allocation2 + $0x90] sm:$0xff] %v300
  %392 = vst [vmem:[#allocation2 + $0x98] sm:$0xff] %v302
  %393 = vst [vmem:[#allocation2 + $0xa0] sm:$0xff] %v367
  %394 = vst [vmem:[#allocation2 + $0xa8] sm:$0xff] %v304
  %395 = vst [vmem:[#allocation2 + $0xb0] sm:$0xff] %v306
  %396 = vst [vmem:[#allocation2 + $0xb8] sm:$0xff] %v370
  %v397 = vld [vmem:[#allocation2] sm:$0xff]
  %v398 = vld [vmem:[#allocation2 + $0x8] sm:$0xff]
  %v399 = vld [vmem:[#allocation2 + $0x10] sm:$0xff]
  %v432 = vunpack.c.l.b16 %v70
  %v433 = vunpack.c.h.b16 %v70
  %v434 = vunpack.c.l.b16 %v71
  %v435 = vunpack.c.l.b16 %v72
  %v436 = vunpack.c.h.b16 %v72
  %v437 = vunpack.c.l.b16 %v73
  %v438 = vunpack.c.l.b16 %v74
  %v439 = vunpack.c.h.b16 %v74
  %v440 = vunpack.c.l.b16 %v75
  %v441 = vunpack.c.l.b16 %v76
  %v442 = vunpack.c.h.b16 %v76
  %v443 = vunpack.c.l.b16 %v77
  %v444 = vunpack.c.l.b16 %v78
  %v445 = vunpack.c.h.b16 %v78
  %v446 = vunpack.c.l.b16 %v79
  %v447 = vunpack.c.l.b16 %v80
  %v448 = vunpack.c.h.b16 %v80
  %v449 = vunpack.c.l.b16 %v81
  %v450 = vunpack.c.l.b16 %v82
  %v451 = vunpack.c.h.b16 %v82
  %v452 = vunpack.c.l.b16 %v83
  %v453 = vunpack.c.l.b16 %v84
  %v454 = vunpack.c.h.b16 %v84
  %v455 = vunpack.c.l.b16 %v85
  %v456 = vunpack.c.l.b16 %v86
  %v457 = vunpack.c.h.b16 %v86
  %v458 = vunpack.c.l.b16 %v87
  %v459 = vunpack.c.l.b16 %v88
  %v460 = vunpack.c.h.b16 %v88
  %v461 = vunpack.c.l.b16 %v89
  %v462 = vunpack.c.l.b16 %v90
  %v463 = vunpack.c.h.b16 %v90
  %v464 = vunpack.c.l.b16 %v91
  %v465 = vunpack.c.l.b16 %v92
  %v466 = vunpack.c.h.b16 %v92
  %v467 = vunpack.c.l.b16 %v93
  %v468 = vunpack.c.l.b16 %v94
  %v469 = vunpack.c.h.b16 %v94
  %v470 = vunpack.c.l.b16 %v95
  %v471 = vunpack.c.l.b16 %v96
  %v472 = vunpack.c.h.b16 %v96
  %v473 = vunpack.c.l.b16 %v97
  %v474 = vunpack.c.l.b16 %v98
  %v475 = vunpack.c.h.b16 %v98
  %v476 = vunpack.c.l.b16 %v99
  %v477 = vunpack.c.l.b16 %v100
  %v478 = vunpack.c.h.b16 %v100
  %v479 = vunpack.c.l.b16 %v101
  %v480 = vpack.c.b16 %v435, %v432
  %v481 = vpack.c.b16 %v436, %v433
  %v482 = vpack.c.b16 %v437, %v434
  %v483 = vpack.c.b16 %v441, %v438
  %v484 = vpack.c.b16 %v442, %v439
  %v485 = vpack.c.b16 %v443, %v440
  %v486 = vpack.c.b16 %v447, %v444
  %v487 = vpack.c.b16 %v448, %v445
  %v488 = vpack.c.b16 %v449, %v446
  %v489 = vpack.c.b16 %v453, %v450
  %v490 = vpack.c.b16 %v454, %v451
  %v491 = vpack.c.b16 %v455, %v452
  %v492 = vpack.c.b16 %v459, %v456
  %v493 = vpack.c.b16 %v460, %v457
  %v494 = vpack.c.b16 %v461, %v458
  %v495 = vpack.c.b16 %v465, %v462
  %v496 = vpack.c.b16 %v466, %v463
  %v497 = vpack.c.b16 %v467, %v464
  %v498 = vpack.c.b16 %v471, %v468
  %v499 = vpack.c.b16 %v472, %v469
  %v500 = vpack.c.b16 %v473, %v470
  %v501 = vpack.c.b16 %v477, %v474
  %v502 = vpack.c.b16 %v478, %v475
  %v503 = vpack.c.b16 %v479, %v476
  %528 = vmatprep.subr.bf16.mxu0 %v481
  %529 = vmatpush1.bf16.msra.mxu0 %v480
  %530 = vmatprep.subr.bf16.mxu0 %v484
  %531 = vmatpush1.bf16.msra.mxu0 %v483
  %532 = vmatprep.subr.bf16.mxu0 %v487
  %533 = vmatpush1.bf16.msra.mxu0 %v486
  %534 = vmatprep.subr.bf16.mxu0 %v490
  %535 = vmatpush1.bf16.msra.mxu0 %v489
  %536 = vmatprep.subr.bf16.mxu0 %v493
  %537 = vmatpush1.bf16.msra.mxu0 %v492
  %538 = vmatprep.subr.bf16.mxu0 %v496
  %539 = vmatpush1.bf16.msra.mxu0 %v495
  %540 = vmatprep.subr.bf16.mxu0 %v499
  %541 = vmatpush1.bf16.msra.mxu0 %v498
  %542 = vmatprep.subr.bf16.mxu0 %v502
  %543 = vmatpush1.bf16.msra.mxu0 %v501
  %544 = vmatprep.subr.bf16.mxu0 0
  %545 = vmatpush1.bf16.msra.mxu0 0
  %546 = vmatprep.subr.bf16.mxu0 0
  %547 = vmatpush1.bf16.msra.mxu0 0
  %548 = vmatprep.subr.bf16.mxu0 0
  %549 = vmatpush1.bf16.msra.mxu0 0
  %550 = vmatprep.subr.bf16.mxu0 0
  %551 = vmatpush1.bf16.msra.mxu0 0
  %552 = vmatprep.subr.bf16.mxu0 0
  %553 = vmatpush1.bf16.msra.mxu0 0
  %554 = vmatprep.subr.bf16.mxu0 0
  %555 = vmatpush1.bf16.msra.mxu0 0
  %556 = vmatprep.subr.bf16.mxu0 0
  %557 = vmatpush1.bf16.msra.mxu0 0
  %558 = vmatprep.subr.bf16.mxu0 0
  %559 = vmatpush1.bf16.msra.mxu0 0
  %560 = vmatprep.mubr.bf16.mxu0 0
  %561 = vmatmul.mubr.bf16.gmra.mrb[0].mxu0 0
  %v562 = vpop.f32.mrb[0].mxu0
  %v563 = vadd.f32 0.0, %v562
  %v564 = vpop.f32.mrb[0].mxu0
  %v565 = vadd.f32 0.0, %v564
  %v566 = vpop.f32.mrb[0].mxu0
  %v567 = vpop.f32.mrb[0].mxu0
  %568 = vdwg.mxu0
  %569 = vmatprep.subr.bf16.mxu0 0
  %570 = vmatpush1.bf16.msra.mxu0 %v482
  %571 = vmatprep.subr.bf16.mxu0 0
  %572 = vmatpush1.bf16.msra.mxu0 %v485
  %573 = vmatprep.subr.bf16.mxu0 0
  %574 = vmatpush1.bf16.msra.mxu0 %v488
  %575 = vmatprep.subr.bf16.mxu0 0
  %576 = vmatpush1.bf16.msra.mxu0 %v491
  %577 = vmatprep.subr.bf16.mxu0 0
  %578 = vmatpush1.bf16.msra.mxu0 %v494
  %579 = vmatprep.subr.bf16.mxu0 0
  %580 = vmatpush1.bf16.msra.mxu0 %v497
  %581 = vmatprep.subr.bf16.mxu0 0
  %582 = vmatpush1.bf16.msra.mxu0 %v500
  %583 = vmatprep.subr.bf16.mxu0 0
  %584 = vmatpush1.bf16.msra.mxu0 %v503
  %585 = vmatprep.subr.bf16.mxu0 0
  %586 = vmatpush1.bf16.msra.mxu0 0
  %587 = vmatprep.subr.bf16.mxu0 0
  %588 = vmatpush1.bf16.msra.mxu0 0
  %589 = vmatprep.subr.bf16.mxu0 0
  %590 = vmatpush1.bf16.msra.mxu0 0
  %591 = vmatprep.subr.bf16.mxu0 0
  %592 = vmatpush1.bf16.msra.mxu0 0
  %593 = vmatprep.subr.bf16.mxu0 0
  %594 = vmatpush1.bf16.msra.mxu0 0
  %595 = vmatprep.subr.bf16.mxu0 0
  %596 = vmatpush1.bf16.msra.mxu0 0
  %597 = vmatprep.subr.bf16.mxu0 0
  %598 = vmatpush1.bf16.msra.mxu0 0
  %599 = vmatprep.subr.bf16.mxu0 0
  %600 = vmatpush1.bf16.msra.mxu0 0
  %601 = vmatprep.mubr.bf16.mxu0 0
  %602 = vmatmul.mubr.bf16.gmra.mrb[0].mxu0 0
  %v603 = vpop.f32.mrb[0].mxu0
  %v604 = vadd.f32 0.0, %v603
  %v605 = vpop.f32.mrb[0].mxu0
  %v606 = vpop.f32.mrb[0].mxu0
  %v607 = vpop.f32.mrb[0].mxu0
  %608 = vdwg.mxu0
  %v609 = vadd.f32 %v397, %v563
  %v610 = vxor.u32 %v609, 2147483648
  %v611 = vmul.f32 %v610, 1.442695
  %v612 = vpow.pop %v611
  %v613 = vadd.f32 %v612, 1.0
  %v614 = vrcp.pop %v613
  %v615 = vmul.f32 1.0, %v614
  %v616 = vadd.f32 %v398, %v565
  %v617 = vxor.u32 %v616, 2147483648
  %v618 = vmul.f32 %v617, 1.442695
  %v619 = vpow.pop %v618
  %v620 = vadd.f32 %v619, 1.0
  %v621 = vrcp.pop %v620
  %v622 = vmul.f32 1.0, %v621
  %v623 = vadd.f32 %v604, %v44
  %v624 = vmul.f32 %v615, %v623
  %v625 = vadd.f32 %v399, %v624
  %v626 = vtanh.pop %v625
  %v627 = vsub.f32 1.0, %v622
  %v628 = vmul.f32 %v627, %v626
  %v629 = vmul.f32 %v622, 0.0
  %v630 = vadd.f32 %v628, %v629
  %v631 = vpack.c.bf16 %v630, %v630
  %v664 = vunpack.c.l.b16 %v134
  %v665 = vunpack.c.h.b16 %v134
  %v666 = vunpack.c.l.b16 %v135
  %v667 = vunpack.c.l.b16 %v136
  %v668 = vunpack.c.h.b16 %v136
  %v669 = vunpack.c.l.b16 %v137
  %v670 = vunpack.c.l.b16 %v138
  %v671 = vunpack.c.h.b16 %v138
  %v672 = vunpack.c.l.b16 %v139
  %v673 = vunpack.c.l.b16 %v140
  %v674 = vunpack.c.h.b16 %v140
  %v675 = vunpack.c.l.b16 %v141
  %v676 = vunpack.c.l.b16 %v142
  %v677 = vunpack.c.h.b16 %v142
  %v678 = vunpack.c.l.b16 %v143
  %v679 = vunpack.c.l.b16 %v144
  %v680 = vunpack.c.h.b16 %v144
  %v681 = vunpack.c.l.b16 %v145
  %v682 = vunpack.c.l.b16 %v146
  %v683 = vunpack.c.h.b16 %v146
  %v684 = vunpack.c.l.b16 %v147
  %v685 = vunpack.c.l.b16 %v148
  %v686 = vunpack.c.h.b16 %v148
  %v687 = vunpack.c.l.b16 %v149
  %v688 = vunpack.c.l.b16 %v150
  %v689 = vunpack.c.h.b16 %v150
  %v690 = vunpack.c.l.b16 %v151
  %v691 = vunpack.c.l.b16 %v152
  %v692 = vunpack.c.h.b16 %v152
  %v693 = vunpack.c.l.b16 %v153
  %v694 = vunpack.c.l.b16 %v154
  %v695 = vunpack.c.h.b16 %v154
  %v696 = vunpack.c.l.b16 %v155
  %v697 = vunpack.c.l.b16 %v156
  %v698 = vunpack.c.h.b16 %v156
  %v699 = vunpack.c.l.b16 %v157
  %v700 = vunpack.c.l.b16 %v158
  %v701 = vunpack.c.h.b16 %v158
  %v702 = vunpack.c.l.b16 %v159
  %v703 = vunpack.c.l.b16 %v160
  %v704 = vunpack.c.h.b16 %v160
  %v705 = vunpack.c.l.b16 %v161
  %v706 = vunpack.c.l.b16 %v162
  %v707 = vunpack.c.h.b16 %v162
  %v708 = vunpack.c.l.b16 %v163
  %v709 = vunpack.c.l.b16 %v164
  %v710 = vunpack.c.h.b16 %v164
  %v711 = vunpack.c.l.b16 %v165
  %v712 = vpack.c.b16 %v667, %v664
  %v713 = vpack.c.b16 %v668, %v665
  %v714 = vpack.c.b16 %v669, %v666
  %v715 = vpack.c.b16 %v673, %v670
  %v716 = vpack.c.b16 %v674, %v671
  %v717 = vpack.c.b16 %v675, %v672
  %v718 = vpack.c.b16 %v679, %v676
  %v719 = vpack.c.b16 %v680, %v677
  %v720 = vpack.c.b16 %v681, %v678
  %v721 = vpack.c.b16 %v685, %v682
  %v722 = vpack.c.b16 %v686, %v683
  %v723 = vpack.c.b16 %v687, %v684
  %v724 = vpack.c.b16 %v691, %v688
  %v725 = vpack.c.b16 %v692, %v689
  %v726 = vpack.c.b16 %v693, %v690
  %v727 = vpack.c.b16 %v697, %v694
  %v728 = vpack.c.b16 %v698, %v695
  %v729 = vpack.c.b16 %v699, %v696
  %v730 = vpack.c.b16 %v703, %v700
  %v731 = vpack.c.b16 %v704, %v701
  %v732 = vpack.c.b16 %v705, %v702
  %v733 = vpack.c.b16 %v709, %v706
  %v734 = vpack.c.b16 %v710, %v707
  %v735 = vpack.c.b16 %v711, %v708
  %760 = vmatprep.subr.bf16.mxu0 %v713
  %761 = vmatpush1.bf16.msra.mxu0 %v712
  %762 = vmatprep.subr.bf16.mxu0 %v716
  %763 = vmatpush1.bf16.msra.mxu0 %v715
  %764 = vmatprep.subr.bf16.mxu0 %v719
  %765 = vmatpush1.bf16.msra.mxu0 %v718
  %766 = vmatprep.subr.bf16.mxu0 %v722
  %767 = vmatpush1.bf16.msra.mxu0 %v721
  %768 = vmatprep.subr.bf16.mxu0 %v725
  %769 = vmatpush1.bf16.msra.mxu0 %v724
  %770 = vmatprep.subr.bf16.mxu0 %v728
  %771 = vmatpush1.bf16.msra.mxu0 %v727
  %772 = vmatprep.subr.bf16.mxu0 %v731
  %773 = vmatpush1.bf16.msra.mxu0 %v730
  %774 = vmatprep.subr.bf16.mxu0 %v734
  %775 = vmatpush1.bf16.msra.mxu0 %v733
  %776 = vmatprep.subr.bf16.mxu0 0
  %777 = vmatpush1.bf16.msra.mxu0 0
  %778 = vmatprep.subr.bf16.mxu0 0
  %779 = vmatpush1.bf16.msra.mxu0 0
  %780 = vmatprep.subr.bf16.mxu0 0
  %781 = vmatpush1.bf16.msra.mxu0 0
  %782 = vmatprep.subr.bf16.mxu0 0
  %783 = vmatpush1.bf16.msra.mxu0 0
  %784 = vmatprep.subr.bf16.mxu0 0
  %785 = vmatpush1.bf16.msra.mxu0 0
  %786 = vmatprep.subr.bf16.mxu0 0
  %787 = vmatpush1.bf16.msra.mxu0 0
  %788 = vmatprep.subr.bf16.mxu0 0
  %789 = vmatpush1.bf16.msra.mxu0 0
  %790 = vmatprep.subr.bf16.mxu0 0
  %791 = vmatpush1.bf16.msra.mxu0 0
  %792 = vmatprep.mubr.bf16.mxu0 0
  %793 = vmatmul.mubr.bf16.gmra.mrb[0].mxu0 %v631
  %v794 = vpop.f32.mrb[0].mxu0
  %v795 = vadd.f32 %v58, %v794
  %v796 = vpop.f32.mrb[0].mxu0
  %v797 = vadd.f32 %v62, %v796
  %v798 = vpop.f32.mrb[0].mxu0
  %v799 = vpop.f32.mrb[0].mxu0
  %800 = vdwg.mxu0
  %801 = vmatprep.subr.bf16.mxu0 0
  %802 = vmatpush1.bf16.msra.mxu0 %v714
  %803 = vmatprep.subr.bf16.mxu0 0
  %804 = vmatpush1.bf16.msra.mxu0 %v717
  %805 = vmatprep.subr.bf16.mxu0 0
  %806 = vmatpush1.bf16.msra.mxu0 %v720
  %807 = vmatprep.subr.bf16.mxu0 0
  %808 = vmatpush1.bf16.msra.mxu0 %v723
  %809 = vmatprep.subr.bf16.mxu0 0
  %810 = vmatpush1.bf16.msra.mxu0 %v726
  %811 = vmatprep.subr.bf16.mxu0 0
  %812 = vmatpush1.bf16.msra.mxu0 %v729
  %813 = vmatprep.subr.bf16.mxu0 0
  %814 = vmatpush1.bf16.msra.mxu0 %v732
  %815 = vmatprep.subr.bf16.mxu0 0
  %816 = vmatpush1.bf16.msra.mxu0 %v735
  %817 = vmatprep.subr.bf16.mxu0 0
  %818 = vmatpush1.bf16.msra.mxu0 0
  %819 = vmatprep.subr.bf16.mxu0 0
  %820 = vmatpush1.bf16.msra.mxu0 0
  %821 = vmatprep.subr.bf16.mxu0 0
  %822 = vmatpush1.bf16.msra.mxu0 0
  %823 = vmatprep.subr.bf16.mxu0 0
  %824 = vmatpush1.bf16.msra.mxu0 0
  %825 = vmatprep.subr.bf16.mxu0 0
  %826 = vmatpush1.bf16.msra.mxu0 0
  %827 = vmatprep.subr.bf16.mxu0 0
  %828 = vmatpush1.bf16.msra.mxu0 0
  %829 = vmatprep.subr.bf16.mxu0 0
  %830 = vmatpush1.bf16.msra.mxu0 0
  %831 = vmatprep.subr.bf16.mxu0 0
  %832 = vmatpush1.bf16.msra.mxu0 0
  %833 = vmatprep.mubr.bf16.mxu0 0
  %834 = vmatmul.mubr.bf16.gmra.mrb[0].mxu0 %v631
  %v835 = vpop.f32.mrb[0].mxu0
  %v836 = vadd.f32 %v66, %v835
  %v837 = vpop.f32.mrb[0].mxu0
  %v838 = vpop.f32.mrb[0].mxu0
  %v839 = vpop.f32.mrb[0].mxu0
  %840 = vdwg.mxu0
  %v841 = vld [vmem:[#allocation2 + $0x18] sm:$0xff]
  %v842 = vld [vmem:[#allocation2 + $0x20] sm:$0xff]
  %v843 = vld [vmem:[#allocation2 + $0x28] sm:$0xff]
  %844 = vmatprep.subr.bf16.mxu0 %v481
  %845 = vmatpush1.bf16.msra.mxu0 %v480
  %846 = vmatprep.subr.bf16.mxu0 %v484
  %847 = vmatpush1.bf16.msra.mxu0 %v483
  %848 = vmatprep.subr.bf16.mxu0 %v487
  %849 = vmatpush1.bf16.msra.mxu0 %v486
  %850 = vmatprep.subr.bf16.mxu0 %v490
  %851 = vmatpush1.bf16.msra.mxu0 %v489
  %852 = vmatprep.subr.bf16.mxu0 %v493
  %853 = vmatpush1.bf16.msra.mxu0 %v492
  %854 = vmatprep.subr.bf16.mxu0 %v496
  %855 = vmatpush1.bf16.msra.mxu0 %v495
  %856 = vmatprep.subr.bf16.mxu0 %v499
  %857 = vmatpush1.bf16.msra.mxu0 %v498
  %858 = vmatprep.subr.bf16.mxu0 %v502
  %859 = vmatpush1.bf16.msra.mxu0 %v501
  %860 = vmatprep.subr.bf16.mxu0 0
  %861 = vmatpush1.bf16.msra.mxu0 0
  %862 = vmatprep.subr.bf16.mxu0 0
  %863 = vmatpush1.bf16.msra.mxu0 0
  %864 = vmatprep.subr.bf16.mxu0 0
  %865 = vmatpush1.bf16.msra.mxu0 0
  %866 = vmatprep.subr.bf16.mxu0 0
  %867 = vmatpush1.bf16.msra.mxu0 0
  %868 = vmatprep.subr.bf16.mxu0 0
  %869 = vmatpush1.bf16.msra.mxu0 0
  %870 = vmatprep.subr.bf16.mxu0 0
  %871 = vmatpush1.bf16.msra.mxu0 0
  %872 = vmatprep.subr.bf16.mxu0 0
  %873 = vmatpush1.bf16.msra.mxu0 0
  %874 = vmatprep.subr.bf16.mxu0 0
  %875 = vmatpush1.bf16.msra.mxu0 0
  %876 = vmatprep.mubr.bf16.mxu0 0
  %877 = vmatmul.mubr.bf16.gmra.mrb[0].mxu0 %v631
  %v878 = vpop.f32.mrb[0].mxu0
  %v879 = vadd.f32 0.0, %v878
  %v880 = vpop.f32.mrb[0].mxu0
  %v881 = vadd.f32 0.0, %v880
  %v882 = vpop.f32.mrb[0].mxu0
  %v883 = vpop.f32.mrb[0].mxu0
  %884 = vdwg.mxu0
  %885 = vmatprep.subr.bf16.mxu0 0
  %886 = vmatpush1.bf16.msra.mxu0 %v482
  %887 = vmatprep.subr.bf16.mxu0 0
  %888 = vmatpush1.bf16.msra.mxu0 %v485
  %889 = vmatprep.subr.bf16.mxu0 0
  %890 = vmatpush1.bf16.msra.mxu0 %v488
  %891 = vmatprep.subr.bf16.mxu0 0
  %892 = vmatpush1.bf16.msra.mxu0 %v491
  %893 = vmatprep.subr.bf16.mxu0 0
  %894 = vmatpush1.bf16.msra.mxu0 %v494
  %895 = vmatprep.subr.bf16.mxu0 0
  %896 = vmatpush1.bf16.msra.mxu0 %v497
  %897 = vmatprep.subr.bf16.mxu0 0
  %898 = vmatpush1.bf16.msra.mxu0 %v500
  %899 = vmatprep.subr.bf16.mxu0 0
  %900 = vmatpush1.bf16.msra.mxu0 %v503
  %901 = vmatprep.subr.bf16.mxu0 0
  %902 = vmatpush1.bf16.msra.mxu0 0
  %903 = vmatprep.subr.bf16.mxu0 0
  %904 = vmatpush1.bf16.msra.mxu0 0
  %905 = vmatprep.subr.bf16.mxu0 0
  %906 = vmatpush1.bf16.msra.mxu0 0
  %907 = vmatprep.subr.bf16.mxu0 0
  %908 = vmatpush1.bf16.msra.mxu0 0
  %909 = vmatprep.subr.bf16.mxu0 0
  %910 = vmatpush1.bf16.msra.mxu0 0
  %911 = vmatprep.subr.bf16.mxu0 0
  %912 = vmatpush1.bf16.msra.mxu0 0
  %913 = vmatprep.subr.bf16.mxu0 0
  %914 = vmatpush1.bf16.msra.mxu0 0
  %915 = vmatprep.subr.bf16.mxu0 0
  %916 = vmatpush1.bf16.msra.mxu0 0
  %917 = vmatprep.mubr.bf16.mxu0 0
  %918 = vmatmul.mubr.bf16.gmra.mrb[0].mxu0 %v631
  %v919 = vpop.f32.mrb[0].mxu0
  %v920 = vadd.f32 0.0, %v919
  %v921 = vpop.f32.mrb[0].mxu0
  %v922 = vpop.f32.mrb[0].mxu0
  %v923 = vpop.f32.mrb[0].mxu0
  %924 = vdwg.mxu0
  %v925 = vadd.f32 %v841, %v879
  %v926 = vxor.u32 %v925, 2147483648
  %v927 = vmul.f32 %v926, 1.442695
  %v928 = vpow.pop %v927
  %v929 = vadd.f32 %v928, 1.0
  %v930 = vrcp.pop %v929
  %v931 = vmul.f32 1.0, %v930
  %v932 = vadd.f32 %v842, %v881
  %v933 = vxor.u32 %v932, 2147483648
  %v934 = vmul.f32 %v933, 1.442695
  %v935 = vpow.pop %v934
  %v936 = vadd.f32 %v935, 1.0
  %v937 = vrcp.pop %v936
  %v938 = vmul.f32 1.0, %v937
  %v939 = vadd.f32 %v920, %v44
  %v940 = vmul.f32 %v931, %v939
  %v941 = vadd.f32 %v843, %v940
  %v942 = vtanh.pop %v941
  %v943 = vsub.f32 1.0, %v938
  %v944 = vmul.f32 %v943, %v942
  %v945 = vmul.f32 %v938, %v630
  %v946 = vadd.f32 %v944, %v945
  %v979 = vunpack.c.l.b16 %v102
  %v980 = vunpack.c.h.b16 %v102
  %v981 = vunpack.c.l.b16 %v103
  %v982 = vunpack.c.l.b16 %v104
  %v983 = vunpack.c.h.b16 %v104
  %v984 = vunpack.c.l.b16 %v105
  %v985 = vunpack.c.l.b16 %v106
  %v986 = vunpack.c.h.b16 %v106
  %v987 = vunpack.c.l.b16 %v107
  %v988 = vunpack.c.l.b16 %v108
  %v989 = vunpack.c.h.b16 %v108
  %v990 = vunpack.c.l.b16 %v109
  %v991 = vunpack.c.l.b16 %v110
  %v992 = vunpack.c.h.b16 %v110
  %v993 = vunpack.c.l.b16 %v111
  %v994 = vunpack.c.l.b16 %v112
  %v995 = vunpack.c.h.b16 %v112
  %v996 = vunpack.c.l.b16 %v113
  %v997 = vunpack.c.l.b16 %v114
  %v998 = vunpack.c.h.b16 %v114
  %v999 = vunpack.c.l.b16 %v115
  %v1000 = vunpack.c.l.b16 %v116
  %v1001 = vunpack.c.h.b16 %v116
  %v1002 = vunpack.c.l.b16 %v117
  %v1003 = vunpack.c.l.b16 %v118
  %v1004 = vunpack.c.h.b16 %v118
  %v1005 = vunpack.c.l.b16 %v119
  %v1006 = vunpack.c.l.b16 %v120
  %v1007 = vunpack.c.h.b16 %v120
  %v1008 = vunpack.c.l.b16 %v121
  %v1009 = vunpack.c.l.b16 %v122
  %v1010 = vunpack.c.h.b16 %v122
  %v1011 = vunpack.c.l.b16 %v123
  %v1012 = vunpack.c.l.b16 %v124
  %v1013 = vunpack.c.h.b16 %v124
  %v1014 = vunpack.c.l.b16 %v125
  %v1015 = vunpack.c.l.b16 %v126
  %v1016 = vunpack.c.h.b16 %v126
  %v1017 = vunpack.c.l.b16 %v127
  %v1018 = vunpack.c.l.b16 %v128
  %v1019 = vunpack.c.h.b16 %v128
  %v1020 = vunpack.c.l.b16 %v129
  %v1021 = vunpack.c.l.b16 %v130
  %v1022 = vunpack.c.h.b16 %v130
  %v1023 = vunpack.c.l.b16 %v131
  %v1024 = vunpack.c.l.b16 %v132
  %v1025 = vunpack.c.h.b16 %v132
  %v1026 = vunpack.c.l.b16 %v133
  %v1027 = vpack.c.b16 %v982, %v979
  %v1028 = vpack.c.b16 %v983, %v980
  %v1029 = vpack.c.b16 %v984, %v981
  %v1030 = vpack.c.b16 %v988, %v985
  %v1031 = vpack.c.b16 %v989, %v986
  %v1032 = vpack.c.b16 %v990, %v987
  %v1033 = vpack.c.b16 %v994, %v991
  %v1034 = vpack.c.b16 %v995, %v992
  %v1035 = vpack.c.b16 %v996, %v993
  %v1036 = vpack.c.b16 %v1000, %v997
  %v1037 = vpack.c.b16 %v1001, %v998
  %v1038 = vpack.c.b16 %v1002, %v999
  %v1039 = vpack.c.b16 %v1006, %v1003
  %v1040 = vpack.c.b16 %v1007, %v1004
  %v1041 = vpack.c.b16 %v1008, %v1005
  %v1042 = vpack.c.b16 %v1012, %v1009
  %v1043 = vpack.c.b16 %v1013, %v1010
  %v1044 = vpack.c.b16 %v1014, %v1011
  %v1045 = vpack.c.b16 %v1018, %v1015
  %v1046 = vpack.c.b16 %v1019, %v1016
  %v1047 = vpack.c.b16 %v1020, %v1017
  %v1048 = vpack.c.b16 %v1024, %v1021
  %v1049 = vpack.c.b16 %v1025, %v1022
  %v1050 = vpack.c.b16 %v1026, %v1023
  %1075 = vmatprep.subr.bf16.mxu0 %v1028
  %1076 = vmatpush1.bf16.msra.mxu0 %v1027
  %1077 = vmatprep.subr.bf16.mxu0 %v1031
  %1078 = vmatpush1.bf16.msra.mxu0 %v1030
  %1079 = vmatprep.subr.bf16.mxu0 %v1034
  %1080 = vmatpush1.bf16.msra.mxu0 %v1033
  %1081 = vmatprep.subr.bf16.mxu0 %v1037
  %1082 = vmatpush1.bf16.msra.mxu0 %v1036
  %1083 = vmatprep.subr.bf16.mxu0 %v1040
  %1084 = vmatpush1.bf16.msra.mxu0 %v1039
  %1085 = vmatprep.subr.bf16.mxu0 %v1043
  %1086 = vmatpush1.bf16.msra.mxu0 %v1042
  %1087 = vmatprep.subr.bf16.mxu0 %v1046
  %1088 = vmatpush1.bf16.msra.mxu0 %v1045
  %1089 = vmatprep.subr.bf16.mxu0 %v1049
  %1090 = vmatpush1.bf16.msra.mxu0 %v1048
  %1091 = vmatprep.subr.bf16.mxu0 0
  %1092 = vmatpush1.bf16.msra.mxu0 0
  %1093 = vmatprep.subr.bf16.mxu0 0
  %1094 = vmatpush1.bf16.msra.mxu0 0
  %1095 = vmatprep.subr.bf16.mxu0 0
  %1096 = vmatpush1.bf16.msra.mxu0 0
  %1097 = vmatprep.subr.bf16.mxu0 0
  %1098 = vmatpush1.bf16.msra.mxu0 0
  %1099 = vmatprep.subr.bf16.mxu0 0
  %1100 = vmatpush1.bf16.msra.mxu0 0
  %1101 = vmatprep.subr.bf16.mxu0 0
  %1102 = vmatpush1.bf16.msra.mxu0 0
  %1103 = vmatprep.subr.bf16.mxu0 0
  %1104 = vmatpush1.bf16.msra.mxu0 0
  %1105 = vmatprep.subr.bf16.mxu0 0
  %1106 = vmatpush1.bf16.msra.mxu0 0
  %1107 = vmatprep.mubr.bf16.mxu0 0
  %1108 = vmatmul.mubr.bf16.gmra.mrb[0].mxu0 0
  %v1109 = vpop.f32.mrb[0].mxu0
  %v1110 = vadd.f32 0.0, %v1109
  %v1111 = vpop.f32.mrb[0].mxu0
  %v1112 = vadd.f32 0.0, %v1111
  %v1113 = vpop.f32.mrb[0].mxu0
  %v1114 = vpop.f32.mrb[0].mxu0
  %1115 = vdwg.mxu0
  %1116 = vmatprep.subr.bf16.mxu0 0
  %1117 = vmatpush1.bf16.msra.mxu0 %v1029
  %1118 = vmatprep.subr.bf16.mxu0 0
  %1119 = vmatpush1.bf16.msra.mxu0 %v1032
  %1120 = vmatprep.subr.bf16.mxu0 0
  %1121 = vmatpush1.bf16.msra.mxu0 %v1035
  %1122 = vmatprep.subr.bf16.mxu0 0
  %1123 = vmatpush1.bf16.msra.mxu0 %v1038
  %1124 = vmatprep.subr.bf16.mxu0 0
  %1125 = vmatpush1.bf16.msra.mxu0 %v1041
  %1126 = vmatprep.subr.bf16.mxu0 0
  %1127 = vmatpush1.bf16.msra.mxu0 %v1044
  %1128 = vmatprep.subr.bf16.mxu0 0
  %1129 = vmatpush1.bf16.msra.mxu0 %v1047
  %1130 = vmatprep.subr.bf16.mxu0 0
  %1131 = vmatpush1.bf16.msra.mxu0 %v1050
  %1132 = vmatprep.subr.bf16.mxu0 0
  %1133 = vmatpush1.bf16.msra.mxu0 0
  %1134 = vmatprep.subr.bf16.mxu0 0
  %1135 = vmatpush1.bf16.msra.mxu0 0
  %1136 = vmatprep.subr.bf16.mxu0 0
  %1137 = vmatpush1.bf16.msra.mxu0 0
  %1138 = vmatprep.subr.bf16.mxu0 0
  %1139 = vmatpush1.bf16.msra.mxu0 0
  %1140 = vmatprep.subr.bf16.mxu0 0
  %1141 = vmatpush1.bf16.msra.mxu0 0
  %1142 = vmatprep.subr.bf16.mxu0 0
  %1143 = vmatpush1.bf16.msra.mxu0 0
  %1144 = vmatprep.subr.bf16.mxu0 0
  %1145 = vmatpush1.bf16.msra.mxu0 0
  %1146 = vmatprep.subr.bf16.mxu0 0
  %1147 = vmatpush1.bf16.msra.mxu0 0
  %1148 = vmatprep.mubr.bf16.mxu0 0
  %1149 = vmatmul.mubr.bf16.gmra.mrb[0].mxu0 0
  %v1150 = vpop.f32.mrb[0].mxu0
  %v1151 = vadd.f32 0.0, %v1150
  %v1152 = vpop.f32.mrb[0].mxu0
  %v1153 = vpop.f32.mrb[0].mxu0
  %v1154 = vpop.f32.mrb[0].mxu0
  %1155 = vdwg.mxu0
  %v1156 = vadd.f32 %v795, %v1110
  %v1157 = vxor.u32 %v1156, 2147483648
  %v1158 = vmul.f32 %v1157, 1.442695
  %v1159 = vpow.pop %v1158
  %v1160 = vadd.f32 %v1159, 1.0
  %v1161 = vrcp.pop %v1160
  %v1162 = vmul.f32 1.0, %v1161
  %v1163 = vadd.f32 %v797, %v1112
  %v1164 = vxor.u32 %v1163, 2147483648
  %v1165 = vmul.f32 %v1164, 1.442695
  %v1166 = vpow.pop %v1165
  %v1167 = vadd.f32 %v1166, 1.0
  %v1168 = vrcp.pop %v1167
  %v1169 = vmul.f32 1.0, %v1168
  %v1170 = vadd.f32 %v1151, %v51
  %v1171 = vmul.f32 %v1162, %v1170
  %v1172 = vadd.f32 %v836, %v1171
  %v1173 = vtanh.pop %v1172
  %v1174 = vsub.f32 1.0, %v1169
  %v1175 = vmul.f32 %v1174, %v1173
  %v1176 = vmul.f32 %v1169, 0.0
  %v1177 = vadd.f32 %v1175, %v1176
  %v1178 = vpack.c.bf16 %v946, %v946
  %1179 = vmatprep.subr.bf16.mxu0 %v713
  %1180 = vmatpush1.bf16.msra.mxu0 %v712
  %1181 = vmatprep.subr.bf16.mxu0 %v716
  %1182 = vmatpush1.bf16.msra.mxu0 %v715
  %1183 = vmatprep.subr.bf16.mxu0 %v719
  %1184 = vmatpush1.bf16.msra.mxu0 %v718
  %1185 = vmatprep.subr.bf16.mxu0 %v722
  %1186 = vmatpush1.bf16.msra.mxu0 %v721
  %1187 = vmatprep.subr.bf16.mxu0 %v725
  %1188 = vmatpush1.bf16.msra.mxu0 %v724
  %1189 = vmatprep.subr.bf16.mxu0 %v728
  %1190 = vmatpush1.bf16.msra.mxu0 %v727
  %1191 = vmatprep.subr.bf16.mxu0 %v731
  %1192 = vmatpush1.bf16.msra.mxu0 %v730
  %1193 = vmatprep.subr.bf16.mxu0 %v734
  %1194 = vmatpush1.bf16.msra.mxu0 %v733
  %1195 = vmatprep.subr.bf16.mxu0 0
  %1196 = vmatpush1.bf16.msra.mxu0 0
  %1197 = vmatprep.subr.bf16.mxu0 0
  %1198 = vmatpush1.bf16.msra.mxu0 0
  %1199 = vmatprep.subr.bf16.mxu0 0
  %1200 = vmatpush1.bf16.msra.mxu0 0
  %1201 = vmatprep.subr.bf16.mxu0 0
  %1202 = vmatpush1.bf16.msra.mxu0 0
  %1203 = vmatprep.subr.bf16.mxu0 0
  %1204 = vmatpush1.bf16.msra.mxu0 0
  %1205 = vmatprep.subr.bf16.mxu0 0
  %1206 = vmatpush1.bf16.msra.mxu0 0
  %1207 = vmatprep.subr.bf16.mxu0 0
  %1208 = vmatpush1.bf16.msra.mxu0 0
  %1209 = vmatprep.subr.bf16.mxu0 0
  %1210 = vmatpush1.bf16.msra.mxu0 0
  %1211 = vmatprep.mubr.bf16.mxu0 0
  %1212 = vmatmul.mubr.bf16.gmra.mrb[0].mxu0 %v1178
  %v1213 = vpop.f32.mrb[0].mxu0
  %v1214 = vadd.f32 %v58, %v1213
  %v1215 = vpop.f32.mrb[0].mxu0
  %v1216 = vadd.f32 %v62, %v1215
  %v1217 = vpop.f32.mrb[0].mxu0
  %v1218 = vpop.f32.mrb[0].mxu0
  %1219 = vdwg.mxu0
  %1220 = vmatprep.subr.bf16.mxu0 0
  %1221 = vmatpush1.bf16.msra.mxu0 %v714
  %1222 = vmatprep.subr.bf16.mxu0 0
  %1223 = vmatpush1.bf16.msra.mxu0 %v717
  %1224 = vmatprep.subr.bf16.mxu0 0
  %1225 = vmatpush1.bf16.msra.mxu0 %v720
  %1226 = vmatprep.subr.bf16.mxu0 0
  %1227 = vmatpush1.bf16.msra.mxu0 %v723
  %1228 = vmatprep.subr.bf16.mxu0 0
  %1229 = vmatpush1.bf16.msra.mxu0 %v726
  %1230 = vmatprep.subr.bf16.mxu0 0
  %1231 = vmatpush1.bf16.msra.mxu0 %v729
  %1232 = vmatprep.subr.bf16.mxu0 0
  %1233 = vmatpush1.bf16.msra.mxu0 %v732
  %1234 = vmatprep.subr.bf16.mxu0 0
  %1235 = vmatpush1.bf16.msra.mxu0 %v735
  %1236 = vmatprep.subr.bf16.mxu0 0
  %1237 = vmatpush1.bf16.msra.mxu0 0
  %1238 = vmatprep.subr.bf16.mxu0 0
  %1239 = vmatpush1.bf16.msra.mxu0 0
  %1240 = vmatprep.subr.bf16.mxu0 0
  %1241 = vmatpush1.bf16.msra.mxu0 0
  %1242 = vmatprep.subr.bf16.mxu0 0
  %1243 = vmatpush1.bf16.msra.mxu0 0
  %1244 = vmatprep.subr.bf16.mxu0 0
  %1245 = vmatpush1.bf16.msra.mxu0 0
  %1246 = vmatprep.subr.bf16.mxu0 0
  %1247 = vmatpush1.bf16.msra.mxu0 0
  %1248 = vmatprep.subr.bf16.mxu0 0
  %1249 = vmatpush1.bf16.msra.mxu0 0
  %1250 = vmatprep.subr.bf16.mxu0 0
  %1251 = vmatpush1.bf16.msra.mxu0 0
  %1252 = vmatprep.mubr.bf16.mxu0 0
  %1253 = vmatmul.mubr.bf16.gmra.mrb[0].mxu0 %v1178
  %v1254 = vpop.f32.mrb[0].mxu0
  %v1255 = vadd.f32 %v66, %v1254
  %v1256 = vpop.f32.mrb[0].mxu0
  %v1257 = vpop.f32.mrb[0].mxu0
  %v1258 = vpop.f32.mrb[0].mxu0
  %1259 = vdwg.mxu0
  %v1260 = vld [vmem:[#allocation2 + $0x30] sm:$0xff]
  %v1261 = vld [vmem:[#allocation2 + $0x38] sm:$0xff]
  %v1262 = vld [vmem:[#allocation2 + $0x40] sm:$0xff]
  %1263 = vmatprep.subr.bf16.mxu0 %v481
  %1264 = vmatpush1.bf16.msra.mxu0 %v480
  %1265 = vmatprep.subr.bf16.mxu0 %v484
  %1266 = vmatpush1.bf16.msra.mxu0 %v483
  %1267 = vmatprep.subr.bf16.mxu0 %v487
  %1268 = vmatpush1.bf16.msra.mxu0 %v486
  %1269 = vmatprep.subr.bf16.mxu0 %v490
  %1270 = vmatpush1.bf16.msra.mxu0 %v489
  %1271 = vmatprep.subr.bf16.mxu0 %v493
  %1272 = vmatpush1.bf16.msra.mxu0 %v492
  %1273 = vmatprep.subr.bf16.mxu0 %v496
  %1274 = vmatpush1.bf16.msra.mxu0 %v495
  %1275 = vmatprep.subr.bf16.mxu0 %v499
  %1276 = vmatpush1.bf16.msra.mxu0 %v498
  %1277 = vmatprep.subr.bf16.mxu0 %v502
  %1278 = vmatpush1.bf16.msra.mxu0 %v501
  %1279 = vmatprep.subr.bf16.mxu0 0
  %1280 = vmatpush1.bf16.msra.mxu0 0
  %1281 = vmatprep.subr.bf16.mxu0 0
  %1282 = vmatpush1.bf16.msra.mxu0 0
  %1283 = vmatprep.subr.bf16.mxu0 0
  %1284 = vmatpush1.bf16.msra.mxu0 0
  %1285 = vmatprep.subr.bf16.mxu0 0
  %1286 = vmatpush1.bf16.msra.mxu0 0
  %1287 = vmatprep.subr.bf16.mxu0 0
  %1288 = vmatpush1.bf16.msra.mxu0 0
  %1289 = vmatprep.subr.bf16.mxu0 0
  %1290 = vmatpush1.bf16.msra.mxu0 0
  %1291 = vmatprep.subr.bf16.mxu0 0
  %1292 = vmatpush1.bf16.msra.mxu0 0
  %1293 = vmatprep.subr.bf16.mxu0 0
  %1294 = vmatpush1.bf16.msra.mxu0 0
  %1295 = vmatprep.mubr.bf16.mxu0 0
  %1296 = vmatmul.mubr.bf16.gmra.mrb[0].mxu0 %v1178
  %v1297 = vpop.f32.mrb[0].mxu0
  %v1298 = vadd.f32 0.0, %v1297
  %v1299 = vpop.f32.mrb[0].mxu0
  %v1300 = vadd.f32 0.0, %v1299
  %v1301 = vpop.f32.mrb[0].mxu0
  %v1302 = vpop.f32.mrb[0].mxu0
  %1303 = vdwg.mxu0
  %1304 = vmatprep.subr.bf16.mxu0 0
  %1305 = vmatpush1.bf16.msra.mxu0 %v482
  %1306 = vmatprep.subr.bf16.mxu0 0
  %1307 = vmatpush1.bf16.msra.mxu0 %v485
  %1308 = vmatprep.subr.bf16.mxu0 0
  %1309 = vmatpush1.bf16.msra.mxu0 %v488
  %1310 = vmatprep.subr.bf16.mxu0 0
  %1311 = vmatpush1.bf16.msra.mxu0 %v491
  %1312 = vmatprep.subr.bf16.mxu0 0
  %1313 = vmatpush1.bf16.msra.mxu0 %v494
  %1314 = vmatprep.subr.bf16.mxu0 0
  %1315 = vmatpush1.bf16.msra.mxu0 %v497
  %1316 = vmatprep.subr.bf16.mxu0 0
  %1317 = vmatpush1.bf16.msra.mxu0 %v500
  %1318 = vmatprep.subr.bf16.mxu0 0
  %1319 = vmatpush1.bf16.msra.mxu0 %v503
  %1320 = vmatprep.subr.bf16.mxu0 0
  %1321 = vmatpush1.bf16.msra.mxu0 0
  %1322 = vmatprep.subr.bf16.mxu0 0
  %1323 = vmatpush1.bf16.msra.mxu0 0
  %1324 = vmatprep.subr.bf16.mxu0 0
  %1325 = vmatpush1.bf16.msra.mxu0 0
  %1326 = vmatprep.subr.bf16.mxu0 0
  %1327 = vmatpush1.bf16.msra.mxu0 0
  %1328 = vmatprep.subr.bf16.mxu0 0
  %1329 = vmatpush1.bf16.msra.mxu0 0
  %1330 = vmatprep.subr.bf16.mxu0 0
  %1331 = vmatpush1.bf16.msra.mxu0 0
  %1332 = vmatprep.subr.bf16.mxu0 0
  %1333 = vmatpush1.bf16.msra.mxu0 0
  %1334 = vmatprep.subr.bf16.mxu0 0
  %1335 = vmatpush1.bf16.msra.mxu0 0
  %1336 = vmatprep.mubr.bf16.mxu0 0
  %1337 = vmatmul.mubr.bf16.gmra.mrb[0].mxu0 %v1178
  %v1338 = vpop.f32.mrb[0].mxu0
  %v1339 = vadd.f32 0.0, %v1338
  %v1340 = vpop.f32.mrb[0].mxu0
  %v1341 = vpop.f32.mrb[0].mxu0
  %v1342 = vpop.f32.mrb[0].mxu0
  %1343 = vdwg.mxu0
  %v1344 = vadd.f32 %v1260, %v1298
  %v1345 = vxor.u32 %v1344, 2147483648
  %v1346 = vmul.f32 %v1345, 1.442695
  %v1347 = vpow.pop %v1346
  %v1348 = vadd.f32 %v1347, 1.0
  %v1349 = vrcp.pop %v1348
  %v1350 = vmul.f32 1.0, %v1349
  %v1351 = vadd.f32 %v1261, %v1300
  %v1352 = vxor.u32 %v1351, 2147483648
  %v1353 = vmul.f32 %v1352, 1.442695
  %v1354 = vpow.pop %v1353
  %v1355 = vadd.f32 %v1354, 1.0
  %v1356 = vrcp.pop %v1355
  %v1357 = vmul.f32 1.0, %v1356
  %v1358 = vadd.f32 %v1339, %v44
  %v1359 = vmul.f32 %v1350, %v1358
  %v1360 = vadd.f32 %v1262, %v1359
  %v1361 = vtanh.pop %v1360
  %v1362 = vsub.f32 1.0, %v1357
  %v1363 = vmul.f32 %v1362, %v1361
  %v1364 = vmul.f32 %v1357, %v946
  %v1365 = vadd.f32 %v1363, %v1364
  %v1366 = vpack.c.bf16 %v1177, %v1177
  %1367 = vmatprep.subr.bf16.mxu0 %v1028
  %1368 = vmatpush1.bf16.msra.mxu0 %v1027
  %1369 = vmatprep.subr.bf16.mxu0 %v1031
  %1370 = vmatpush1.bf16.msra.mxu0 %v1030
  %1371 = vmatprep.subr.bf16.mxu0 %v1034
  %1372 = vmatpush1.bf16.msra.mxu0 %v1033
  %1373 = vmatprep.subr.bf16.mxu0 %v1037
  %1374 = vmatpush1.bf16.msra.mxu0 %v1036
  %1375 = vmatprep.subr.bf16.mxu0 %v1040
  %1376 = vmatpush1.bf16.msra.mxu0 %v1039
  %1377 = vmatprep.subr.bf16.mxu0 %v1043
  %1378 = vmatpush1.bf16.msra.mxu0 %v1042
  %1379 = vmatprep.subr.bf16.mxu0 %v1046
  %1380 = vmatpush1.bf16.msra.mxu0 %v1045
  %1381 = vmatprep.subr.bf16.mxu0 %v1049
  %1382 = vmatpush1.bf16.msra.mxu0 %v1048
  %1383 = vmatprep.subr.bf16.mxu0 0
  %1384 = vmatpush1.bf16.msra.mxu0 0
  %1385 = vmatprep.subr.bf16.mxu0 0
  %1386 = vmatpush1.bf16.msra.mxu0 0
  %1387 = vmatprep.subr.bf16.mxu0 0
  %1388 = vmatpush1.bf16.msra.mxu0 0
  %1389 = vmatprep.subr.bf16.mxu0 0
  %1390 = vmatpush1.bf16.msra.mxu0 0
  %1391 = vmatprep.subr.bf16.mxu0 0
  %1392 = vmatpush1.bf16.msra.mxu0 0
  %1393 = vmatprep.subr.bf16.mxu0 0
  %1394 = vmatpush1.bf16.msra.mxu0 0
  %1395 = vmatprep.subr.bf16.mxu0 0
  %1396 = vmatpush1.bf16.msra.mxu0 0
  %1397 = vmatprep.subr.bf16.mxu0 0
  %1398 = vmatpush1.bf16.msra.mxu0 0
  %1399 = vmatprep.mubr.bf16.mxu0 0
  %1400 = vmatmul.mubr.bf16.gmra.mrb[0].mxu0 %v1366
  %v1401 = vpop.f32.mrb[0].mxu0
  %v1402 = vadd.f32 0.0, %v1401
  %v1403 = vpop.f32.mrb[0].mxu0
  %v1404 = vadd.f32 0.0, %v1403
  %v1405 = vpop.f32.mrb[0].mxu0
  %v1406 = vpop.f32.mrb[0].mxu0
  %1407 = vdwg.mxu0
  %1408 = vmatprep.subr.bf16.mxu0 0
  %1409 = vmatpush1.bf16.msra.mxu0 %v1029
  %1410 = vmatprep.subr.bf16.mxu0 0
  %1411 = vmatpush1.bf16.msra.mxu0 %v1032
  %1412 = vmatprep.subr.bf16.mxu0 0
  %1413 = vmatpush1.bf16.msra.mxu0 %v1035
  %1414 = vmatprep.subr.bf16.mxu0 0
  %1415 = vmatpush1.bf16.msra.mxu0 %v1038
  %1416 = vmatprep.subr.bf16.mxu0 0
  %1417 = vmatpush1.bf16.msra.mxu0 %v1041
  %1418 = vmatprep.subr.bf16.mxu0 0
  %1419 = vmatpush1.bf16.msra.mxu0 %v1044
  %1420 = vmatprep.subr.bf16.mxu0 0
  %1421 = vmatpush1.bf16.msra.mxu0 %v1047
  %1422 = vmatprep.subr.bf16.mxu0 0
  %1423 = vmatpush1.bf16.msra.mxu0 %v1050
  %1424 = vmatprep.subr.bf16.mxu0 0
  %1425 = vmatpush1.bf16.msra.mxu0 0
  %1426 = vmatprep.subr.bf16.mxu0 0
  %1427 = vmatpush1.bf16.msra.mxu0 0
  %1428 = vmatprep.subr.bf16.mxu0 0
  %1429 = vmatpush1.bf16.msra.mxu0 0
  %1430 = vmatprep.subr.bf16.mxu0 0
  %1431 = vmatpush1.bf16.msra.mxu0 0
  %1432 = vmatprep.subr.bf16.mxu0 0
  %1433 = vmatpush1.bf16.msra.mxu0 0
  %1434 = vmatprep.subr.bf16.mxu0 0
  %1435 = vmatpush1.bf16.msra.mxu0 0
  %1436 = vmatprep.subr.bf16.mxu0 0
  %1437 = vmatpush1.bf16.msra.mxu0 0
  %1438 = vmatprep.subr.bf16.mxu0 0
  %1439 = vmatpush1.bf16.msra.mxu0 0
  %1440 = vmatprep.mubr.bf16.mxu0 0
  %1441 = vmatmul.mubr.bf16.gmra.mrb[0].mxu0 %v1366
  %v1442 = vpop.f32.mrb[0].mxu0
  %v1443 = vadd.f32 0.0, %v1442
  %v1444 = vpop.f32.mrb[0].mxu0
  %v1445 = vpop.f32.mrb[0].mxu0
  %v1446 = vpop.f32.mrb[0].mxu0
  %1447 = vdwg.mxu0
  %v1448 = vadd.f32 %v1214, %v1402
  %v1449 = vxor.u32 %v1448, 2147483648
  %v1450 = vmul.f32 %v1449, 1.442695
  %v1451 = vpow.pop %v1450
  %v1452 = vadd.f32 %v1451, 1.0
  %v1453 = vrcp.pop %v1452
  %v1454 = vmul.f32 1.0, %v1453
  %v1455 = vadd.f32 %v1216, %v1404
  %v1456 = vxor.u32 %v1455, 2147483648
  %v1457 = vmul.f32 %v1456, 1.442695
  %v1458 = vpow.pop %v1457
  %v1459 = vadd.f32 %v1458, 1.0
  %v1460 = vrcp.pop %v1459
  %v1461 = vmul.f32 1.0, %v1460
  %v1462 = vadd.f32 %v1443, %v51
  %v1463 = vmul.f32 %v1454, %v1462
  %v1464 = vadd.f32 %v1255, %v1463
  %v1465 = vtanh.pop %v1464
  %v1466 = vsub.f32 1.0, %v1461
  %v1467 = vmul.f32 %v1466, %v1465
  %v1468 = vmul.f32 %v1461, %v1177
  %v1469 = vadd.f32 %v1467, %v1468
  %v1470 = vpack.c.bf16 %v1365, %v1365
  %1471 = vmatprep.subr.bf16.mxu0 %v713
  %1472 = vmatpush1.bf16.msra.mxu0 %v712
  %1473 = vmatprep.subr.bf16.mxu0 %v716
  %1474 = vmatpush1.bf16.msra.mxu0 %v715
  %1475 = vmatprep.subr.bf16.mxu0 %v719
  %1476 = vmatpush1.bf16.msra.mxu0 %v718
  %1477 = vmatprep.subr.bf16.mxu0 %v722
  %1478 = vmatpush1.bf16.msra.mxu0 %v721
  %1479 = vmatprep.subr.bf16.mxu0 %v725
  %1480 = vmatpush1.bf16.msra.mxu0 %v724
  %1481 = vmatprep.subr.bf16.mxu0 %v728
  %1482 = vmatpush1.bf16.msra.mxu0 %v727
  %1483 = vmatprep.subr.bf16.mxu0 %v731
  %1484 = vmatpush1.bf16.msra.mxu0 %v730
  %1485 = vmatprep.subr.bf16.mxu0 %v734
  %1486 = vmatpush1.bf16.msra.mxu0 %v733
  %1487 = vmatprep.subr.bf16.mxu0 0
  %1488 = vmatpush1.bf16.msra.mxu0 0
  %1489 = vmatprep.subr.bf16.mxu0 0
  %1490 = vmatpush1.bf16.msra.mxu0 0
  %1491 = vmatprep.subr.bf16.mxu0 0
  %1492 = vmatpush1.bf16.msra.mxu0 0
  %1493 = vmatprep.subr.bf16.mxu0 0
  %1494 = vmatpush1.bf16.msra.mxu0 0
  %1495 = vmatprep.subr.bf16.mxu0 0
  %1496 = vmatpush1.bf16.msra.mxu0 0
  %1497 = vmatprep.subr.bf16.mxu0 0
  %1498 = vmatpush1.bf16.msra.mxu0 0
  %1499 = vmatprep.subr.bf16.mxu0 0
  %1500 = vmatpush1.bf16.msra.mxu0 0
  %1501 = vmatprep.subr.bf16.mxu0 0
  %1502 = vmatpush1.bf16.msra.mxu0 0
  %1503 = vmatprep.mubr.bf16.mxu0 0
  %1504 = vmatmul.mubr.bf16.gmra.mrb[0].mxu0 %v1470
  %v1505 = vpop.f32.mrb[0].mxu0
  %v1506 = vadd.f32 %v58, %v1505
  %v1507 = vpop.f32.mrb[0].mxu0
  %v1508 = vadd.f32 %v62, %v1507
  %v1509 = vpop.f32.mrb[0].mxu0
  %v1510 = vpop.f32.mrb[0].mxu0
  %1511 = vdwg.mxu0
  %1512 = vmatprep.subr.bf16.mxu0 0
  %1513 = vmatpush1.bf16.msra.mxu0 %v714
  %1514 = vmatprep.subr.bf16.mxu0 0
  %1515 = vmatpush1.bf16.msra.mxu0 %v717
  %1516 = vmatprep.subr.bf16.mxu0 0
  %1517 = vmatpush1.bf16.msra.mxu0 %v720
  %1518 = vmatprep.subr.bf16.mxu0 0
  %1519 = vmatpush1.bf16.msra.mxu0 %v723
  %1520 = vmatprep.subr.bf16.mxu0 0
  %1521 = vmatpush1.bf16.msra.mxu0 %v726
  %1522 = vmatprep.subr.bf16.mxu0 0
  %1523 = vmatpush1.bf16.msra.mxu0 %v729
  %1524 = vmatprep.subr.bf16.mxu0 0
  %1525 = vmatpush1.bf16.msra.mxu0 %v732
  %1526 = vmatprep.subr.bf16.mxu0 0
  %1527 = vmatpush1.bf16.msra.mxu0 %v735
  %1528 = vmatprep.subr.bf16.mxu0 0
  %1529 = vmatpush1.bf16.msra.mxu0 0
  %1530 = vmatprep.subr.bf16.mxu0 0
  %1531 = vmatpush1.bf16.msra.mxu0 0
  %1532 = vmatprep.subr.bf16.mxu0 0
  %1533 = vmatpush1.bf16.msra.mxu0 0
  %1534 = vmatprep.subr.bf16.mxu0 0
  %1535 = vmatpush1.bf16.msra.mxu0 0
  %1536 = vmatprep.subr.bf16.mxu0 0
  %1537 = vmatpush1.bf16.msra.mxu0 0
  %1538 = vmatprep.subr.bf16.mxu0 0
  %1539 = vmatpush1.bf16.msra.mxu0 0
  %1540 = vmatprep.subr.bf16.mxu0 0
  %1541 = vmatpush1.bf16.msra.mxu0 0
  %1542 = vmatprep.subr.bf16.mxu0 0
  %1543 = vmatpush1.bf16.msra.mxu0 0
  %1544 = vmatprep.mubr.bf16.mxu0 0
  %1545 = vmatmul.mubr.bf16.gmra.mrb[0].mxu0 %v1470
  %v1546 = vpop.f32.mrb[0].mxu0
  %v1547 = vadd.f32 %v66, %v1546
  %v1548 = vpop.f32.mrb[0].mxu0
  %v1549 = vpop.f32.mrb[0].mxu0
  %v1550 = vpop.f32.mrb[0].mxu0
  %1551 = vdwg.mxu0
  %v1552 = vld [vmem:[#allocation2 + $0x48] sm:$0xff]
  %v1553 = vld [vmem:[#allocation2 + $0x50] sm:$0xff]
  %v1554 = vld [vmem:[#allocation2 + $0x58] sm:$0xff]
  %1555 = vmatprep.subr.bf16.mxu0 %v481
  %1556 = vmatpush1.bf16.msra.mxu0 %v480
  %1557 = vmatprep.subr.bf16.mxu0 %v484
  %1558 = vmatpush1.bf16.msra.mxu0 %v483
  %1559 = vmatprep.subr.bf16.mxu0 %v487
  %1560 = vmatpush1.bf16.msra.mxu0 %v486
  %1561 = vmatprep.subr.bf16.mxu0 %v490
  %1562 = vmatpush1.bf16.msra.mxu0 %v489
  %1563 = vmatprep.subr.bf16.mxu0 %v493
  %1564 = vmatpush1.bf16.msra.mxu0 %v492
  %1565 = vmatprep.subr.bf16.mxu0 %v496
  %1566 = vmatpush1.bf16.msra.mxu0 %v495
  %1567 = vmatprep.subr.bf16.mxu0 %v499
  %1568 = vmatpush1.bf16.msra.mxu0 %v498
  %1569 = vmatprep.subr.bf16.mxu0 %v502
  %1570 = vmatpush1.bf16.msra.mxu0 %v501
  %1571 = vmatprep.subr.bf16.mxu0 0
  %1572 = vmatpush1.bf16.msra.mxu0 0
  %1573 = vmatprep.subr.bf16.mxu0 0
  %1574 = vmatpush1.bf16.msra.mxu0 0
  %1575 = vmatprep.subr.bf16.mxu0 0
  %1576 = vmatpush1.bf16.msra.mxu0 0
  %1577 = vmatprep.subr.bf16.mxu0 0
  %1578 = vmatpush1.bf16.msra.mxu0 0
  %1579 = vmatprep.subr.bf16.mxu0 0
  %1580 = vmatpush1.bf16.msra.mxu0 0
  %1581 = vmatprep.subr.bf16.mxu0 0
  %1582 = vmatpush1.bf16.msra.mxu0 0
  %1583 = vmatprep.subr.bf16.mxu0 0
  %1584 = vmatpush1.bf16.msra.mxu0 0
  %1585 = vmatprep.subr.bf16.mxu0 0
  %1586 = vmatpush1.bf16.msra.mxu0 0
  %1587 = vmatprep.mubr.bf16.mxu0 0
  %1588 = vmatmul.mubr.bf16.gmra.mrb[0].mxu0 %v1470
  %v1589 = vpop.f32.mrb[0].mxu0
  %v1590 = vadd.f32 0.0, %v1589
  %v1591 = vpop.f32.mrb[0].mxu0
  %v1592 = vadd.f32 0.0, %v1591
  %v1593 = vpop.f32.mrb[0].mxu0
  %v1594 = vpop.f32.mrb[0].mxu0
  %1595 = vdwg.mxu0
  %1596 = vmatprep.subr.bf16.mxu0 0
  %1597 = vmatpush1.bf16.msra.mxu0 %v482
  %1598 = vmatprep.subr.bf16.mxu0 0
  %1599 = vmatpush1.bf16.msra.mxu0 %v485
  %1600 = vmatprep.subr.bf16.mxu0 0
  %1601 = vmatpush1.bf16.msra.mxu0 %v488
  %1602 = vmatprep.subr.bf16.mxu0 0
  %1603 = vmatpush1.bf16.msra.mxu0 %v491
  %1604 = vmatprep.subr.bf16.mxu0 0
  %1605 = vmatpush1.bf16.msra.mxu0 %v494
  %1606 = vmatprep.subr.bf16.mxu0 0
  %1607 = vmatpush1.bf16.msra.mxu0 %v497
  %1608 = vmatprep.subr.bf16.mxu0 0
  %1609 = vmatpush1.bf16.msra.mxu0 %v500
  %1610 = vmatprep.subr.bf16.mxu0 0
  %1611 = vmatpush1.bf16.msra.mxu0 %v503
  %1612 = vmatprep.subr.bf16.mxu0 0
  %1613 = vmatpush1.bf16.msra.mxu0 0
  %1614 = vmatprep.subr.bf16.mxu0 0
  %1615 = vmatpush1.bf16.msra.mxu0 0
  %1616 = vmatprep.subr.bf16.mxu0 0
  %1617 = vmatpush1.bf16.msra.mxu0 0
  %1618 = vmatprep.subr.bf16.mxu0 0
  %1619 = vmatpush1.bf16.msra.mxu0 0
  %1620 = vmatprep.subr.bf16.mxu0 0
  %1621 = vmatpush1.bf16.msra.mxu0 0
  %1622 = vmatprep.subr.bf16.mxu0 0
  %1623 = vmatpush1.bf16.msra.mxu0 0
  %1624 = vmatprep.subr.bf16.mxu0 0
  %1625 = vmatpush1.bf16.msra.mxu0 0
  %1626 = vmatprep.subr.bf16.mxu0 0
  %1627 = vmatpush1.bf16.msra.mxu0 0
  %1628 = vmatprep.mubr.bf16.mxu0 0
  %1629 = vmatmul.mubr.bf16.gmra.mrb[0].mxu0 %v1470
  %v1630 = vpop.f32.mrb[0].mxu0
  %v1631 = vadd.f32 0.0, %v1630
  %v1632 = vpop.f32.mrb[0].mxu0
  %v1633 = vpop.f32.mrb[0].mxu0
  %v1634 = vpop.f32.mrb[0].mxu0
  %1635 = vdwg.mxu0
  %v1636 = vadd.f32 %v1552, %v1590
  %v1637 = vxor.u32 %v1636, 2147483648
  %v1638 = vmul.f32 %v1637, 1.442695
  %v1639 = vpow.pop %v1638
  %v1640 = vadd.f32 %v1639, 1.0
  %v1641 = vrcp.pop %v1640
  %v1642 = vmul.f32 1.0, %v1641
  %v1643 = vadd.f32 %v1553, %v1592
  %v1644 = vxor.u32 %v1643, 2147483648
  %v1645 = vmul.f32 %v1644, 1.442695
  %v1646 = vpow.pop %v1645
  %v1647 = vadd.f32 %v1646, 1.0
  %v1648 = vrcp.pop %v1647
  %v1649 = vmul.f32 1.0, %v1648
  %v1650 = vadd.f32 %v1631, %v44
  %v1651 = vmul.f32 %v1642, %v1650
  %v1652 = vadd.f32 %v1554, %v1651
  %v1653 = vtanh.pop %v1652
  %v1654 = vsub.f32 1.0, %v1649
  %v1655 = vmul.f32 %v1654, %v1653
  %v1656 = vmul.f32 %v1649, %v1365
  %v1657 = vadd.f32 %v1655, %v1656
  %v1658 = vpack.c.bf16 %v1469, %v1469
  %1659 = vmatprep.subr.bf16.mxu0 %v1028
  %1660 = vmatpush1.bf16.msra.mxu0 %v1027
  %1661 = vmatprep.subr.bf16.mxu0 %v1031
  %1662 = vmatpush1.bf16.msra.mxu0 %v1030
  %1663 = vmatprep.subr.bf16.mxu0 %v1034
  %1664 = vmatpush1.bf16.msra.mxu0 %v1033
  %1665 = vmatprep.subr.bf16.mxu0 %v1037
  %1666 = vmatpush1.bf16.msra.mxu0 %v1036
  %1667 = vmatprep.subr.bf16.mxu0 %v1040
  %1668 = vmatpush1.bf16.msra.mxu0 %v1039
  %1669 = vmatprep.subr.bf16.mxu0 %v1043
  %1670 = vmatpush1.bf16.msra.mxu0 %v1042
  %1671 = vmatprep.subr.bf16.mxu0 %v1046
  %1672 = vmatpush1.bf16.msra.mxu0 %v1045
  %1673 = vmatprep.subr.bf16.mxu0 %v1049
  %1674 = vmatpush1.bf16.msra.mxu0 %v1048
  %1675 = vmatprep.subr.bf16.mxu0 0
  %1676 = vmatpush1.bf16.msra.mxu0 0
  %1677 = vmatprep.subr.bf16.mxu0 0
  %1678 = vmatpush1.bf16.msra.mxu0 0
  %1679 = vmatprep.subr.bf16.mxu0 0
  %1680 = vmatpush1.bf16.msra.mxu0 0
  %1681 = vmatprep.subr.bf16.mxu0 0
  %1682 = vmatpush1.bf16.msra.mxu0 0
  %1683 = vmatprep.subr.bf16.mxu0 0
  %1684 = vmatpush1.bf16.msra.mxu0 0
  %1685 = vmatprep.subr.bf16.mxu0 0
  %1686 = vmatpush1.bf16.msra.mxu0 0
  %1687 = vmatprep.subr.bf16.mxu0 0
  %1688 = vmatpush1.bf16.msra.mxu0 0
  %1689 = vmatprep.subr.bf16.mxu0 0
  %1690 = vmatpush1.bf16.msra.mxu0 0
  %1691 = vmatprep.mubr.bf16.mxu0 0
  %1692 = vmatmul.mubr.bf16.gmra.mrb[0].mxu0 %v1658
  %v1693 = vpop.f32.mrb[0].mxu0
  %v1694 = vadd.f32 0.0, %v1693
  %v1695 = vpop.f32.mrb[0].mxu0
  %v1696 = vadd.f32 0.0, %v1695
  %v1697 = vpop.f32.mrb[0].mxu0
  %v1698 = vpop.f32.mrb[0].mxu0
  %1699 = vdwg.mxu0
  %1700 = vmatprep.subr.bf16.mxu0 0
  %1701 = vmatpush1.bf16.msra.mxu0 %v1029
  %1702 = vmatprep.subr.bf16.mxu0 0
  %1703 = vmatpush1.bf16.msra.mxu0 %v1032
  %1704 = vmatprep.subr.bf16.mxu0 0
  %1705 = vmatpush1.bf16.msra.mxu0 %v1035
  %1706 = vmatprep.subr.bf16.mxu0 0
  %1707 = vmatpush1.bf16.msra.mxu0 %v1038
  %1708 = vmatprep.subr.bf16.mxu0 0
  %1709 = vmatpush1.bf16.msra.mxu0 %v1041
  %1710 = vmatprep.subr.bf16.mxu0 0
  %1711 = vmatpush1.bf16.msra.mxu0 %v1044
  %1712 = vmatprep.subr.bf16.mxu0 0
  %1713 = vmatpush1.bf16.msra.mxu0 %v1047
  %1714 = vmatprep.subr.bf16.mxu0 0
  %1715 = vmatpush1.bf16.msra.mxu0 %v1050
  %1716 = vmatprep.subr.bf16.mxu0 0
  %1717 = vmatpush1.bf16.msra.mxu0 0
  %1718 = vmatprep.subr.bf16.mxu0 0
  %1719 = vmatpush1.bf16.msra.mxu0 0
  %1720 = vmatprep.subr.bf16.mxu0 0
  %1721 = vmatpush1.bf16.msra.mxu0 0
  %1722 = vmatprep.subr.bf16.mxu0 0
  %1723 = vmatpush1.bf16.msra.mxu0 0
  %1724 = vmatprep.subr.bf16.mxu0 0
  %1725 = vmatpush1.bf16.msra.mxu0 0
  %1726 = vmatprep.subr.bf16.mxu0 0
  %1727 = vmatpush1.bf16.msra.mxu0 0
  %1728 = vmatprep.subr.bf16.mxu0 0
  %1729 = vmatpush1.bf16.msra.mxu0 0
  %1730 = vmatprep.subr.bf16.mxu0 0
  %1731 = vmatpush1.bf16.msra.mxu0 0
  %1732 = vmatprep.mubr.bf16.mxu0 0
  %1733 = vmatmul.mubr.bf16.gmra.mrb[0].mxu0 %v1658
  %v1734 = vpop.f32.mrb[0].mxu0
  %v1735 = vadd.f32 0.0, %v1734
  %v1736 = vpop.f32.mrb[0].mxu0
  %v1737 = vpop.f32.mrb[0].mxu0
  %v1738 = vpop.f32.mrb[0].mxu0
  %1739 = vdwg.mxu0
  %v1740 = vadd.f32 %v1506, %v1694
  %v1741 = vxor.u32 %v1740, 2147483648
  %v1742 = vmul.f32 %v1741, 1.442695
  %v1743 = vpow.pop %v1742
  %v1744 = vadd.f32 %v1743, 1.0
  %v1745 = vrcp.pop %v1744
  %v1746 = vmul.f32 1.0, %v1745
  %v1747 = vadd.f32 %v1508, %v1696
  %v1748 = vxor.u32 %v1747, 2147483648
  %v1749 = vmul.f32 %v1748, 1.442695
  %v1750 = vpow.pop %v1749
  %v1751 = vadd.f32 %v1750, 1.0
  %v1752 = vrcp.pop %v1751
  %v1753 = vmul.f32 1.0, %v1752
  %v1754 = vadd.f32 %v1735, %v51
  %v1755 = vmul.f32 %v1746, %v1754
  %v1756 = vadd.f32 %v1547, %v1755
  %v1757 = vtanh.pop %v1756
  %v1758 = vsub.f32 1.0, %v1753
  %v1759 = vmul.f32 %v1758, %v1757
  %v1760 = vmul.f32 %v1753, %v1469
  %v1761 = vadd.f32 %v1759, %v1760
  %v1762 = vpack.c.bf16 %v1657, %v1657
  %1763 = vmatprep.subr.bf16.mxu0 %v713
  %1764 = vmatpush1.bf16.msra.mxu0 %v712
  %1765 = vmatprep.subr.bf16.mxu0 %v716
  %1766 = vmatpush1.bf16.msra.mxu0 %v715
  %1767 = vmatprep.subr.bf16.mxu0 %v719
  %1768 = vmatpush1.bf16.msra.mxu0 %v718
  %1769 = vmatprep.subr.bf16.mxu0 %v722
  %1770 = vmatpush1.bf16.msra.mxu0 %v721
  %1771 = vmatprep.subr.bf16.mxu0 %v725
  %1772 = vmatpush1.bf16.msra.mxu0 %v724
  %1773 = vmatprep.subr.bf16.mxu0 %v728
  %1774 = vmatpush1.bf16.msra.mxu0 %v727
  %1775 = vmatprep.subr.bf16.mxu0 %v731
  %1776 = vmatpush1.bf16.msra.mxu0 %v730
  %1777 = vmatprep.subr.bf16.mxu0 %v734
  %1778 = vmatpush1.bf16.msra.mxu0 %v733
  %1779 = vmatprep.subr.bf16.mxu0 0
  %1780 = vmatpush1.bf16.msra.mxu0 0
  %1781 = vmatprep.subr.bf16.mxu0 0
  %1782 = vmatpush1.bf16.msra.mxu0 0
  %1783 = vmatprep.subr.bf16.mxu0 0
  %1784 = vmatpush1.bf16.msra.mxu0 0
  %1785 = vmatprep.subr.bf16.mxu0 0
  %1786 = vmatpush1.bf16.msra.mxu0 0
  %1787 = vmatprep.subr.bf16.mxu0 0
  %1788 = vmatpush1.bf16.msra.mxu0 0
  %1789 = vmatprep.subr.bf16.mxu0 0
  %1790 = vmatpush1.bf16.msra.mxu0 0
  %1791 = vmatprep.subr.bf16.mxu0 0
  %1792 = vmatpush1.bf16.msra.mxu0 0
  %1793 = vmatprep.subr.bf16.mxu0 0
  %1794 = vmatpush1.bf16.msra.mxu0 0
  %1795 = vmatprep.mubr.bf16.mxu0 0
  %1796 = vmatmul.mubr.bf16.gmra.mrb[0].mxu0 %v1762
  %v1797 = vpop.f32.mrb[0].mxu0
  %v1798 = vadd.f32 %v58, %v1797
  %v1799 = vpop.f32.mrb[0].mxu0
  %v1800 = vadd.f32 %v62, %v1799
  %v1801 = vpop.f32.mrb[0].mxu0
  %v1802 = vpop.f32.mrb[0].mxu0
  %1803 = vdwg.mxu0
  %1804 = vmatprep.subr.bf16.mxu0 0
  %1805 = vmatpush1.bf16.msra.mxu0 %v714
  %1806 = vmatprep.subr.bf16.mxu0 0
  %1807 = vmatpush1.bf16.msra.mxu0 %v717
  %1808 = vmatprep.subr.bf16.mxu0 0
  %1809 = vmatpush1.bf16.msra.mxu0 %v720
  %1810 = vmatprep.subr.bf16.mxu0 0
  %1811 = vmatpush1.bf16.msra.mxu0 %v723
  %1812 = vmatprep.subr.bf16.mxu0 0
  %1813 = vmatpush1.bf16.msra.mxu0 %v726
  %1814 = vmatprep.subr.bf16.mxu0 0
  %1815 = vmatpush1.bf16.msra.mxu0 %v729
  %1816 = vmatprep.subr.bf16.mxu0 0
  %1817 = vmatpush1.bf16.msra.mxu0 %v732
  %1818 = vmatprep.subr.bf16.mxu0 0
  %1819 = vmatpush1.bf16.msra.mxu0 %v735
  %1820 = vmatprep.subr.bf16.mxu0 0
  %1821 = vmatpush1.bf16.msra.mxu0 0
  %1822 = vmatprep.subr.bf16.mxu0 0
  %1823 = vmatpush1.bf16.msra.mxu0 0
  %1824 = vmatprep.subr.bf16.mxu0 0
  %1825 = vmatpush1.bf16.msra.mxu0 0
  %1826 = vmatprep.subr.bf16.mxu0 0
  %1827 = vmatpush1.bf16.msra.mxu0 0
  %1828 = vmatprep.subr.bf16.mxu0 0
  %1829 = vmatpush1.bf16.msra.mxu0 0
  %1830 = vmatprep.subr.bf16.mxu0 0
  %1831 = vmatpush1.bf16.msra.mxu0 0
  %1832 = vmatprep.subr.bf16.mxu0 0
  %1833 = vmatpush1.bf16.msra.mxu0 0
  %1834 = vmatprep.subr.bf16.mxu0 0
  %1835 = vmatpush1.bf16.msra.mxu0 0
  %1836 = vmatprep.mubr.bf16.mxu0 0
  %1837 = vmatmul.mubr.bf16.gmra.mrb[0].mxu0 %v1762
  %v1838 = vpop.f32.mrb[0].mxu0
  %v1839 = vadd.f32 %v66, %v1838
  %v1840 = vpop.f32.mrb[0].mxu0
  %v1841 = vpop.f32.mrb[0].mxu0
  %v1842 = vpop.f32.mrb[0].mxu0
  %1843 = vdwg.mxu0
  %v1844 = vld [vmem:[#allocation2 + $0x60] sm:$0xff]
  %v1845 = vld [vmem:[#allocation2 + $0x68] sm:$0xff]
  %v1846 = vld [vmem:[#allocation2 + $0x70] sm:$0xff]
  %1847 = vmatprep.subr.bf16.mxu0 %v481
  %1848 = vmatpush1.bf16.msra.mxu0 %v480
  %1849 = vmatprep.subr.bf16.mxu0 %v484
  %1850 = vmatpush1.bf16.msra.mxu0 %v483
  %1851 = vmatprep.subr.bf16.mxu0 %v487
  %1852 = vmatpush1.bf16.msra.mxu0 %v486
  %1853 = vmatprep.subr.bf16.mxu0 %v490
  %1854 = vmatpush1.bf16.msra.mxu0 %v489
  %1855 = vmatprep.subr.bf16.mxu0 %v493
  %1856 = vmatpush1.bf16.msra.mxu0 %v492
  %1857 = vmatprep.subr.bf16.mxu0 %v496
  %1858 = vmatpush1.bf16.msra.mxu0 %v495
  %1859 = vmatprep.subr.bf16.mxu0 %v499
  %1860 = vmatpush1.bf16.msra.mxu0 %v498
  %1861 = vmatprep.subr.bf16.mxu0 %v502
  %1862 = vmatpush1.bf16.msra.mxu0 %v501
  %1863 = vmatprep.subr.bf16.mxu0 0
  %1864 = vmatpush1.bf16.msra.mxu0 0
  %1865 = vmatprep.subr.bf16.mxu0 0
  %1866 = vmatpush1.bf16.msra.mxu0 0
  %1867 = vmatprep.subr.bf16.mxu0 0
  %1868 = vmatpush1.bf16.msra.mxu0 0
  %1869 = vmatprep.subr.bf16.mxu0 0
  %1870 = vmatpush1.bf16.msra.mxu0 0
  %1871 = vmatprep.subr.bf16.mxu0 0
  %1872 = vmatpush1.bf16.msra.mxu0 0
  %1873 = vmatprep.subr.bf16.mxu0 0
  %1874 = vmatpush1.bf16.msra.mxu0 0
  %1875 = vmatprep.subr.bf16.mxu0 0
  %1876 = vmatpush1.bf16.msra.mxu0 0
  %1877 = vmatprep.subr.bf16.mxu0 0
  %1878 = vmatpush1.bf16.msra.mxu0 0
  %1879 = vmatprep.mubr.bf16.mxu0 0
  %1880 = vmatmul.mubr.bf16.gmra.mrb[0].mxu0 %v1762
  %v1881 = vpop.f32.mrb[0].mxu0
  %v1882 = vadd.f32 0.0, %v1881
  %v1883 = vpop.f32.mrb[0].mxu0
  %v1884 = vadd.f32 0.0, %v1883
  %v1885 = vpop.f32.mrb[0].mxu0
  %v1886 = vpop.f32.mrb[0].mxu0
  %1887 = vdwg.mxu0
  %1888 = vmatprep.subr.bf16.mxu0 0
  %1889 = vmatpush1.bf16.msra.mxu0 %v482
  %1890 = vmatprep.subr.bf16.mxu0 0
  %1891 = vmatpush1.bf16.msra.mxu0 %v485
  %1892 = vmatprep.subr.bf16.mxu0 0
  %1893 = vmatpush1.bf16.msra.mxu0 %v488
  %1894 = vmatprep.subr.bf16.mxu0 0
  %1895 = vmatpush1.bf16.msra.mxu0 %v491
  %1896 = vmatprep.subr.bf16.mxu0 0
  %1897 = vmatpush1.bf16.msra.mxu0 %v494
  %1898 = vmatprep.subr.bf16.mxu0 0
  %1899 = vmatpush1.bf16.msra.mxu0 %v497
  %1900 = vmatprep.subr.bf16.mxu0 0
  %1901 = vmatpush1.bf16.msra.mxu0 %v500
  %1902 = vmatprep.subr.bf16.mxu0 0
  %1903 = vmatpush1.bf16.msra.mxu0 %v503
  %1904 = vmatprep.subr.bf16.mxu0 0
  %1905 = vmatpush1.bf16.msra.mxu0 0
  %1906 = vmatprep.subr.bf16.mxu0 0
  %1907 = vmatpush1.bf16.msra.mxu0 0
  %1908 = vmatprep.subr.bf16.mxu0 0
  %1909 = vmatpush1.bf16.msra.mxu0 0
  %1910 = vmatprep.subr.bf16.mxu0 0
  %1911 = vmatpush1.bf16.msra.mxu0 0
  %1912 = vmatprep.subr.bf16.mxu0 0
  %1913 = vmatpush1.bf16.msra.mxu0 0
  %1914 = vmatprep.subr.bf16.mxu0 0
  %1915 = vmatpush1.bf16.msra.mxu0 0
  %1916 = vmatprep.subr.bf16.mxu0 0
  %1917 = vmatpush1.bf16.msra.mxu0 0
  %1918 = vmatprep.subr.bf16.mxu0 0
  %1919 = vmatpush1.bf16.msra.mxu0 0
  %1920 = vmatprep.mubr.bf16.mxu0 0
  %1921 = vmatmul.mubr.bf16.gmra.mrb[0].mxu0 %v1762
  %v1922 = vpop.f32.mrb[0].mxu0
  %v1923 = vadd.f32 0.0, %v1922
  %v1924 = vpop.f32.mrb[0].mxu0
  %v1925 = vpop.f32.mrb[0].mxu0
  %v1926 = vpop.f32.mrb[0].mxu0
  %1927 = vdwg.mxu0
  %v1928 = vadd.f32 %v1844, %v1882
  %v1929 = vxor.u32 %v1928, 2147483648
  %v1930 = vmul.f32 %v1929, 1.442695
  %v1931 = vpow.pop %v1930
  %v1932 = vadd.f32 %v1931, 1.0
  %v1933 = vrcp.pop %v1932
  %v1934 = vmul.f32 1.0, %v1933
  %v1935 = vadd.f32 %v1845, %v1884
  %v1936 = vxor.u32 %v1935, 2147483648
  %v1937 = vmul.f32 %v1936, 1.442695
  %v1938 = vpow.pop %v1937
  %v1939 = vadd.f32 %v1938, 1.0
  %v1940 = vrcp.pop %v1939
  %v1941 = vmul.f32 1.0, %v1940
  %v1942 = vadd.f32 %v1923, %v44
  %v1943 = vmul.f32 %v1934, %v1942
  %v1944 = vadd.f32 %v1846, %v1943
  %v1945 = vtanh.pop %v1944
  %v1946 = vsub.f32 1.0, %v1941
  %v1947 = vmul.f32 %v1946, %v1945
  %v1948 = vmul.f32 %v1941, %v1657
  %v1949 = vadd.f32 %v1947, %v1948
  %v1950 = vpack.c.bf16 %v1761, %v1761
  %1951 = vmatprep.subr.bf16.mxu0 %v1028
  %1952 = vmatpush1.bf16.msra.mxu0 %v1027
  %1953 = vmatprep.subr.bf16.mxu0 %v1031
  %1954 = vmatpush1.bf16.msra.mxu0 %v1030
  %1955 = vmatprep.subr.bf16.mxu0 %v1034
  %1956 = vmatpush1.bf16.msra.mxu0 %v1033
  %1957 = vmatprep.subr.bf16.mxu0 %v1037
  %1958 = vmatpush1.bf16.msra.mxu0 %v1036
  %1959 = vmatprep.subr.bf16.mxu0 %v1040
  %1960 = vmatpush1.bf16.msra.mxu0 %v1039
  %1961 = vmatprep.subr.bf16.mxu0 %v1043
  %1962 = vmatpush1.bf16.msra.mxu0 %v1042
  %1963 = vmatprep.subr.bf16.mxu0 %v1046
  %1964 = vmatpush1.bf16.msra.mxu0 %v1045
  %1965 = vmatprep.subr.bf16.mxu0 %v1049
  %1966 = vmatpush1.bf16.msra.mxu0 %v1048
  %1967 = vmatprep.subr.bf16.mxu0 0
  %1968 = vmatpush1.bf16.msra.mxu0 0
  %1969 = vmatprep.subr.bf16.mxu0 0
  %1970 = vmatpush1.bf16.msra.mxu0 0
  %1971 = vmatprep.subr.bf16.mxu0 0
  %1972 = vmatpush1.bf16.msra.mxu0 0
  %1973 = vmatprep.subr.bf16.mxu0 0
  %1974 = vmatpush1.bf16.msra.mxu0 0
  %1975 = vmatprep.subr.bf16.mxu0 0
  %1976 = vmatpush1.bf16.msra.mxu0 0
  %1977 = vmatprep.subr.bf16.mxu0 0
  %1978 = vmatpush1.bf16.msra.mxu0 0
  %1979 = vmatprep.subr.bf16.mxu0 0
  %1980 = vmatpush1.bf16.msra.mxu0 0
  %1981 = vmatprep.subr.bf16.mxu0 0
  %1982 = vmatpush1.bf16.msra.mxu0 0
  %1983 = vmatprep.mubr.bf16.mxu0 0
  %1984 = vmatmul.mubr.bf16.gmra.mrb[0].mxu0 %v1950
  %v1985 = vpop.f32.mrb[0].mxu0
  %v1986 = vadd.f32 0.0, %v1985
  %v1987 = vpop.f32.mrb[0].mxu0
  %v1988 = vadd.f32 0.0, %v1987
  %v1989 = vpop.f32.mrb[0].mxu0
  %v1990 = vpop.f32.mrb[0].mxu0
  %1991 = vdwg.mxu0
  %1992 = vmatprep.subr.bf16.mxu0 0
  %1993 = vmatpush1.bf16.msra.mxu0 %v1029
  %1994 = vmatprep.subr.bf16.mxu0 0
  %1995 = vmatpush1.bf16.msra.mxu0 %v1032
  %1996 = vmatprep.subr.bf16.mxu0 0
  %1997 = vmatpush1.bf16.msra.mxu0 %v1035
  %1998 = vmatprep.subr.bf16.mxu0 0
  %1999 = vmatpush1.bf16.msra.mxu0 %v1038
  %2000 = vmatprep.subr.bf16.mxu0 0
  %2001 = vmatpush1.bf16.msra.mxu0 %v1041
  %2002 = vmatprep.subr.bf16.mxu0 0
  %2003 = vmatpush1.bf16.msra.mxu0 %v1044
  %2004 = vmatprep.subr.bf16.mxu0 0
  %2005 = vmatpush1.bf16.msra.mxu0 %v1047
  %2006 = vmatprep.subr.bf16.mxu0 0
  %2007 = vmatpush1.bf16.msra.mxu0 %v1050
  %2008 = vmatprep.subr.bf16.mxu0 0
  %2009 = vmatpush1.bf16.msra.mxu0 0
  %2010 = vmatprep.subr.bf16.mxu0 0
  %2011 = vmatpush1.bf16.msra.mxu0 0
  %2012 = vmatprep.subr.bf16.mxu0 0
  %2013 = vmatpush1.bf16.msra.mxu0 0
  %2014 = vmatprep.subr.bf16.mxu0 0
  %2015 = vmatpush1.bf16.msra.mxu0 0
  %2016 = vmatprep.subr.bf16.mxu0 0
  %2017 = vmatpush1.bf16.msra.mxu0 0
  %2018 = vmatprep.subr.bf16.mxu0 0
  %2019 = vmatpush1.bf16.msra.mxu0 0
  %2020 = vmatprep.subr.bf16.mxu0 0
  %2021 = vmatpush1.bf16.msra.mxu0 0
  %2022 = vmatprep.subr.bf16.mxu0 0
  %2023 = vmatpush1.bf16.msra.mxu0 0
  %2024 = vmatprep.mubr.bf16.mxu0 0
  %2025 = vmatmul.mubr.bf16.gmra.mrb[0].mxu0 %v1950
  %v2026 = vpop.f32.mrb[0].mxu0
  %v2027 = vadd.f32 0.0, %v2026
  %v2028 = vpop.f32.mrb[0].mxu0
  %v2029 = vpop.f32.mrb[0].mxu0
  %v2030 = vpop.f32.mrb[0].mxu0
  %2031 = vdwg.mxu0
  %v2032 = vadd.f32 %v1798, %v1986
  %v2033 = vxor.u32 %v2032, 2147483648
  %v2034 = vmul.f32 %v2033, 1.442695
  %v2035 = vpow.pop %v2034
  %v2036 = vadd.f32 %v2035, 1.0
  %v2037 = vrcp.pop %v2036
  %v2038 = vmul.f32 1.0, %v2037
  %v2039 = vadd.f32 %v1800, %v1988
  %v2040 = vxor.u32 %v2039, 2147483648
  %v2041 = vmul.f32 %v2040, 1.442695
  %v2042 = vpow.pop %v2041
  %v2043 = vadd.f32 %v2042, 1.0
  %v2044 = vrcp.pop %v2043
  %v2045 = vmul.f32 1.0, %v2044
  %v2046 = vadd.f32 %v2027, %v51
  %v2047 = vmul.f32 %v2038, %v2046
  %v2048 = vadd.f32 %v1839, %v2047
  %v2049 = vtanh.pop %v2048
  %v2050 = vsub.f32 1.0, %v2045
  %v2051 = vmul.f32 %v2050, %v2049
  %v2052 = vmul.f32 %v2045, %v1761
  %v2053 = vadd.f32 %v2051, %v2052
  %v2054 = vpack.c.bf16 %v1949, %v1949
  %2055 = vmatprep.subr.bf16.mxu0 %v713
  %2056 = vmatpush1.bf16.msra.mxu0 %v712
  %2057 = vmatprep.subr.bf16.mxu0 %v716
  %2058 = vmatpush1.bf16.msra.mxu0 %v715
  %2059 = vmatprep.subr.bf16.mxu0 %v719
  %2060 = vmatpush1.bf16.msra.mxu0 %v718
  %2061 = vmatprep.subr.bf16.mxu0 %v722
  %2062 = vmatpush1.bf16.msra.mxu0 %v721
  %2063 = vmatprep.subr.bf16.mxu0 %v725
  %2064 = vmatpush1.bf16.msra.mxu0 %v724
  %2065 = vmatprep.subr.bf16.mxu0 %v728
  %2066 = vmatpush1.bf16.msra.mxu0 %v727
  %2067 = vmatprep.subr.bf16.mxu0 %v731
  %2068 = vmatpush1.bf16.msra.mxu0 %v730
  %2069 = vmatprep.subr.bf16.mxu0 %v734
  %2070 = vmatpush1.bf16.msra.mxu0 %v733
  %2071 = vmatprep.subr.bf16.mxu0 0
  %2072 = vmatpush1.bf16.msra.mxu0 0
  %2073 = vmatprep.subr.bf16.mxu0 0
  %2074 = vmatpush1.bf16.msra.mxu0 0
  %2075 = vmatprep.subr.bf16.mxu0 0
  %2076 = vmatpush1.bf16.msra.mxu0 0
  %2077 = vmatprep.subr.bf16.mxu0 0
  %2078 = vmatpush1.bf16.msra.mxu0 0
  %2079 = vmatprep.subr.bf16.mxu0 0
  %2080 = vmatpush1.bf16.msra.mxu0 0
  %2081 = vmatprep.subr.bf16.mxu0 0
  %2082 = vmatpush1.bf16.msra.mxu0 0
  %2083 = vmatprep.subr.bf16.mxu0 0
  %2084 = vmatpush1.bf16.msra.mxu0 0
  %2085 = vmatprep.subr.bf16.mxu0 0
  %2086 = vmatpush1.bf16.msra.mxu0 0
  %2087 = vmatprep.mubr.bf16.mxu0 0
  %2088 = vmatmul.mubr.bf16.gmra.mrb[0].mxu0 %v2054
  %v2089 = vpop.f32.mrb[0].mxu0
  %v2090 = vadd.f32 %v58, %v2089
  %v2091 = vpop.f32.mrb[0].mxu0
  %v2092 = vadd.f32 %v62, %v2091
  %v2093 = vpop.f32.mrb[0].mxu0
  %v2094 = vpop.f32.mrb[0].mxu0
  %2095 = vdwg.mxu0
  %2096 = vmatprep.subr.bf16.mxu0 0
  %2097 = vmatpush1.bf16.msra.mxu0 %v714
  %2098 = vmatprep.subr.bf16.mxu0 0
  %2099 = vmatpush1.bf16.msra.mxu0 %v717
  %2100 = vmatprep.subr.bf16.mxu0 0
  %2101 = vmatpush1.bf16.msra.mxu0 %v720
  %2102 = vmatprep.subr.bf16.mxu0 0
  %2103 = vmatpush1.bf16.msra.mxu0 %v723
  %2104 = vmatprep.subr.bf16.mxu0 0
  %2105 = vmatpush1.bf16.msra.mxu0 %v726
  %2106 = vmatprep.subr.bf16.mxu0 0
  %2107 = vmatpush1.bf16.msra.mxu0 %v729
  %2108 = vmatprep.subr.bf16.mxu0 0
  %2109 = vmatpush1.bf16.msra.mxu0 %v732
  %2110 = vmatprep.subr.bf16.mxu0 0
  %2111 = vmatpush1.bf16.msra.mxu0 %v735
  %2112 = vmatprep.subr.bf16.mxu0 0
  %2113 = vmatpush1.bf16.msra.mxu0 0
  %2114 = vmatprep.subr.bf16.mxu0 0
  %2115 = vmatpush1.bf16.msra.mxu0 0
  %2116 = vmatprep.subr.bf16.mxu0 0
  %2117 = vmatpush1.bf16.msra.mxu0 0
  %2118 = vmatprep.subr.bf16.mxu0 0
  %2119 = vmatpush1.bf16.msra.mxu0 0
  %2120 = vmatprep.subr.bf16.mxu0 0
  %2121 = vmatpush1.bf16.msra.mxu0 0
  %2122 = vmatprep.subr.bf16.mxu0 0
  %2123 = vmatpush1.bf16.msra.mxu0 0
  %2124 = vmatprep.subr.bf16.mxu0 0
  %2125 = vmatpush1.bf16.msra.mxu0 0
  %2126 = vmatprep.subr.bf16.mxu0 0
  %2127 = vmatpush1.bf16.msra.mxu0 0
  %2128 = vmatprep.mubr.bf16.mxu0 0
  %2129 = vmatmul.mubr.bf16.gmra.mrb[0].mxu0 %v2054
  %v2130 = vpop.f32.mrb[0].mxu0
  %v2131 = vadd.f32 %v66, %v2130
  %v2132 = vpop.f32.mrb[0].mxu0
  %v2133 = vpop.f32.mrb[0].mxu0
  %v2134 = vpop.f32.mrb[0].mxu0
  %2135 = vdwg.mxu0
  %v2136 = vld [vmem:[#allocation2 + $0x78] sm:$0xff]
  %v2137 = vld [vmem:[#allocation2 + $0x80] sm:$0xff]
  %v2138 = vld [vmem:[#allocation2 + $0x88] sm:$0xff]
  %2139 = vmatprep.subr.bf16.mxu0 %v481
  %2140 = vmatpush1.bf16.msra.mxu0 %v480
  %2141 = vmatprep.subr.bf16.mxu0 %v484
  %2142 = vmatpush1.bf16.msra.mxu0 %v483
  %2143 = vmatprep.subr.bf16.mxu0 %v487
  %2144 = vmatpush1.bf16.msra.mxu0 %v486
  %2145 = vmatprep.subr.bf16.mxu0 %v490
  %2146 = vmatpush1.bf16.msra.mxu0 %v489
  %2147 = vmatprep.subr.bf16.mxu0 %v493
  %2148 = vmatpush1.bf16.msra.mxu0 %v492
  %2149 = vmatprep.subr.bf16.mxu0 %v496
  %2150 = vmatpush1.bf16.msra.mxu0 %v495
  %2151 = vmatprep.subr.bf16.mxu0 %v499
  %2152 = vmatpush1.bf16.msra.mxu0 %v498
  %2153 = vmatprep.subr.bf16.mxu0 %v502
  %2154 = vmatpush1.bf16.msra.mxu0 %v501
  %2155 = vmatprep.subr.bf16.mxu0 0
  %2156 = vmatpush1.bf16.msra.mxu0 0
  %2157 = vmatprep.subr.bf16.mxu0 0
  %2158 = vmatpush1.bf16.msra.mxu0 0
  %2159 = vmatprep.subr.bf16.mxu0 0
  %2160 = vmatpush1.bf16.msra.mxu0 0
  %2161 = vmatprep.subr.bf16.mxu0 0
  %2162 = vmatpush1.bf16.msra.mxu0 0
  %2163 = vmatprep.subr.bf16.mxu0 0
  %2164 = vmatpush1.bf16.msra.mxu0 0
  %2165 = vmatprep.subr.bf16.mxu0 0
  %2166 = vmatpush1.bf16.msra.mxu0 0
  %2167 = vmatprep.subr.bf16.mxu0 0
  %2168 = vmatpush1.bf16.msra.mxu0 0
  %2169 = vmatprep.subr.bf16.mxu0 0
  %2170 = vmatpush1.bf16.msra.mxu0 0
  %2171 = vmatprep.mubr.bf16.mxu0 0
  %2172 = vmatmul.mubr.bf16.gmra.mrb[0].mxu0 %v2054
  %v2173 = vpop.f32.mrb[0].mxu0
  %v2174 = vadd.f32 0.0, %v2173
  %v2175 = vpop.f32.mrb[0].mxu0
  %v2176 = vadd.f32 0.0, %v2175
  %v2177 = vpop.f32.mrb[0].mxu0
  %v2178 = vpop.f32.mrb[0].mxu0
  %2179 = vdwg.mxu0
  %2180 = vmatprep.subr.bf16.mxu0 0
  %2181 = vmatpush1.bf16.msra.mxu0 %v482
  %2182 = vmatprep.subr.bf16.mxu0 0
  %2183 = vmatpush1.bf16.msra.mxu0 %v485
  %2184 = vmatprep.subr.bf16.mxu0 0
  %2185 = vmatpush1.bf16.msra.mxu0 %v488
  %2186 = vmatprep.subr.bf16.mxu0 0
  %2187 = vmatpush1.bf16.msra.mxu0 %v491
  %2188 = vmatprep.subr.bf16.mxu0 0
  %2189 = vmatpush1.bf16.msra.mxu0 %v494
  %2190 = vmatprep.subr.bf16.mxu0 0
  %2191 = vmatpush1.bf16.msra.mxu0 %v497
  %2192 = vmatprep.subr.bf16.mxu0 0
  %2193 = vmatpush1.bf16.msra.mxu0 %v500
  %2194 = vmatprep.subr.bf16.mxu0 0
  %2195 = vmatpush1.bf16.msra.mxu0 %v503
  %2196 = vmatprep.subr.bf16.mxu0 0
  %2197 = vmatpush1.bf16.msra.mxu0 0
  %2198 = vmatprep.subr.bf16.mxu0 0
  %2199 = vmatpush1.bf16.msra.mxu0 0
  %2200 = vmatprep.subr.bf16.mxu0 0
  %2201 = vmatpush1.bf16.msra.mxu0 0
  %2202 = vmatprep.subr.bf16.mxu0 0
  %2203 = vmatpush1.bf16.msra.mxu0 0
  %2204 = vmatprep.subr.bf16.mxu0 0
  %2205 = vmatpush1.bf16.msra.mxu0 0
  %2206 = vmatprep.subr.bf16.mxu0 0
  %2207 = vmatpush1.bf16.msra.mxu0 0
  %2208 = vmatprep.subr.bf16.mxu0 0
  %2209 = vmatpush1.bf16.msra.mxu0 0
  %2210 = vmatprep.subr.bf16.mxu0 0
  %2211 = vmatpush1.bf16.msra.mxu0 0
  %2212 = vmatprep.mubr.bf16.mxu0 0
  %2213 = vmatmul.mubr.bf16.gmra.mrb[0].mxu0 %v2054
  %v2214 = vpop.f32.mrb[0].mxu0
  %v2215 = vadd.f32 0.0, %v2214
  %v2216 = vpop.f32.mrb[0].mxu0
  %v2217 = vpop.f32.mrb[0].mxu0
  %v2218 = vpop.f32.mrb[0].mxu0
  %2219 = vdwg.mxu0
  %v2220 = vadd.f32 %v2136, %v2174
  %v2221 = vxor.u32 %v2220, 2147483648
  %v2222 = vmul.f32 %v2221, 1.442695
  %v2223 = vpow.pop %v2222
  %v2224 = vadd.f32 %v2223, 1.0
  %v2225 = vrcp.pop %v2224
  %v2226 = vmul.f32 1.0, %v2225
  %v2227 = vadd.f32 %v2137, %v2176
  %v2228 = vxor.u32 %v2227, 2147483648
  %v2229 = vmul.f32 %v2228, 1.442695
  %v2230 = vpow.pop %v2229
  %v2231 = vadd.f32 %v2230, 1.0
  %v2232 = vrcp.pop %v2231
  %v2233 = vmul.f32 1.0, %v2232
  %v2234 = vadd.f32 %v2215, %v44
  %v2235 = vmul.f32 %v2226, %v2234
  %v2236 = vadd.f32 %v2138, %v2235
  %v2237 = vtanh.pop %v2236
  %v2238 = vsub.f32 1.0, %v2233
  %v2239 = vmul.f32 %v2238, %v2237
  %v2240 = vmul.f32 %v2233, %v1949
  %v2241 = vadd.f32 %v2239, %v2240
  %v2242 = vpack.c.bf16 %v2053, %v2053
  %2243 = vmatprep.subr.bf16.mxu0 %v1028
  %2244 = vmatpush1.bf16.msra.mxu0 %v1027
  %2245 = vmatprep.subr.bf16.mxu0 %v1031
  %2246 = vmatpush1.bf16.msra.mxu0 %v1030
  %2247 = vmatprep.subr.bf16.mxu0 %v1034
  %2248 = vmatpush1.bf16.msra.mxu0 %v1033
  %2249 = vmatprep.subr.bf16.mxu0 %v1037
  %2250 = vmatpush1.bf16.msra.mxu0 %v1036
  %2251 = vmatprep.subr.bf16.mxu0 %v1040
  %2252 = vmatpush1.bf16.msra.mxu0 %v1039
  %2253 = vmatprep.subr.bf16.mxu0 %v1043
  %2254 = vmatpush1.bf16.msra.mxu0 %v1042
  %2255 = vmatprep.subr.bf16.mxu0 %v1046
  %2256 = vmatpush1.bf16.msra.mxu0 %v1045
  %2257 = vmatprep.subr.bf16.mxu0 %v1049
  %2258 = vmatpush1.bf16.msra.mxu0 %v1048
  %2259 = vmatprep.subr.bf16.mxu0 0
  %2260 = vmatpush1.bf16.msra.mxu0 0
  %2261 = vmatprep.subr.bf16.mxu0 0
  %2262 = vmatpush1.bf16.msra.mxu0 0
  %2263 = vmatprep.subr.bf16.mxu0 0
  %2264 = vmatpush1.bf16.msra.mxu0 0
  %2265 = vmatprep.subr.bf16.mxu0 0
  %2266 = vmatpush1.bf16.msra.mxu0 0
  %2267 = vmatprep.subr.bf16.mxu0 0
  %2268 = vmatpush1.bf16.msra.mxu0 0
  %2269 = vmatprep.subr.bf16.mxu0 0
  %2270 = vmatpush1.bf16.msra.mxu0 0
  %2271 = vmatprep.subr.bf16.mxu0 0
  %2272 = vmatpush1.bf16.msra.mxu0 0
  %2273 = vmatprep.subr.bf16.mxu0 0
  %2274 = vmatpush1.bf16.msra.mxu0 0
  %2275 = vmatprep.mubr.bf16.mxu0 0
  %2276 = vmatmul.mubr.bf16.gmra.mrb[0].mxu0 %v2242
  %v2277 = vpop.f32.mrb[0].mxu0
  %v2278 = vadd.f32 0.0, %v2277
  %v2279 = vpop.f32.mrb[0].mxu0
  %v2280 = vadd.f32 0.0, %v2279
  %v2281 = vpop.f32.mrb[0].mxu0
  %v2282 = vpop.f32.mrb[0].mxu0
  %2283 = vdwg.mxu0
  %2284 = vmatprep.subr.bf16.mxu0 0
  %2285 = vmatpush1.bf16.msra.mxu0 %v1029
  %2286 = vmatprep.subr.bf16.mxu0 0
  %2287 = vmatpush1.bf16.msra.mxu0 %v1032
  %2288 = vmatprep.subr.bf16.mxu0 0
  %2289 = vmatpush1.bf16.msra.mxu0 %v1035
  %2290 = vmatprep.subr.bf16.mxu0 0
  %2291 = vmatpush1.bf16.msra.mxu0 %v1038
  %2292 = vmatprep.subr.bf16.mxu0 0
  %2293 = vmatpush1.bf16.msra.mxu0 %v1041
  %2294 = vmatprep.subr.bf16.mxu0 0
  %2295 = vmatpush1.bf16.msra.mxu0 %v1044
  %2296 = vmatprep.subr.bf16.mxu0 0
  %2297 = vmatpush1.bf16.msra.mxu0 %v1047
  %2298 = vmatprep.subr.bf16.mxu0 0
  %2299 = vmatpush1.bf16.msra.mxu0 %v1050
  %2300 = vmatprep.subr.bf16.mxu0 0
  %2301 = vmatpush1.bf16.msra.mxu0 0
  %2302 = vmatprep.subr.bf16.mxu0 0
  %2303 = vmatpush1.bf16.msra.mxu0 0
  %2304 = vmatprep.subr.bf16.mxu0 0
  %2305 = vmatpush1.bf16.msra.mxu0 0
  %2306 = vmatprep.subr.bf16.mxu0 0
  %2307 = vmatpush1.bf16.msra.mxu0 0
  %2308 = vmatprep.subr.bf16.mxu0 0
  %2309 = vmatpush1.bf16.msra.mxu0 0
  %2310 = vmatprep.subr.bf16.mxu0 0
  %2311 = vmatpush1.bf16.msra.mxu0 0
  %2312 = vmatprep.subr.bf16.mxu0 0
  %2313 = vmatpush1.bf16.msra.mxu0 0
  %2314 = vmatprep.subr.bf16.mxu0 0
  %2315 = vmatpush1.bf16.msra.mxu0 0
  %2316 = vmatprep.mubr.bf16.mxu0 0
  %2317 = vmatmul.mubr.bf16.gmra.mrb[0].mxu0 %v2242
  %v2318 = vpop.f32.mrb[0].mxu0
  %v2319 = vadd.f32 0.0, %v2318
  %v2320 = vpop.f32.mrb[0].mxu0
  %v2321 = vpop.f32.mrb[0].mxu0
  %v2322 = vpop.f32.mrb[0].mxu0
  %2323 = vdwg.mxu0
  %v2324 = vadd.f32 %v2090, %v2278
  %v2325 = vxor.u32 %v2324, 2147483648
  %v2326 = vmul.f32 %v2325, 1.442695
  %v2327 = vpow.pop %v2326
  %v2328 = vadd.f32 %v2327, 1.0
  %v2329 = vrcp.pop %v2328
  %v2330 = vmul.f32 1.0, %v2329
  %v2331 = vadd.f32 %v2092, %v2280
  %v2332 = vxor.u32 %v2331, 2147483648
  %v2333 = vmul.f32 %v2332, 1.442695
  %v2334 = vpow.pop %v2333
  %v2335 = vadd.f32 %v2334, 1.0
  %v2336 = vrcp.pop %v2335
  %v2337 = vmul.f32 1.0, %v2336
  %v2338 = vadd.f32 %v2319, %v51
  %v2339 = vmul.f32 %v2330, %v2338
  %v2340 = vadd.f32 %v2131, %v2339
  %v2341 = vtanh.pop %v2340
  %v2342 = vsub.f32 1.0, %v2337
  %v2343 = vmul.f32 %v2342, %v2341
  %v2344 = vmul.f32 %v2337, %v2053
  %v2345 = vadd.f32 %v2343, %v2344
  %v2346 = vpack.c.bf16 %v2241, %v2241
  %2347 = vmatprep.subr.bf16.mxu0 %v713
  %2348 = vmatpush1.bf16.msra.mxu0 %v712
  %2349 = vmatprep.subr.bf16.mxu0 %v716
  %2350 = vmatpush1.bf16.msra.mxu0 %v715
  %2351 = vmatprep.subr.bf16.mxu0 %v719
  %2352 = vmatpush1.bf16.msra.mxu0 %v718
  %2353 = vmatprep.subr.bf16.mxu0 %v722
  %2354 = vmatpush1.bf16.msra.mxu0 %v721
  %2355 = vmatprep.subr.bf16.mxu0 %v725
  %2356 = vmatpush1.bf16.msra.mxu0 %v724
  %2357 = vmatprep.subr.bf16.mxu0 %v728
  %2358 = vmatpush1.bf16.msra.mxu0 %v727
  %2359 = vmatprep.subr.bf16.mxu0 %v731
  %2360 = vmatpush1.bf16.msra.mxu0 %v730
  %2361 = vmatprep.subr.bf16.mxu0 %v734
  %2362 = vmatpush1.bf16.msra.mxu0 %v733
  %2363 = vmatprep.subr.bf16.mxu0 0
  %2364 = vmatpush1.bf16.msra.mxu0 0
  %2365 = vmatprep.subr.bf16.mxu0 0
  %2366 = vmatpush1.bf16.msra.mxu0 0
  %2367 = vmatprep.subr.bf16.mxu0 0
  %2368 = vmatpush1.bf16.msra.mxu0 0
  %2369 = vmatprep.subr.bf16.mxu0 0
  %2370 = vmatpush1.bf16.msra.mxu0 0
  %2371 = vmatprep.subr.bf16.mxu0 0
  %2372 = vmatpush1.bf16.msra.mxu0 0
  %2373 = vmatprep.subr.bf16.mxu0 0
  %2374 = vmatpush1.bf16.msra.mxu0 0
  %2375 = vmatprep.subr.bf16.mxu0 0
  %2376 = vmatpush1.bf16.msra.mxu0 0
  %2377 = vmatprep.subr.bf16.mxu0 0
  %2378 = vmatpush1.bf16.msra.mxu0 0
  %2379 = vmatprep.mubr.bf16.mxu0 0
  %2380 = vmatmul.mubr.bf16.gmra.mrb[0].mxu0 %v2346
  %v2381 = vpop.f32.mrb[0].mxu0
  %v2382 = vadd.f32 %v58, %v2381
  %v2383 = vpop.f32.mrb[0].mxu0
  %v2384 = vadd.f32 %v62, %v2383
  %v2385 = vpop.f32.mrb[0].mxu0
  %v2386 = vpop.f32.mrb[0].mxu0
  %2387 = vdwg.mxu0
  %2388 = vmatprep.subr.bf16.mxu0 0
  %2389 = vmatpush1.bf16.msra.mxu0 %v714
  %2390 = vmatprep.subr.bf16.mxu0 0
  %2391 = vmatpush1.bf16.msra.mxu0 %v717
  %2392 = vmatprep.subr.bf16.mxu0 0
  %2393 = vmatpush1.bf16.msra.mxu0 %v720
  %2394 = vmatprep.subr.bf16.mxu0 0
  %2395 = vmatpush1.bf16.msra.mxu0 %v723
  %2396 = vmatprep.subr.bf16.mxu0 0
  %2397 = vmatpush1.bf16.msra.mxu0 %v726
  %2398 = vmatprep.subr.bf16.mxu0 0
  %2399 = vmatpush1.bf16.msra.mxu0 %v729
  %2400 = vmatprep.subr.bf16.mxu0 0
  %2401 = vmatpush1.bf16.msra.mxu0 %v732
  %2402 = vmatprep.subr.bf16.mxu0 0
  %2403 = vmatpush1.bf16.msra.mxu0 %v735
  %2404 = vmatprep.subr.bf16.mxu0 0
  %2405 = vmatpush1.bf16.msra.mxu0 0
  %2406 = vmatprep.subr.bf16.mxu0 0
  %2407 = vmatpush1.bf16.msra.mxu0 0
  %2408 = vmatprep.subr.bf16.mxu0 0
  %2409 = vmatpush1.bf16.msra.mxu0 0
  %2410 = vmatprep.subr.bf16.mxu0 0
  %2411 = vmatpush1.bf16.msra.mxu0 0
  %2412 = vmatprep.subr.bf16.mxu0 0
  %2413 = vmatpush1.bf16.msra.mxu0 0
  %2414 = vmatprep.subr.bf16.mxu0 0
  %2415 = vmatpush1.bf16.msra.mxu0 0
  %2416 = vmatprep.subr.bf16.mxu0 0
  %2417 = vmatpush1.bf16.msra.mxu0 0
  %2418 = vmatprep.subr.bf16.mxu0 0
  %2419 = vmatpush1.bf16.msra.mxu0 0
  %2420 = vmatprep.mubr.bf16.mxu0 0
  %2421 = vmatmul.mubr.bf16.gmra.mrb[0].mxu0 %v2346
  %v2422 = vpop.f32.mrb[0].mxu0
  %v2423 = vadd.f32 %v66, %v2422
  %v2424 = vpop.f32.mrb[0].mxu0
  %v2425 = vpop.f32.mrb[0].mxu0
  %v2426 = vpop.f32.mrb[0].mxu0
  %2427 = vdwg.mxu0
  %v2428 = vld [vmem:[#allocation2 + $0x90] sm:$0xff]
  %v2429 = vld [vmem:[#allocation2 + $0x98] sm:$0xff]
  %v2430 = vld [vmem:[#allocation2 + $0xa0] sm:$0xff]
  %2431 = vmatprep.subr.bf16.mxu0 %v481
  %2432 = vmatpush1.bf16.msra.mxu0 %v480
  %2433 = vmatprep.subr.bf16.mxu0 %v484
  %2434 = vmatpush1.bf16.msra.mxu0 %v483
  %2435 = vmatprep.subr.bf16.mxu0 %v487
  %2436 = vmatpush1.bf16.msra.mxu0 %v486
  %2437 = vmatprep.subr.bf16.mxu0 %v490
  %2438 = vmatpush1.bf16.msra.mxu0 %v489
  %2439 = vmatprep.subr.bf16.mxu0 %v493
  %2440 = vmatpush1.bf16.msra.mxu0 %v492
  %2441 = vmatprep.subr.bf16.mxu0 %v496
  %2442 = vmatpush1.bf16.msra.mxu0 %v495
  %2443 = vmatprep.subr.bf16.mxu0 %v499
  %2444 = vmatpush1.bf16.msra.mxu0 %v498
  %2445 = vmatprep.subr.bf16.mxu0 %v502
  %2446 = vmatpush1.bf16.msra.mxu0 %v501
  %2447 = vmatprep.subr.bf16.mxu0 0
  %2448 = vmatpush1.bf16.msra.mxu0 0
  %2449 = vmatprep.subr.bf16.mxu0 0
  %2450 = vmatpush1.bf16.msra.mxu0 0
  %2451 = vmatprep.subr.bf16.mxu0 0
  %2452 = vmatpush1.bf16.msra.mxu0 0
  %2453 = vmatprep.subr.bf16.mxu0 0
  %2454 = vmatpush1.bf16.msra.mxu0 0
  %2455 = vmatprep.subr.bf16.mxu0 0
  %2456 = vmatpush1.bf16.msra.mxu0 0
  %2457 = vmatprep.subr.bf16.mxu0 0
  %2458 = vmatpush1.bf16.msra.mxu0 0
  %2459 = vmatprep.subr.bf16.mxu0 0
  %2460 = vmatpush1.bf16.msra.mxu0 0
  %2461 = vmatprep.subr.bf16.mxu0 0
  %2462 = vmatpush1.bf16.msra.mxu0 0
  %2463 = vmatprep.mubr.bf16.mxu0 0
  %2464 = vmatmul.mubr.bf16.gmra.mrb[0].mxu0 %v2346
  %v2465 = vpop.f32.mrb[0].mxu0
  %v2466 = vadd.f32 0.0, %v2465
  %v2467 = vpop.f32.mrb[0].mxu0
  %v2468 = vadd.f32 0.0, %v2467
  %v2469 = vpop.f32.mrb[0].mxu0
  %v2470 = vpop.f32.mrb[0].mxu0
  %2471 = vdwg.mxu0
  %2472 = vmatprep.subr.bf16.mxu0 0
  %2473 = vmatpush1.bf16.msra.mxu0 %v482
  %2474 = vmatprep.subr.bf16.mxu0 0
  %2475 = vmatpush1.bf16.msra.mxu0 %v485
  %2476 = vmatprep.subr.bf16.mxu0 0
  %2477 = vmatpush1.bf16.msra.mxu0 %v488
  %2478 = vmatprep.subr.bf16.mxu0 0
  %2479 = vmatpush1.bf16.msra.mxu0 %v491
  %2480 = vmatprep.subr.bf16.mxu0 0
  %2481 = vmatpush1.bf16.msra.mxu0 %v494
  %2482 = vmatprep.subr.bf16.mxu0 0
  %2483 = vmatpush1.bf16.msra.mxu0 %v497
  %2484 = vmatprep.subr.bf16.mxu0 0
  %2485 = vmatpush1.bf16.msra.mxu0 %v500
  %2486 = vmatprep.subr.bf16.mxu0 0
  %2487 = vmatpush1.bf16.msra.mxu0 %v503
  %2488 = vmatprep.subr.bf16.mxu0 0
  %2489 = vmatpush1.bf16.msra.mxu0 0
  %2490 = vmatprep.subr.bf16.mxu0 0
  %2491 = vmatpush1.bf16.msra.mxu0 0
  %2492 = vmatprep.subr.bf16.mxu0 0
  %2493 = vmatpush1.bf16.msra.mxu0 0
  %2494 = vmatprep.subr.bf16.mxu0 0
  %2495 = vmatpush1.bf16.msra.mxu0 0
  %2496 = vmatprep.subr.bf16.mxu0 0
  %2497 = vmatpush1.bf16.msra.mxu0 0
  %2498 = vmatprep.subr.bf16.mxu0 0
  %2499 = vmatpush1.bf16.msra.mxu0 0
  %2500 = vmatprep.subr.bf16.mxu0 0
  %2501 = vmatpush1.bf16.msra.mxu0 0
  %2502 = vmatprep.subr.bf16.mxu0 0
  %2503 = vmatpush1.bf16.msra.mxu0 0
  %2504 = vmatprep.mubr.bf16.mxu0 0
  %2505 = vmatmul.mubr.bf16.gmra.mrb[0].mxu0 %v2346
  %v2506 = vpop.f32.mrb[0].mxu0
  %v2507 = vadd.f32 0.0, %v2506
  %v2508 = vpop.f32.mrb[0].mxu0
  %v2509 = vpop.f32.mrb[0].mxu0
  %v2510 = vpop.f32.mrb[0].mxu0
  %2511 = vdwg.mxu0
  %v2512 = vadd.f32 %v2428, %v2466
  %v2513 = vxor.u32 %v2512, 2147483648
  %v2514 = vmul.f32 %v2513, 1.442695
  %v2515 = vpow.pop %v2514
  %v2516 = vadd.f32 %v2515, 1.0
  %v2517 = vrcp.pop %v2516
  %v2518 = vmul.f32 1.0, %v2517
  %v2519 = vadd.f32 %v2429, %v2468
  %v2520 = vxor.u32 %v2519, 2147483648
  %v2521 = vmul.f32 %v2520, 1.442695
  %v2522 = vpow.pop %v2521
  %v2523 = vadd.f32 %v2522, 1.0
  %v2524 = vrcp.pop %v2523
  %v2525 = vmul.f32 1.0, %v2524
  %v2526 = vadd.f32 %v2507, %v44
  %v2527 = vmul.f32 %v2518, %v2526
  %v2528 = vadd.f32 %v2430, %v2527
  %v2529 = vtanh.pop %v2528
  %v2530 = vsub.f32 1.0, %v2525
  %v2531 = vmul.f32 %v2530, %v2529
  %v2532 = vmul.f32 %v2525, %v2241
  %v2533 = vadd.f32 %v2531, %v2532
  %v2534 = vpack.c.bf16 %v2345, %v2345
  %2535 = vmatprep.subr.bf16.mxu0 %v1028
  %2536 = vmatpush1.bf16.msra.mxu0 %v1027
  %2537 = vmatprep.subr.bf16.mxu0 %v1031
  %2538 = vmatpush1.bf16.msra.mxu0 %v1030
  %2539 = vmatprep.subr.bf16.mxu0 %v1034
  %2540 = vmatpush1.bf16.msra.mxu0 %v1033
  %2541 = vmatprep.subr.bf16.mxu0 %v1037
  %2542 = vmatpush1.bf16.msra.mxu0 %v1036
  %2543 = vmatprep.subr.bf16.mxu0 %v1040
  %2544 = vmatpush1.bf16.msra.mxu0 %v1039
  %2545 = vmatprep.subr.bf16.mxu0 %v1043
  %2546 = vmatpush1.bf16.msra.mxu0 %v1042
  %2547 = vmatprep.subr.bf16.mxu0 %v1046
  %2548 = vmatpush1.bf16.msra.mxu0 %v1045
  %2549 = vmatprep.subr.bf16.mxu0 %v1049
  %2550 = vmatpush1.bf16.msra.mxu0 %v1048
  %2551 = vmatprep.subr.bf16.mxu0 0
  %2552 = vmatpush1.bf16.msra.mxu0 0
  %2553 = vmatprep.subr.bf16.mxu0 0
  %2554 = vmatpush1.bf16.msra.mxu0 0
  %2555 = vmatprep.subr.bf16.mxu0 0
  %2556 = vmatpush1.bf16.msra.mxu0 0
  %2557 = vmatprep.subr.bf16.mxu0 0
  %2558 = vmatpush1.bf16.msra.mxu0 0
  %2559 = vmatprep.subr.bf16.mxu0 0
  %2560 = vmatpush1.bf16.msra.mxu0 0
  %2561 = vmatprep.subr.bf16.mxu0 0
  %2562 = vmatpush1.bf16.msra.mxu0 0
  %2563 = vmatprep.subr.bf16.mxu0 0
  %2564 = vmatpush1.bf16.msra.mxu0 0
  %2565 = vmatprep.subr.bf16.mxu0 0
  %2566 = vmatpush1.bf16.msra.mxu0 0
  %2567 = vmatprep.mubr.bf16.mxu0 0
  %2568 = vmatmul.mubr.bf16.gmra.mrb[0].mxu0 %v2534
  %v2569 = vpop.f32.mrb[0].mxu0
  %v2570 = vadd.f32 0.0, %v2569
  %v2571 = vpop.f32.mrb[0].mxu0
  %v2572 = vadd.f32 0.0, %v2571
  %v2573 = vpop.f32.mrb[0].mxu0
  %v2574 = vpop.f32.mrb[0].mxu0
  %2575 = vdwg.mxu0
  %2576 = vmatprep.subr.bf16.mxu0 0
  %2577 = vmatpush1.bf16.msra.mxu0 %v1029
  %2578 = vmatprep.subr.bf16.mxu0 0
  %2579 = vmatpush1.bf16.msra.mxu0 %v1032
  %2580 = vmatprep.subr.bf16.mxu0 0
  %2581 = vmatpush1.bf16.msra.mxu0 %v1035
  %2582 = vmatprep.subr.bf16.mxu0 0
  %2583 = vmatpush1.bf16.msra.mxu0 %v1038
  %2584 = vmatprep.subr.bf16.mxu0 0
  %2585 = vmatpush1.bf16.msra.mxu0 %v1041
  %2586 = vmatprep.subr.bf16.mxu0 0
  %2587 = vmatpush1.bf16.msra.mxu0 %v1044
  %2588 = vmatprep.subr.bf16.mxu0 0
  %2589 = vmatpush1.bf16.msra.mxu0 %v1047
  %2590 = vmatprep.subr.bf16.mxu0 0
  %2591 = vmatpush1.bf16.msra.mxu0 %v1050
  %2592 = vmatprep.subr.bf16.mxu0 0
  %2593 = vmatpush1.bf16.msra.mxu0 0
  %2594 = vmatprep.subr.bf16.mxu0 0
  %2595 = vmatpush1.bf16.msra.mxu0 0
  %2596 = vmatprep.subr.bf16.mxu0 0
  %2597 = vmatpush1.bf16.msra.mxu0 0
  %2598 = vmatprep.subr.bf16.mxu0 0
  %2599 = vmatpush1.bf16.msra.mxu0 0
  %2600 = vmatprep.subr.bf16.mxu0 0
  %2601 = vmatpush1.bf16.msra.mxu0 0
  %2602 = vmatprep.subr.bf16.mxu0 0
  %2603 = vmatpush1.bf16.msra.mxu0 0
  %2604 = vmatprep.subr.bf16.mxu0 0
  %2605 = vmatpush1.bf16.msra.mxu0 0
  %2606 = vmatprep.subr.bf16.mxu0 0
  %2607 = vmatpush1.bf16.msra.mxu0 0
  %2608 = vmatprep.mubr.bf16.mxu0 0
  %2609 = vmatmul.mubr.bf16.gmra.mrb[0].mxu0 %v2534
  %v2610 = vpop.f32.mrb[0].mxu0
  %v2611 = vadd.f32 0.0, %v2610
  %v2612 = vpop.f32.mrb[0].mxu0
  %v2613 = vpop.f32.mrb[0].mxu0
  %v2614 = vpop.f32.mrb[0].mxu0
  %2615 = vdwg.mxu0
  %v2616 = vadd.f32 %v2382, %v2570
  %v2617 = vxor.u32 %v2616, 2147483648
  %v2618 = vmul.f32 %v2617, 1.442695
  %v2619 = vpow.pop %v2618
  %v2620 = vadd.f32 %v2619, 1.0
  %v2621 = vrcp.pop %v2620
  %v2622 = vmul.f32 1.0, %v2621
  %v2623 = vadd.f32 %v2384, %v2572
  %v2624 = vxor.u32 %v2623, 2147483648
  %v2625 = vmul.f32 %v2624, 1.442695
  %v2626 = vpow.pop %v2625
  %v2627 = vadd.f32 %v2626, 1.0
  %v2628 = vrcp.pop %v2627
  %v2629 = vmul.f32 1.0, %v2628
  %v2630 = vadd.f32 %v2611, %v51
  %v2631 = vmul.f32 %v2622, %v2630
  %v2632 = vadd.f32 %v2423, %v2631
  %v2633 = vtanh.pop %v2632
  %v2634 = vsub.f32 1.0, %v2629
  %v2635 = vmul.f32 %v2634, %v2633
  %v2636 = vmul.f32 %v2629, %v2345
  %v2637 = vadd.f32 %v2635, %v2636
  %v2638 = vpack.c.bf16 %v2533, %v2533
  %2639 = vmatprep.subr.bf16.mxu0 %v713
  %2640 = vmatpush1.bf16.msra.mxu0 %v712
  %2641 = vmatprep.subr.bf16.mxu0 %v716
  %2642 = vmatpush1.bf16.msra.mxu0 %v715
  %2643 = vmatprep.subr.bf16.mxu0 %v719
  %2644 = vmatpush1.bf16.msra.mxu0 %v718
  %2645 = vmatprep.subr.bf16.mxu0 %v722
  %2646 = vmatpush1.bf16.msra.mxu0 %v721
  %2647 = vmatprep.subr.bf16.mxu0 %v725
  %2648 = vmatpush1.bf16.msra.mxu0 %v724
  %2649 = vmatprep.subr.bf16.mxu0 %v728
  %2650 = vmatpush1.bf16.msra.mxu0 %v727
  %2651 = vmatprep.subr.bf16.mxu0 %v731
  %2652 = vmatpush1.bf16.msra.mxu0 %v730
  %2653 = vmatprep.subr.bf16.mxu0 %v734
  %2654 = vmatpush1.bf16.msra.mxu0 %v733
  %2655 = vmatprep.subr.bf16.mxu0 0
  %2656 = vmatpush1.bf16.msra.mxu0 0
  %2657 = vmatprep.subr.bf16.mxu0 0
  %2658 = vmatpush1.bf16.msra.mxu0 0
  %2659 = vmatprep.subr.bf16.mxu0 0
  %2660 = vmatpush1.bf16.msra.mxu0 0
  %2661 = vmatprep.subr.bf16.mxu0 0
  %2662 = vmatpush1.bf16.msra.mxu0 0
  %2663 = vmatprep.subr.bf16.mxu0 0
  %2664 = vmatpush1.bf16.msra.mxu0 0
  %2665 = vmatprep.subr.bf16.mxu0 0
  %2666 = vmatpush1.bf16.msra.mxu0 0
  %2667 = vmatprep.subr.bf16.mxu0 0
  %2668 = vmatpush1.bf16.msra.mxu0 0
  %2669 = vmatprep.subr.bf16.mxu0 0
  %2670 = vmatpush1.bf16.msra.mxu0 0
  %2671 = vmatprep.mubr.bf16.mxu0 0
  %2672 = vmatmul.mubr.bf16.gmra.mrb[0].mxu0 %v2638
  %v2673 = vpop.f32.mrb[0].mxu0
  %v2674 = vadd.f32 %v58, %v2673
  %v2675 = vpop.f32.mrb[0].mxu0
  %v2676 = vadd.f32 %v62, %v2675
  %v2677 = vpop.f32.mrb[0].mxu0
  %v2678 = vpop.f32.mrb[0].mxu0
  %2679 = vdwg.mxu0
  %2680 = vmatprep.subr.bf16.mxu0 0
  %2681 = vmatpush1.bf16.msra.mxu0 %v714
  %2682 = vmatprep.subr.bf16.mxu0 0
  %2683 = vmatpush1.bf16.msra.mxu0 %v717
  %2684 = vmatprep.subr.bf16.mxu0 0
  %2685 = vmatpush1.bf16.msra.mxu0 %v720
  %2686 = vmatprep.subr.bf16.mxu0 0
  %2687 = vmatpush1.bf16.msra.mxu0 %v723
  %2688 = vmatprep.subr.bf16.mxu0 0
  %2689 = vmatpush1.bf16.msra.mxu0 %v726
  %2690 = vmatprep.subr.bf16.mxu0 0
  %2691 = vmatpush1.bf16.msra.mxu0 %v729
  %2692 = vmatprep.subr.bf16.mxu0 0
  %2693 = vmatpush1.bf16.msra.mxu0 %v732
  %2694 = vmatprep.subr.bf16.mxu0 0
  %2695 = vmatpush1.bf16.msra.mxu0 %v735
  %2696 = vmatprep.subr.bf16.mxu0 0
  %2697 = vmatpush1.bf16.msra.mxu0 0
  %2698 = vmatprep.subr.bf16.mxu0 0
  %2699 = vmatpush1.bf16.msra.mxu0 0
  %2700 = vmatprep.subr.bf16.mxu0 0
  %2701 = vmatpush1.bf16.msra.mxu0 0
  %2702 = vmatprep.subr.bf16.mxu0 0
  %2703 = vmatpush1.bf16.msra.mxu0 0
  %2704 = vmatprep.subr.bf16.mxu0 0
  %2705 = vmatpush1.bf16.msra.mxu0 0
  %2706 = vmatprep.subr.bf16.mxu0 0
  %2707 = vmatpush1.bf16.msra.mxu0 0
  %2708 = vmatprep.subr.bf16.mxu0 0
  %2709 = vmatpush1.bf16.msra.mxu0 0
  %2710 = vmatprep.subr.bf16.mxu0 0
  %2711 = vmatpush1.bf16.msra.mxu0 0
  %2712 = vmatprep.mubr.bf16.mxu0 0
  %2713 = vmatmul.mubr.bf16.gmra.mrb[0].mxu0 %v2638
  %v2714 = vpop.f32.mrb[0].mxu0
  %v2715 = vadd.f32 %v66, %v2714
  %v2716 = vpop.f32.mrb[0].mxu0
  %v2717 = vpop.f32.mrb[0].mxu0
  %v2718 = vpop.f32.mrb[0].mxu0
  %2719 = vdwg.mxu0
  %v2720 = vld [vmem:[#allocation2 + $0xa8] sm:$0xff]
  %v2721 = vld [vmem:[#allocation2 + $0xb0] sm:$0xff]
  %v2722 = vld [vmem:[#allocation2 + $0xb8] sm:$0xff]
  %2723 = vmatprep.subr.bf16.mxu0 %v481
  %2724 = vmatpush1.bf16.msra.mxu0 %v480
  %2725 = vmatprep.subr.bf16.mxu0 %v484
  %2726 = vmatpush1.bf16.msra.mxu0 %v483
  %2727 = vmatprep.subr.bf16.mxu0 %v487
  %2728 = vmatpush1.bf16.msra.mxu0 %v486
  %2729 = vmatprep.subr.bf16.mxu0 %v490
  %2730 = vmatpush1.bf16.msra.mxu0 %v489
  %2731 = vmatprep.subr.bf16.mxu0 %v493
  %2732 = vmatpush1.bf16.msra.mxu0 %v492
  %2733 = vmatprep.subr.bf16.mxu0 %v496
  %2734 = vmatpush1.bf16.msra.mxu0 %v495
  %2735 = vmatprep.subr.bf16.mxu0 %v499
  %2736 = vmatpush1.bf16.msra.mxu0 %v498
  %2737 = vmatprep.subr.bf16.mxu0 %v502
  %2738 = vmatpush1.bf16.msra.mxu0 %v501
  %2739 = vmatprep.subr.bf16.mxu0 0
  %2740 = vmatpush1.bf16.msra.mxu0 0
  %2741 = vmatprep.subr.bf16.mxu0 0
  %2742 = vmatpush1.bf16.msra.mxu0 0
  %2743 = vmatprep.subr.bf16.mxu0 0
  %2744 = vmatpush1.bf16.msra.mxu0 0
  %2745 = vmatprep.subr.bf16.mxu0 0
  %2746 = vmatpush1.bf16.msra.mxu0 0
  %2747 = vmatprep.subr.bf16.mxu0 0
  %2748 = vmatpush1.bf16.msra.mxu0 0
  %2749 = vmatprep.subr.bf16.mxu0 0
  %2750 = vmatpush1.bf16.msra.mxu0 0
  %2751 = vmatprep.subr.bf16.mxu0 0
  %2752 = vmatpush1.bf16.msra.mxu0 0
  %2753 = vmatprep.subr.bf16.mxu0 0
  %2754 = vmatpush1.bf16.msra.mxu0 0
  %2755 = vmatprep.mubr.bf16.mxu0 0
  %2756 = vmatmul.mubr.bf16.gmra.mrb[0].mxu0 %v2638
  %v2757 = vpop.f32.mrb[0].mxu0
  %v2758 = vadd.f32 0.0, %v2757
  %v2759 = vpop.f32.mrb[0].mxu0
  %v2760 = vadd.f32 0.0, %v2759
  %v2761 = vpop.f32.mrb[0].mxu0
  %v2762 = vpop.f32.mrb[0].mxu0
  %2763 = vdwg.mxu0
  %2764 = vmatprep.subr.bf16.mxu0 0
  %2765 = vmatpush1.bf16.msra.mxu0 %v482
  %2766 = vmatprep.subr.bf16.mxu0 0
  %2767 = vmatpush1.bf16.msra.mxu0 %v485
  %2768 = vmatprep.subr.bf16.mxu0 0
  %2769 = vmatpush1.bf16.msra.mxu0 %v488
  %2770 = vmatprep.subr.bf16.mxu0 0
  %2771 = vmatpush1.bf16.msra.mxu0 %v491
  %2772 = vmatprep.subr.bf16.mxu0 0
  %2773 = vmatpush1.bf16.msra.mxu0 %v494
  %2774 = vmatprep.subr.bf16.mxu0 0
  %2775 = vmatpush1.bf16.msra.mxu0 %v497
  %2776 = vmatprep.subr.bf16.mxu0 0
  %2777 = vmatpush1.bf16.msra.mxu0 %v500
  %2778 = vmatprep.subr.bf16.mxu0 0
  %2779 = vmatpush1.bf16.msra.mxu0 %v503
  %2780 = vmatprep.subr.bf16.mxu0 0
  %2781 = vmatpush1.bf16.msra.mxu0 0
  %2782 = vmatprep.subr.bf16.mxu0 0
  %2783 = vmatpush1.bf16.msra.mxu0 0
  %2784 = vmatprep.subr.bf16.mxu0 0
  %2785 = vmatpush1.bf16.msra.mxu0 0
  %2786 = vmatprep.subr.bf16.mxu0 0
  %2787 = vmatpush1.bf16.msra.mxu0 0
  %2788 = vmatprep.subr.bf16.mxu0 0
  %2789 = vmatpush1.bf16.msra.mxu0 0
  %2790 = vmatprep.subr.bf16.mxu0 0
  %2791 = vmatpush1.bf16.msra.mxu0 0
  %2792 = vmatprep.subr.bf16.mxu0 0
  %2793 = vmatpush1.bf16.msra.mxu0 0
  %2794 = vmatprep.subr.bf16.mxu0 0
  %2795 = vmatpush1.bf16.msra.mxu0 0
  %2796 = vmatprep.mubr.bf16.mxu0 0
  %2797 = vmatmul.mubr.bf16.gmra.mrb[0].mxu0 %v2638
  %v2798 = vpop.f32.mrb[0].mxu0
  %v2799 = vadd.f32 0.0, %v2798
  %v2800 = vpop.f32.mrb[0].mxu0
  %v2801 = vpop.f32.mrb[0].mxu0
  %v2802 = vpop.f32.mrb[0].mxu0
  %2803 = vdwg.mxu0
  %v2804 = vadd.f32 %v2720, %v2758
  %v2805 = vxor.u32 %v2804, 2147483648
  %v2806 = vmul.f32 %v2805, 1.442695
  %v2807 = vpow.pop %v2806
  %v2808 = vadd.f32 %v2807, 1.0
  %v2809 = vrcp.pop %v2808
  %v2810 = vmul.f32 1.0, %v2809
  %v2811 = vadd.f32 %v2721, %v2760
  %v2812 = vxor.u32 %v2811, 2147483648
  %v2813 = vmul.f32 %v2812, 1.442695
  %v2814 = vpow.pop %v2813
  %v2815 = vadd.f32 %v2814, 1.0
  %v2816 = vrcp.pop %v2815
  %v2817 = vmul.f32 1.0, %v2816
  %v2818 = vadd.f32 %v2799, %v44
  %v2819 = vmul.f32 %v2810, %v2818
  %v2820 = vadd.f32 %v2722, %v2819
  %v2821 = vtanh.pop %v2820
  %v2822 = vsub.f32 1.0, %v2817
  %v2823 = vmul.f32 %v2822, %v2821
  %v2824 = vmul.f32 %v2817, %v2533
  %v2825 = vadd.f32 %v2823, %v2824
  %v2826 = vpack.c.bf16 %v2637, %v2637
  %2827 = vmatprep.subr.bf16.mxu0 %v1028
  %2828 = vmatpush1.bf16.msra.mxu0 %v1027
  %2829 = vmatprep.subr.bf16.mxu0 %v1031
  %2830 = vmatpush1.bf16.msra.mxu0 %v1030
  %2831 = vmatprep.subr.bf16.mxu0 %v1034
  %2832 = vmatpush1.bf16.msra.mxu0 %v1033
  %2833 = vmatprep.subr.bf16.mxu0 %v1037
  %2834 = vmatpush1.bf16.msra.mxu0 %v1036
  %2835 = vmatprep.subr.bf16.mxu0 %v1040
  %2836 = vmatpush1.bf16.msra.mxu0 %v1039
  %2837 = vmatprep.subr.bf16.mxu0 %v1043
  %2838 = vmatpush1.bf16.msra.mxu0 %v1042
  %2839 = vmatprep.subr.bf16.mxu0 %v1046
  %2840 = vmatpush1.bf16.msra.mxu0 %v1045
  %2841 = vmatprep.subr.bf16.mxu0 %v1049
  %2842 = vmatpush1.bf16.msra.mxu0 %v1048
  %2843 = vmatprep.subr.bf16.mxu0 0
  %2844 = vmatpush1.bf16.msra.mxu0 0
  %2845 = vmatprep.subr.bf16.mxu0 0
  %2846 = vmatpush1.bf16.msra.mxu0 0
  %2847 = vmatprep.subr.bf16.mxu0 0
  %2848 = vmatpush1.bf16.msra.mxu0 0
  %2849 = vmatprep.subr.bf16.mxu0 0
  %2850 = vmatpush1.bf16.msra.mxu0 0
  %2851 = vmatprep.subr.bf16.mxu0 0
  %2852 = vmatpush1.bf16.msra.mxu0 0
  %2853 = vmatprep.subr.bf16.mxu0 0
  %2854 = vmatpush1.bf16.msra.mxu0 0
  %2855 = vmatprep.subr.bf16.mxu0 0
  %2856 = vmatpush1.bf16.msra.mxu0 0
  %2857 = vmatprep.subr.bf16.mxu0 0
  %2858 = vmatpush1.bf16.msra.mxu0 0
  %2859 = vmatprep.mubr.bf16.mxu0 0
  %2860 = vmatmul.mubr.bf16.gmra.mrb[0].mxu0 %v2826
  %v2861 = vpop.f32.mrb[0].mxu0
  %v2862 = vadd.f32 0.0, %v2861
  %v2863 = vpop.f32.mrb[0].mxu0
  %v2864 = vadd.f32 0.0, %v2863
  %v2865 = vpop.f32.mrb[0].mxu0
  %v2866 = vpop.f32.mrb[0].mxu0
  %2867 = vdwg.mxu0
  %2868 = vmatprep.subr.bf16.mxu0 0
  %2869 = vmatpush1.bf16.msra.mxu0 %v1029
  %2870 = vmatprep.subr.bf16.mxu0 0
  %2871 = vmatpush1.bf16.msra.mxu0 %v1032
  %2872 = vmatprep.subr.bf16.mxu0 0
  %2873 = vmatpush1.bf16.msra.mxu0 %v1035
  %2874 = vmatprep.subr.bf16.mxu0 0
  %2875 = vmatpush1.bf16.msra.mxu0 %v1038
  %2876 = vmatprep.subr.bf16.mxu0 0
  %2877 = vmatpush1.bf16.msra.mxu0 %v1041
  %2878 = vmatprep.subr.bf16.mxu0 0
  %2879 = vmatpush1.bf16.msra.mxu0 %v1044
  %2880 = vmatprep.subr.bf16.mxu0 0
  %2881 = vmatpush1.bf16.msra.mxu0 %v1047
  %2882 = vmatprep.subr.bf16.mxu0 0
  %2883 = vmatpush1.bf16.msra.mxu0 %v1050
  %2884 = vmatprep.subr.bf16.mxu0 0
  %2885 = vmatpush1.bf16.msra.mxu0 0
  %2886 = vmatprep.subr.bf16.mxu0 0
  %2887 = vmatpush1.bf16.msra.mxu0 0
  %2888 = vmatprep.subr.bf16.mxu0 0
  %2889 = vmatpush1.bf16.msra.mxu0 0
  %2890 = vmatprep.subr.bf16.mxu0 0
  %2891 = vmatpush1.bf16.msra.mxu0 0
  %2892 = vmatprep.subr.bf16.mxu0 0
  %2893 = vmatpush1.bf16.msra.mxu0 0
  %2894 = vmatprep.subr.bf16.mxu0 0
  %2895 = vmatpush1.bf16.msra.mxu0 0
  %2896 = vmatprep.subr.bf16.mxu0 0
  %2897 = vmatpush1.bf16.msra.mxu0 0
  %2898 = vmatprep.subr.bf16.mxu0 0
  %2899 = vmatpush1.bf16.msra.mxu0 0
  %2900 = vmatprep.mubr.bf16.mxu0 0
  %2901 = vmatmul.mubr.bf16.gmra.mrb[0].mxu0 %v2826
  %v2902 = vpop.f32.mrb[0].mxu0
  %v2903 = vadd.f32 0.0, %v2902
  %v2904 = vpop.f32.mrb[0].mxu0
  %v2905 = vpop.f32.mrb[0].mxu0
  %v2906 = vpop.f32.mrb[0].mxu0
  %2907 = vdwg.mxu0
  %v2908 = vadd.f32 %v2674, %v2862
  %v2909 = vxor.u32 %v2908, 2147483648
  %v2910 = vmul.f32 %v2909, 1.442695
  %v2911 = vpow.pop %v2910
  %v2912 = vadd.f32 %v2911, 1.0
  %v2913 = vrcp.pop %v2912
  %v2914 = vmul.f32 1.0, %v2913
  %v2915 = vadd.f32 %v2676, %v2864
  %v2916 = vxor.u32 %v2915, 2147483648
  %v2917 = vmul.f32 %v2916, 1.442695
  %v2918 = vpow.pop %v2917
  %v2919 = vadd.f32 %v2918, 1.0
  %v2920 = vrcp.pop %v2919
  %v2921 = vmul.f32 1.0, %v2920
  %v2922 = vadd.f32 %v2903, %v51
  %v2923 = vmul.f32 %v2914, %v2922
  %v2924 = vadd.f32 %v2715, %v2923
  %v2925 = vtanh.pop %v2924
  %v2926 = vsub.f32 1.0, %v2921
  %v2927 = vmul.f32 %v2926, %v2925
  %v2928 = vmul.f32 %v2921, %v2637
  %v2929 = vadd.f32 %v2927, %v2928
  %v2930 = vpack.c.bf16 %v2825, %v2825
  %2931 = vmatprep.subr.bf16.mxu0 %v713
  %2932 = vmatpush1.bf16.msra.mxu0 %v712
  %2933 = vmatprep.subr.bf16.mxu0 %v716
  %2934 = vmatpush1.bf16.msra.mxu0 %v715
  %2935 = vmatprep.subr.bf16.mxu0 %v719
  %2936 = vmatpush1.bf16.msra.mxu0 %v718
  %2937 = vmatprep.subr.bf16.mxu0 %v722
  %2938 = vmatpush1.bf16.msra.mxu0 %v721
  %2939 = vmatprep.subr.bf16.mxu0 %v725
  %2940 = vmatpush1.bf16.msra.mxu0 %v724
  %2941 = vmatprep.subr.bf16.mxu0 %v728
  %2942 = vmatpush1.bf16.msra.mxu0 %v727
  %2943 = vmatprep.subr.bf16.mxu0 %v731
  %2944 = vmatpush1.bf16.msra.mxu0 %v730
  %2945 = vmatprep.subr.bf16.mxu0 %v734
  %2946 = vmatpush1.bf16.msra.mxu0 %v733
  %2947 = vmatprep.subr.bf16.mxu0 0
  %2948 = vmatpush1.bf16.msra.mxu0 0
  %2949 = vmatprep.subr.bf16.mxu0 0
  %2950 = vmatpush1.bf16.msra.mxu0 0
  %2951 = vmatprep.subr.bf16.mxu0 0
  %2952 = vmatpush1.bf16.msra.mxu0 0
  %2953 = vmatprep.subr.bf16.mxu0 0
  %2954 = vmatpush1.bf16.msra.mxu0 0
  %2955 = vmatprep.subr.bf16.mxu0 0
  %2956 = vmatpush1.bf16.msra.mxu0 0
  %2957 = vmatprep.subr.bf16.mxu0 0
  %2958 = vmatpush1.bf16.msra.mxu0 0
  %2959 = vmatprep.subr.bf16.mxu0 0
  %2960 = vmatpush1.bf16.msra.mxu0 0
  %2961 = vmatprep.subr.bf16.mxu0 0
  %2962 = vmatpush1.bf16.msra.mxu0 0
  %2963 = vmatprep.mubr.bf16.mxu0 0
  %2964 = vmatmul.mubr.bf16.gmra.mrb[0].mxu0 %v2930
  %v2965 = vpop.f32.mrb[0].mxu0
  %v2966 = vadd.f32 %v58, %v2965
  %v2967 = vpop.f32.mrb[0].mxu0
  %v2968 = vadd.f32 %v62, %v2967
  %v2969 = vpop.f32.mrb[0].mxu0
  %v2970 = vpop.f32.mrb[0].mxu0
  %2971 = vdwg.mxu0
  %2972 = vmatprep.subr.bf16.mxu0 0
  %2973 = vmatpush1.bf16.msra.mxu0 %v714
  %2974 = vmatprep.subr.bf16.mxu0 0
  %2975 = vmatpush1.bf16.msra.mxu0 %v717
  %2976 = vmatprep.subr.bf16.mxu0 0
  %2977 = vmatpush1.bf16.msra.mxu0 %v720
  %2978 = vmatprep.subr.bf16.mxu0 0
  %2979 = vmatpush1.bf16.msra.mxu0 %v723
  %2980 = vmatprep.subr.bf16.mxu0 0
  %2981 = vmatpush1.bf16.msra.mxu0 %v726
  %2982 = vmatprep.subr.bf16.mxu0 0
  %2983 = vmatpush1.bf16.msra.mxu0 %v729
  %2984 = vmatprep.subr.bf16.mxu0 0
  %2985 = vmatpush1.bf16.msra.mxu0 %v732
  %2986 = vmatprep.subr.bf16.mxu0 0
  %2987 = vmatpush1.bf16.msra.mxu0 %v735
  %2988 = vmatprep.subr.bf16.mxu0 0
  %2989 = vmatpush1.bf16.msra.mxu0 0
  %2990 = vmatprep.subr.bf16.mxu0 0
  %2991 = vmatpush1.bf16.msra.mxu0 0
  %2992 = vmatprep.subr.bf16.mxu0 0
  %2993 = vmatpush1.bf16.msra.mxu0 0
  %2994 = vmatprep.subr.bf16.mxu0 0
  %2995 = vmatpush1.bf16.msra.mxu0 0
  %2996 = vmatprep.subr.bf16.mxu0 0
  %2997 = vmatpush1.bf16.msra.mxu0 0
  %2998 = vmatprep.subr.bf16.mxu0 0
  %2999 = vmatpush1.bf16.msra.mxu0 0
  %3000 = vmatprep.subr.bf16.mxu0 0
  %3001 = vmatpush1.bf16.msra.mxu0 0
  %3002 = vmatprep.subr.bf16.mxu0 0
  %3003 = vmatpush1.bf16.msra.mxu0 0
  %3004 = vmatprep.mubr.bf16.mxu0 0
  %3005 = vmatmul.mubr.bf16.gmra.mrb[0].mxu0 %v2930
  %v3006 = vpop.f32.mrb[0].mxu0
  %v3007 = vadd.f32 %v66, %v3006
  %v3008 = vpop.f32.mrb[0].mxu0
  %v3009 = vpop.f32.mrb[0].mxu0
  %v3010 = vpop.f32.mrb[0].mxu0
  %3011 = vdwg.mxu0
  %v3012 = vpack.c.bf16 %v2929, %v2929
  %3013 = vmatprep.subr.bf16.mxu0 %v1028
  %3014 = vmatpush1.bf16.msra.mxu0 %v1027
  %3015 = vmatprep.subr.bf16.mxu0 %v1031
  %3016 = vmatpush1.bf16.msra.mxu0 %v1030
  %3017 = vmatprep.subr.bf16.mxu0 %v1034
  %3018 = vmatpush1.bf16.msra.mxu0 %v1033
  %3019 = vmatprep.subr.bf16.mxu0 %v1037
  %3020 = vmatpush1.bf16.msra.mxu0 %v1036
  %3021 = vmatprep.subr.bf16.mxu0 %v1040
  %3022 = vmatpush1.bf16.msra.mxu0 %v1039
  %3023 = vmatprep.subr.bf16.mxu0 %v1043
  %3024 = vmatpush1.bf16.msra.mxu0 %v1042
  %3025 = vmatprep.subr.bf16.mxu0 %v1046
  %3026 = vmatpush1.bf16.msra.mxu0 %v1045
  %3027 = vmatprep.subr.bf16.mxu0 %v1049
  %3028 = vmatpush1.bf16.msra.mxu0 %v1048
  %3029 = vmatprep.subr.bf16.mxu0 0
  %3030 = vmatpush1.bf16.msra.mxu0 0
  %3031 = vmatprep.subr.bf16.mxu0 0
  %3032 = vmatpush1.bf16.msra.mxu0 0
  %3033 = vmatprep.subr.bf16.mxu0 0
  %3034 = vmatpush1.bf16.msra.mxu0 0
  %3035 = vmatprep.subr.bf16.mxu0 0
  %3036 = vmatpush1.bf16.msra.mxu0 0
  %3037 = vmatprep.subr.bf16.mxu0 0
  %3038 = vmatpush1.bf16.msra.mxu0 0
  %3039 = vmatprep.subr.bf16.mxu0 0
  %3040 = vmatpush1.bf16.msra.mxu0 0
  %3041 = vmatprep.subr.bf16.mxu0 0
  %3042 = vmatpush1.bf16.msra.mxu0 0
  %3043 = vmatprep.subr.bf16.mxu0 0
  %3044 = vmatpush1.bf16.msra.mxu0 0
  %3045 = vmatprep.mubr.bf16.mxu0 0
  %3046 = vmatmul.mubr.bf16.gmra.mrb[0].mxu0 %v3012
  %v3047 = vpop.f32.mrb[0].mxu0
  %v3048 = vadd.f32 0.0, %v3047
  %v3049 = vpop.f32.mrb[0].mxu0
  %v3050 = vadd.f32 0.0, %v3049
  %v3051 = vpop.f32.mrb[0].mxu0
  %v3052 = vpop.f32.mrb[0].mxu0
  %3053 = vdwg.mxu0
  %3054 = vmatprep.subr.bf16.mxu0 0
  %3055 = vmatpush1.bf16.msra.mxu0 %v1029
  %3056 = vmatprep.subr.bf16.mxu0 0
  %3057 = vmatpush1.bf16.msra.mxu0 %v1032
  %3058 = vmatprep.subr.bf16.mxu0 0
  %3059 = vmatpush1.bf16.msra.mxu0 %v1035
  %3060 = vmatprep.subr.bf16.mxu0 0
  %3061 = vmatpush1.bf16.msra.mxu0 %v1038
  %3062 = vmatprep.subr.bf16.mxu0 0
  %3063 = vmatpush1.bf16.msra.mxu0 %v1041
  %3064 = vmatprep.subr.bf16.mxu0 0
  %3065 = vmatpush1.bf16.msra.mxu0 %v1044
  %3066 = vmatprep.subr.bf16.mxu0 0
  %3067 = vmatpush1.bf16.msra.mxu0 %v1047
  %3068 = vmatprep.subr.bf16.mxu0 0
  %3069 = vmatpush1.bf16.msra.mxu0 %v1050
  %3070 = vmatprep.subr.bf16.mxu0 0
  %3071 = vmatpush1.bf16.msra.mxu0 0
  %3072 = vmatprep.subr.bf16.mxu0 0
  %3073 = vmatpush1.bf16.msra.mxu0 0
  %3074 = vmatprep.subr.bf16.mxu0 0
  %3075 = vmatpush1.bf16.msra.mxu0 0
  %3076 = vmatprep.subr.bf16.mxu0 0
  %3077 = vmatpush1.bf16.msra.mxu0 0
  %3078 = vmatprep.subr.bf16.mxu0 0
  %3079 = vmatpush1.bf16.msra.mxu0 0
  %3080 = vmatprep.subr.bf16.mxu0 0
  %3081 = vmatpush1.bf16.msra.mxu0 0
  %3082 = vmatprep.subr.bf16.mxu0 0
  %3083 = vmatpush1.bf16.msra.mxu0 0
  %3084 = vmatprep.subr.bf16.mxu0 0
  %3085 = vmatpush1.bf16.msra.mxu0 0
  %3086 = vmatprep.mubr.bf16.mxu0 0
  %3087 = vmatmul.mubr.bf16.gmra.mrb[0].mxu0 %v3012
  %v3088 = vpop.f32.mrb[0].mxu0
  %v3089 = vadd.f32 0.0, %v3088
  %v3090 = vpop.f32.mrb[0].mxu0
  %v3091 = vpop.f32.mrb[0].mxu0
  %v3092 = vpop.f32.mrb[0].mxu0
  %3093 = vdwg.mxu0
  %v3094 = vadd.f32 %v2966, %v3048
  %v3095 = vxor.u32 %v3094, 2147483648
  %v3096 = vmul.f32 %v3095, 1.442695
  %v3097 = vpow.pop %v3096
  %v3098 = vadd.f32 %v3097, 1.0
  %v3099 = vrcp.pop %v3098
  %v3100 = vmul.f32 1.0, %v3099
  %v3101 = vadd.f32 %v2968, %v3050
  %v3102 = vxor.u32 %v3101, 2147483648
  %v3103 = vmul.f32 %v3102, 1.442695
  %v3104 = vpow.pop %v3103
  %v3105 = vadd.f32 %v3104, 1.0
  %v3106 = vrcp.pop %v3105
  %v3107 = vmul.f32 1.0, %v3106
  %v3108 = vadd.f32 %v3089, %v51
  %v3109 = vmul.f32 %v3100, %v3108
  %v3110 = vadd.f32 %v3007, %v3109
  %v3111 = vtanh.pop %v3110
  %v3112 = vsub.f32 1.0, %v3107
  %v3113 = vmul.f32 %v3112, %v3111
  %v3114 = vmul.f32 %v3107, %v2929
  %v3115 = vadd.f32 %v3113, %v3114
  %v3116 = vld [vmem:[%s9] sm:$0xff]
  %v3117 = vld [vmem:[%s9 + $0x8] sm:$0xff]
  %v3118 = vld [vmem:[%s9 + $0x10] sm:$0xff]
  %v3119 = vld [vmem:[%s9 + $0x18] sm:$0xff]
  %v3120 = vld [vmem:[%s9 + $0x20] sm:$0xff]
  %v3121 = vld [vmem:[%s9 + $0x28] sm:$0xff]
  %v3122 = vld [vmem:[%s9 + $0x30] sm:$0xff]
  %v3123 = vld [vmem:[%s9 + $0x38] sm:$0xff]
  %v3124 = vld [vmem:[%s9 + $0x40] sm:$0xff]
  %v3125 = vld [vmem:[%s9 + $0x48] sm:$0xff]
  %v3126 = vld [vmem:[%s9 + $0x50] sm:$0xff]
  %v3127 = vld [vmem:[%s9 + $0x58] sm:$0xff]
  %v3128 = vld [vmem:[%s9 + $0x60] sm:$0xff]
  %v3129 = vld [vmem:[%s9 + $0x68] sm:$0xff]
  %v3130 = vld [vmem:[%s9 + $0x70] sm:$0xff]
  %v3131 = vld [vmem:[%s9 + $0x78] sm:$0xff]
  %v3132 = vld [vmem:[%s10] sm:$0x1]
  %v3134 = vlaneseq
  %v3135 = vshrl.u32 %v3134, 7
  %v3136 = vsub.s32 0, %v3135
  %v3137 = vrot.slane %v3132, %v3136
  %3139 = vmatprep.subr.mxu0 0.0
  %3140 = vmatpush1.msra.mxu0 %v3116
  %3141 = vmatprep.subr.mxu0 0.0
  %3142 = vmatpush1.msra.mxu0 %v3117
  %3143 = vmatprep.subr.mxu0 0.0
  %3144 = vmatpush1.msra.mxu0 %v3118
  %3145 = vmatprep.subr.mxu0 0.0
  %3146 = vmatpush1.msra.mxu0 %v3119
  %3147 = vmatprep.subr.mxu0 0.0
  %3148 = vmatpush1.msra.mxu0 %v3120
  %3149 = vmatprep.subr.mxu0 0.0
  %3150 = vmatpush1.msra.mxu0 %v3121
  %3151 = vmatprep.subr.mxu0 0.0
  %3152 = vmatpush1.msra.mxu0 %v3122
  %3153 = vmatprep.subr.mxu0 0.0
  %3154 = vmatpush1.msra.mxu0 %v3123
  %3155 = vmatprep.subr.mxu0 0.0
  %3156 = vmatpush1.msra.mxu0 %v3124
  %3157 = vmatprep.subr.mxu0 0.0
  %3158 = vmatpush1.msra.mxu0 %v3125
  %3159 = vmatprep.subr.mxu0 0.0
  %3160 = vmatpush1.msra.mxu0 %v3126
  %3161 = vmatprep.subr.mxu0 0.0
  %3162 = vmatpush1.msra.mxu0 %v3127
  %3163 = vmatprep.subr.mxu0 0.0
  %3164 = vmatpush1.msra.mxu0 %v3128
  %3165 = vmatprep.subr.mxu0 0.0
  %3166 = vmatpush1.msra.mxu0 %v3129
  %3167 = vmatprep.subr.mxu0 0.0
  %3168 = vmatpush1.msra.mxu0 %v3130
  %3169 = vmatprep.subr.mxu0 0.0
  %3170 = vmatpush1.msra.mxu0 %v3131
  %3171 = vmatprep.subr.mxu0 0.0
  %3172 = vmatpush1.msra.mxu0 0.0
  %3173 = vmatprep.subr.mxu0 0.0
  %3174 = vmatpush1.msra.mxu0 0.0
  %3175 = vmatprep.subr.mxu0 0.0
  %3176 = vmatpush1.msra.mxu0 0.0
  %3177 = vmatprep.subr.mxu0 0.0
  %3178 = vmatpush1.msra.mxu0 0.0
  %3179 = vmatprep.subr.mxu0 0.0
  %3180 = vmatpush1.msra.mxu0 0.0
  %3181 = vmatprep.subr.mxu0 0.0
  %3182 = vmatpush1.msra.mxu0 0.0
  %3183 = vmatprep.subr.mxu0 0.0
  %3184 = vmatpush1.msra.mxu0 0.0
  %3185 = vmatprep.subr.mxu0 0.0
  %3186 = vmatpush1.msra.mxu0 0.0
  %3187 = vmatprep.subr.mxu0 0.0
  %3188 = vmatpush1.msra.mxu0 0.0
  %3189 = vmatprep.subr.mxu0 0.0
  %3190 = vmatpush1.msra.mxu0 0.0
  %3191 = vmatprep.subr.mxu0 0.0
  %3192 = vmatpush1.msra.mxu0 0.0
  %3193 = vmatprep.subr.mxu0 0.0
  %3194 = vmatpush1.msra.mxu0 0.0
  %3195 = vmatprep.subr.mxu0 0.0
  %3196 = vmatpush1.msra.mxu0 0.0
  %3197 = vmatprep.subr.mxu0 0.0
  %3198 = vmatpush1.msra.mxu0 0.0
  %3199 = vmatprep.subr.mxu0 0.0
  %3200 = vmatpush1.msra.mxu0 0.0
  %3201 = vmatprep.subr.mxu0 0.0
  %3202 = vmatpush1.msra.mxu0 0.0
  %3203 = vmatprep.mubr.f32.mxu0 0.0
  %3204 = vmatmul.mubr.f32.gmra.mrb[0].mxu0 %v3115
  %v3205 = vpop.f32.mrb[0].mxu0
  %v3206 = vadd.f32 %v3137, %v3205
  %v3207 = vpop.f32.mrb[0].mxu0
  %3208 = vdwg.mxu0
  %3209 = vst [vmem:[%s11] sm:$0xff] %v3206
  // Predicated region
  $region46: #{gru_regressor.1} parent=0 // pred_check
    _
  $region47: #{gru_regressor.1} parent=0 // pred_check_branch
    %3211 = sbr.rel (0) target = $region49
  $region48: #{gru_regressor.1} parent=0 // pred_region
    _
  $region49: #{gru_regressor.1} parent=0 // pred_fallthru
    _
  // Predicated region
  $region50: #{gru_regressor.1} parent=0 // pred_check
    _
  $region51: #{gru_regressor.1} parent=0 // pred_check_branch
    %3213 = sbr.rel (0) target = $region53
  $region52: #{gru_regressor.1} parent=0 // pred_region
    _
  $region53: #{gru_regressor.1} parent=0 // pred_fallthru
    _

</llo_original>
